<compile_context>
chip_gen: v7x
topology: tpu7x:2x2x1
jax: 0.10.0
libtpu: 0.0.40
codegen_flags: <defaults>
</compile_context>

<pallas_src>
import math
from functools import partial

import jax
import jax.numpy as jnp
from jax.experimental import pallas as pl
from jax.experimental.pallas import tpu as pltpu


# ----------------------------- small in-kernel helpers -----------------------------

def _dot(a, b):
    # a @ b  (2-D x 2-D), f32 accumulate
    return jax.lax.dot_general(a, b, (((1,), (0,)), ((), ())),
                               preferred_element_type=jnp.float32)


def _softmax(x):
    m = jnp.max(x, axis=-1, keepdims=True)
    e = jnp.exp(x - m)
    return e * pl.reciprocal(jnp.sum(e, axis=-1, keepdims=True), approx=True)


def _log_softmax(x):
    m = jnp.max(x, axis=-1, keepdims=True)
    s = x - m
    return s - jnp.log(jnp.sum(jnp.exp(s), axis=-1, keepdims=True))


def _full_spec(shape):
    nd = len(shape)
    return pl.BlockSpec(shape, lambda i, _nd=nd: (0,) * _nd)


def _round_up(x, m):
    return ((x + m - 1) // m) * m


# ----------------------------- encoder kernel -----------------------------

def encoder_kernel(x_ref, iw_ref, ib_ref, wqkv_ref, wo_ref,
                   g1_ref, b1_ref, w1_ref, bf1_ref, w2_ref, bf2_ref,
                   g2_ref, b2_ref, out_ref,
                   *, n_layers, n_heads, batch, nodes, mm_dtype):
    """Initial embedding + GraphAttentionEncoder (fused-QKV MHA + BN + FF + BN per layer)."""
    BN, D = out_ref.shape
    B, N, H, L = batch, nodes, n_heads, n_layers
    dk = D // H
    inv_sqrt_dk = 1.0 / math.sqrt(dk)
    eps = 1e-5

    def mm(x):
        return x.astype(mm_dtype)

    # initial_embedder: Linear(2, D), full-width on flattened (B*N, 2)
    h = _dot(x_ref[...], iw_ref[...]) + ib_ref[...]              # (BN, D) f32

    for l in range(L):
        # fused Q|K|V projection: one (BN, D) @ (D, 3D) matmul (bf16 operands, f32 acc)
        qkv = _dot(mm(h), mm(wqkv_ref[l]))                       # (BN, 3D)

        # multi-head self-attention, batched over the graph axis (no per-batch unroll,
        # no masked partial stores); heads concatenated and projected with one fused W_O.
        ctx_heads = []
        for hh in range(H):
            qh = qkv[:, hh * dk:(hh + 1) * dk].reshape(B, N, dk)
            kh = qkv[:, D + hh * dk:D + (hh + 1) * dk].reshape(B, N, dk)
            vh = qkv[:, 2 * D + hh * dk:2 * D + (hh + 1) * dk].reshape(B, N, dk)
            s = jnp.einsum('bqd,bkd->bqk', mm(qh), mm(kh),
                           preferred_element_type=jnp.float32) * inv_sqrt_dk
            a = _softmax(s)                                      # (B, N, N) f32
            ctx_heads.append(jnp.einsum('bqk,bkd->bqd', mm(a), mm(vh),
                                        preferred_element_type=jnp.float32))
        ctx = jnp.concatenate(ctx_heads, axis=-1).reshape(BN, D)  # head-major concat
        h = h + _dot(mm(ctx), mm(wo_ref[l]))                     # fused W_O + residual

        # batch norm (training-mode statistics over all B*N rows)
        mean = jnp.mean(h, axis=0, keepdims=True)
        var = jnp.mean((h - mean) ** 2, axis=0, keepdims=True)
        h = (h - mean) * jax.lax.rsqrt(var + eps)
        h = h * g1_ref[pl.ds(l, 1), :] + b1_ref[pl.ds(l, 1), :]

        # feed-forward + residual
        hid = jnp.maximum(_dot(mm(h), mm(w1_ref[l])) + bf1_ref[pl.ds(l, 1), :], 0.0)
        h = h + _dot(mm(hid), mm(w2_ref[l])) + bf2_ref[pl.ds(l, 1), :]

        mean = jnp.mean(h, axis=0, keepdims=True)
        var = jnp.mean((h - mean) ** 2, axis=0, keepdims=True)
        h = (h - mean) * jax.lax.rsqrt(var + eps)
        h = h * g2_ref[pl.ds(l, 1), :] + b2_ref[pl.ds(l, 1), :]

    out_ref[...] = h


def run_encoder(points, p, *, n_layers, n_heads, mm_dtype=jnp.bfloat16):
    B, N, _ = points.shape
    D = p["init_w"].shape[1]
    L, H = n_layers, n_heads

    # pre-fuse per-head projection weights into full-width matrices (wrapper-side, free)
    w_q = p["wq"].transpose(0, 2, 1, 3).reshape(L, D, D)
    w_k = p["wk"].transpose(0, 2, 1, 3).reshape(L, D, D)
    w_v = p["wv"].transpose(0, 2, 1, 3).reshape(L, D, D)
    w_qkv = jnp.concatenate([w_q, w_k, w_v], axis=-1)            # (L, D, 3D)
    w_o = p["wo"].reshape(L, D, D)                               # fused head-output projection

    x_flat = points.reshape(B * N, 2)
    args = (x_flat, p["init_w"], p["init_b"], w_qkv, w_o,
            p["g1"], p["b1"], p["ff_w1"], p["ff_b1"], p["ff_w2"], p["ff_b2"],
            p["g2"], p["b2"])
    kernel = partial(encoder_kernel, n_layers=L, n_heads=H, batch=B, nodes=N,
                     mm_dtype=mm_dtype)
    out = pl.pallas_call(
        kernel,
        out_shape=jax.ShapeDtypeStruct((B * N, D), jnp.float32),
        grid=(1,),
        in_specs=[_full_spec(a.shape) for a in args],
        out_specs=_full_spec((B * N, D)),
        compiler_params=pltpu.CompilerParams(
            dimension_semantics=("arbitrary",),
            vmem_limit_bytes=32 * 1024 * 1024),
    )(*args)
    return out.reshape(B, N, D)


# ----------------------------- full greedy-decode kernel (all steps, one call) ----------

def decode_kernel(pf_ref, kt_ref, vt_ref, lk_ref, eaw_ref, qf_ref, wl0_ref, wout_ref,
                  order_ref, lpsum_ref,
                  *, n_heads, n_real, tanh_clipping, temp, unroll):
    """One grid step = full greedy rollout for TB batch rows (lane-dense, fixed shapes)."""
    TB, D, Mp = pf_ref.shape
    H = n_heads
    dk = D // H
    inv_sqrt_dk = 1.0 / math.sqrt(dk)
    inv_sqrt_d = 1.0 / math.sqrt(D)
    NEG = -1e9

    # step-invariant tensors (precomputed in the wrapper), loaded once; candidate axis on lanes
    pf = pf_ref[...]        # (TB, D, Mp)  project_fixed_context per candidate node
    kt = kt_ref[...]        # (TB, D, Mp)  glimpse keys, rows head-major
    vt = vt_ref[...]        # (TB, D, Mp)  glimpse values, rows head-major
    lk = lk_ref[...]        # (TB, D, Mp)  logit keys
    eaw = eaw_ref[...]      # (TB, D, Mp)  candidate embeddings @ W_step[last]
    qfix = qf_ref[...]      # (TB, D)      first-node half of step context (constant)
    wout = wout_ref[...]    # (D, D)       fused project_out

    col = jax.lax.broadcasted_iota(jnp.int32, (TB, Mp), 1).astype(jnp.float32)
    visited0 = (col >= float(n_real)).astype(jnp.float32)        # pad columns permanently masked

    def step_body(step, carry):
        visited, proj_last, order, lpsum = carry
        unvis = 1.0 - visited
        addmask = visited * NEG                                  # -1e9 at visited / pad nodes

        # graph context = masked mean over remaining nodes (pre-projected; linearity)
        cnt = jnp.sum(unvis, axis=-1, keepdims=True)             # (TB, 1)
        graph_ctx = jnp.sum(unvis[:, None, :] * pf, axis=-1) \
            * pl.reciprocal(cnt, approx=True)                    # (TB, D)

        # query = graph_ctx + project_step_context([embed_first, embed_last])
        q = graph_ctx + qfix + proj_last                         # (TB, D)

        # masked multi-head glimpse attention, all heads at once, then fused project_out
        compat = jnp.sum((q[:, :, None] * kt).reshape(TB, H, dk, Mp), axis=2) \
            * inv_sqrt_dk + addmask[:, None, :]                  # (TB, H, Mp)
        attn = _softmax(compat)                                  # (TB, H, Mp)
        attn_rep = jnp.broadcast_to(attn[:, :, None, :],
                                    (TB, H, dk, Mp)).reshape(TB, D, Mp)
        ctx = jnp.sum(attn_rep * vt, axis=-1)                    # (TB, D) head-major concat
        final_q = _dot(ctx, wout)                                # (TB, D)

        # logits -> tanh clipping -> masked log-softmax
        logits = jnp.sum(final_q[:, :, None] * lk, axis=1) * inv_sqrt_d   # (TB, Mp)
        vals = jnp.tanh(logits) * (tanh_clipping / temp) + addmask
        logp = _log_softmax(vals)                                # (TB, Mp)

        # greedy selection: first index attaining the row max (vectorized)
        rowmax = jnp.max(logp, axis=-1, keepdims=True)
        sel = jnp.min(jnp.where(logp >= rowmax, col, float(Mp)),
                      axis=-1, keepdims=True)
        onehot = (col == sel).astype(jnp.float32)                # (TB, Mp)

        order = order + onehot * (step + 1).astype(jnp.float32)
        lpsum = lpsum + jnp.sum(onehot * logp, axis=-1, keepdims=True)
        visited = visited + onehot
        proj_last = jnp.sum(onehot[:, None, :] * eaw, axis=-1)   # (TB, D) new last-node proj
        return visited, proj_last, order, lpsum

    init = (visited0, wl0_ref[...],
            jnp.zeros((TB, Mp), jnp.float32), jnp.zeros((TB, 1), jnp.float32))
    _, _, order, lpsum = jax.lax.fori_loop(0, n_real, step_body, init, unroll=unroll)

    order_ref[...] = order          # single lane-dense store per block
    lpsum_ref[...] = lpsum


def run_decoder(emb, p, *, n_heads, tanh_clipping, temp, block_b=8, unroll=2):
    Bt, N, D = emb.shape
    M = N - 1
    H = n_heads
    dk = D // H
    Mp = _round_up(M, 128)                     # lane-dense candidate axis
    TB = block_b
    Btp = _round_up(Bt, TB)

    emb_p = jnp.pad(emb, ((0, Btp - Bt), (0, 0), (0, 0)), mode="edge")
    emb_a = emb_p[:, 1:]                       # (Btp, M, D) candidates
    emb0 = emb_p[:, 0]                         # (Btp, D)    fixed first node

    # ---- hoisted, step-invariant projections (all linear, no bias) ----
    kvl = jnp.einsum('bmd,de->bme', emb_a, p["w_node"])           # (Btp, M, 3D)
    k_t = kvl[..., :D].transpose(0, 2, 1)                         # (Btp, D, M) head-major rows
    v_t = kvl[..., D:2 * D].transpose(0, 2, 1)                    # (Btp, D, M)
    lk_t = kvl[..., 2 * D:].transpose(0, 2, 1)                    # (Btp, D, M)
    pf_t = jnp.einsum('bmd,de->bem', emb_a, p["w_fixed"])         # (Btp, D, M)
    eaw_t = jnp.einsum('bmd,de->bem', emb_a, p["w_step"][D:])     # (Btp, D, M)
    q_first = emb0 @ p["w_step"][:D]                              # (Btp, D)
    wl0 = emb0 @ p["w_step"][D:]                                  # (Btp, D) initial last-node proj

    pad3 = ((0, 0), (0, 0), (0, Mp - M))
    k_t, v_t, lk_t = jnp.pad(k_t, pad3), jnp.pad(v_t, pad3), jnp.pad(lk_t, pad3)
    pf_t, eaw_t = jnp.pad(pf_t, pad3), jnp.pad(eaw_t, pad3)

    args = (pf_t, k_t, v_t, lk_t, eaw_t, q_first, wl0, p["w_out"])
    in_specs = [
        pl.BlockSpec((TB, D, Mp), lambda b: (b, 0, 0)),
        pl.BlockSpec((TB, D, Mp), lambda b: (b, 0, 0)),
        pl.BlockSpec((TB, D, Mp), lambda b: (b, 0, 0)),
        pl.BlockSpec((TB, D, Mp), lambda b: (b, 0, 0)),
        pl.BlockSpec((TB, D, Mp), lambda b: (b, 0, 0)),
        pl.BlockSpec((TB, D), lambda b: (b, 0)),
        pl.BlockSpec((TB, D), lambda b: (b, 0)),
        pl.BlockSpec((D, D), lambda b: (0, 0)),
    ]
    out_specs = (
        pl.BlockSpec((TB, Mp), lambda b: (b, 0)),
        pl.BlockSpec((TB, 1), lambda b: (b, 0)),
    )
    kernel = partial(decode_kernel, n_heads=H, n_real=M,
                     tanh_clipping=tanh_clipping, temp=temp, unroll=unroll)
    order, lpsum = pl.pallas_call(
        kernel,
        out_shape=(jax.ShapeDtypeStruct((Btp, Mp), jnp.float32),
                   jax.ShapeDtypeStruct((Btp, 1), jnp.float32)),
        grid=(Btp // TB,),
        in_specs=in_specs,
        out_specs=out_specs,
        compiler_params=pltpu.CompilerParams(
            dimension_semantics=("parallel",),
            vmem_limit_bytes=32 * 1024 * 1024),
    )(*args)
    return order[:Bt, :M], lpsum[:Bt, 0]


# ----------------------------- full forward (glue) -----------------------------

def efficient_opt_transformer_forward(points, params, cfg, decode_type="greedy",
                                      n_rollout=1, mm_dtype=jnp.bfloat16):
    B, N, _ = points.shape
    emb = run_encoder(points, params, n_layers=cfg["n_layers_encoder"],
                      n_heads=cfg["n_heads"], mm_dtype=mm_dtype)
    emb = jnp.tile(emb, (n_rollout, 1, 1))
    pts = jnp.tile(points, (n_rollout, 1, 1))
    Bt = emb.shape[0]

    if decode_type != "greedy":
        # TODO(synk): 'sampling' decode (multinomial) not implemented; greedy only.
        raise NotImplementedError("only greedy decoding is implemented")

    order, log_p_total = run_decoder(emb, params, n_heads=cfg["n_heads"],
                                     tanh_clipping=cfg["tanh_clipping"], temp=1.0)
    # order[b, j] = (1-based) step at which candidate j (original node j+1) was selected.
    perm = jnp.argsort(order, axis=1)                             # (Bt, N-1)
    tours = jnp.concatenate(
        [jnp.zeros((Bt, 1), jnp.int32), (perm + 1).astype(jnp.int32)], axis=1)   # (Bt, N)

    # TSP.get_costs: gather coords in tour order, sum edge lengths incl. closing edge.
    d = jnp.take_along_axis(pts, tours[:, :, None], axis=1)       # (Bt, N, 2)
    seg = jnp.linalg.norm(d[:, 1:] - d[:, :-1], axis=-1).sum(axis=1)
    close = jnp.linalg.norm(d[:, 0] - d[:, -1], axis=-1)
    cost = seg + close
    return cost, log_p_total, tours


# ----------------------------- deterministic parameter init -----------------------------

def init_params(key, D, H, L, F):
    def u(k, shape, scale=0.2):
        return jax.random.uniform(k, shape, jnp.float32, -scale, scale)

    ks = jax.random.split(key, 18)
    dk = D // H
    return dict(
        init_w=u(ks[0], (2, D)),          # initial_embedder weight (x @ W)
        init_b=u(ks[1], (1, D)),          # initial_embedder bias
        wq=u(ks[2], (L, H, D, dk)),       # encoder per-head projections
        wk=u(ks[3], (L, H, D, dk)),
        wv=u(ks[4], (L, H, D, dk)),
        wo=u(ks[5], (L, H, dk, D)),
        g1=1.0 + u(ks[6], (L, D), 0.05),  # batch-norm 1 gamma / beta
        b1=u(ks[7], (L, D), 0.05),
        ff_w1=u(ks[8], (L, D, F)),        # feed-forward
        ff_b1=u(ks[9], (L, F)),
        ff_w2=u(ks[10], (L, F, D)),
        ff_b2=u(ks[11], (L, D)),
        g2=1.0 + u(ks[12], (L, D), 0.05),
        b2=u(ks[13], (L, D), 0.05),
        w_fixed=u(ks[14], (D, D)),        # project_fixed_context
        w_node=u(ks[15], (D, 3 * D)),     # project_node_embeddings
        w_step=u(ks[16], (2 * D, D)),     # project_step_context
        w_out=u(ks[17], (D, D)),          # project_out (head-major concat input)
    )


# ----------------------------- main -----------------------------

if __name__ == "__main__":
    cfg = dict(embedding_dim=32, hidden_dim=64, n_layers_encoder=2,
               n_heads=4, tanh_clipping=10.0, normalization="batch")
    B, N = 2, 8

    key = jax.random.PRNGKey(0)
    k_pts, k_par = jax.random.split(key)
    points = jax.random.uniform(k_pts, (B, N, 2), jnp.float32)     # (batch, node, 2)
    params = init_params(k_par, cfg["embedding_dim"], cfg["n_heads"],
                         cfg["n_layers_encoder"], cfg["hidden_dim"])

    cost, log_p_total, tours = efficient_opt_transformer_forward(
        points, params, cfg, decode_type="greedy", n_rollout=1)
    jax.block_until_ready((cost, log_p_total, tours))
    print("KERNEL_OK")
</pallas_src>

<mosaic_0001>
module attributes {stable_mosaic.version = 11 : i64} {
  func.func @encoder_kernel(%arg0: i32, %arg1: memref<16x2xf32, #tpu.memory_space<vmem>>, %arg2: memref<2x32xf32, #tpu.memory_space<vmem>>, %arg3: memref<1x32xf32, #tpu.memory_space<vmem>>, %arg4: memref<2x32x96xf32, #tpu.memory_space<vmem>>, %arg5: memref<2x32x32xf32, #tpu.memory_space<vmem>>, %arg6: memref<2x32xf32, #tpu.memory_space<vmem>>, %arg7: memref<2x32xf32, #tpu.memory_space<vmem>>, %arg8: memref<2x32x64xf32, #tpu.memory_space<vmem>>, %arg9: memref<2x64xf32, #tpu.memory_space<vmem>>, %arg10: memref<2x64x32xf32, #tpu.memory_space<vmem>>, %arg11: memref<2x32xf32, #tpu.memory_space<vmem>>, %arg12: memref<2x32xf32, #tpu.memory_space<vmem>>, %arg13: memref<2x32xf32, #tpu.memory_space<vmem>>, %arg14: memref<16x32xf32, #tpu.memory_space<vmem>>) attributes {dimension_semantics = [#tpu.dimension_semantics<arbitrary>], iteration_bounds = array<i64: 1>, scalar_prefetch = 0 : i64, scratch_operands = 0 : i64, tpu.core_type = #tpu.core_type<tc>, window_params = [{pipeline_mode = #tpu.pipeline_mode<synchronous>, transform_indices = @transform_0, window_bounds = array<i64: 16, 2>}, {pipeline_mode = #tpu.pipeline_mode<synchronous>, transform_indices = @transform_1, window_bounds = array<i64: 2, 32>}, {pipeline_mode = #tpu.pipeline_mode<synchronous>, transform_indices = @transform_2, window_bounds = array<i64: 1, 32>}, {pipeline_mode = #tpu.pipeline_mode<synchronous>, transform_indices = @transform_3, window_bounds = array<i64: 2, 32, 96>}, {pipeline_mode = #tpu.pipeline_mode<synchronous>, transform_indices = @transform_4, window_bounds = array<i64: 2, 32, 32>}, {pipeline_mode = #tpu.pipeline_mode<synchronous>, transform_indices = @transform_5, window_bounds = array<i64: 2, 32>}, {pipeline_mode = #tpu.pipeline_mode<synchronous>, transform_indices = @transform_6, window_bounds = array<i64: 2, 32>}, {pipeline_mode = #tpu.pipeline_mode<synchronous>, transform_indices = @transform_7, window_bounds = array<i64: 2, 32, 64>}, {pipeline_mode = #tpu.pipeline_mode<synchronous>, transform_indices = @transform_8, window_bounds = array<i64: 2, 64>}, {pipeline_mode = #tpu.pipeline_mode<synchronous>, transform_indices = @transform_9, window_bounds = array<i64: 2, 64, 32>}, {pipeline_mode = #tpu.pipeline_mode<synchronous>, transform_indices = @transform_10, window_bounds = array<i64: 2, 32>}, {pipeline_mode = #tpu.pipeline_mode<synchronous>, transform_indices = @transform_11, window_bounds = array<i64: 2, 32>}, {pipeline_mode = #tpu.pipeline_mode<synchronous>, transform_indices = @transform_12, window_bounds = array<i64: 2, 32>}, {pipeline_mode = #tpu.pipeline_mode<synchronous>, transform_indices = @transform_13, window_bounds = array<i64: 16, 32>}]} {
    %c0 = arith.constant 0 : index
    %c0_0 = arith.constant 0 : index
    %0 = vector.load %arg1[%c0, %c0_0] : memref<16x2xf32, #tpu.memory_space<vmem>>, vector<16x2xf32>
    %c0_1 = arith.constant 0 : index
    %c0_2 = arith.constant 0 : index
    %1 = vector.load %arg2[%c0_1, %c0_2] : memref<2x32xf32, #tpu.memory_space<vmem>>, vector<2x32xf32>
    %cst = arith.constant dense<0.000000e+00> : vector<16x32xf32>
    %2 = tpu.matmul %0, %1, %cst {dimension_numbers = #tpu.dot_dimension_numbers<[1], [0], [0], [1], [0, 0, 1, 1], [], []>} : vector<16x2xf32>, vector<2x32xf32>, vector<16x32xf32> -> vector<16x32xf32>
    %c0_3 = arith.constant 0 : index
    %c0_4 = arith.constant 0 : index
    %3 = vector.load %arg3[%c0_3, %c0_4] : memref<1x32xf32, #tpu.memory_space<vmem>>, vector<1x32xf32>
    %4 = vector.broadcast %3 : vector<1x32xf32> to vector<16x32xf32>
    %5 = arith.addf %2, %4 : vector<16x32xf32>
    %6 = arith.truncf %5 : vector<16x32xf32> to vector<16x32xbf16>
    %c0_5 = arith.constant 0 : index
    %c0_6 = arith.constant 0 : index
    %c0_7 = arith.constant 0 : index
    %7 = vector.load %arg4[%c0_5, %c0_6, %c0_7] : memref<2x32x96xf32, #tpu.memory_space<vmem>>, vector<1x32x96xf32>
    %8 = vector.shape_cast %7 : vector<1x32x96xf32> to vector<32x96xf32>
    %9 = arith.truncf %8 : vector<32x96xf32> to vector<32x96xbf16>
    %cst_8 = arith.constant dense<0.000000e+00> : vector<16x96xf32>
    %10 = tpu.matmul %6, %9, %cst_8 {dimension_numbers = #tpu.dot_dimension_numbers<[1], [0], [0], [1], [0, 0, 1, 1], [], []>} : vector<16x32xbf16>, vector<32x96xbf16>, vector<16x96xf32> -> vector<16x96xf32>
    %11 = vector.extract_strided_slice %10 {offsets = [0, 0], sizes = [16, 8], strides = [1, 1]} : vector<16x96xf32> to vector<16x8xf32>
    %12 = vector.shape_cast %11 : vector<16x8xf32> to vector<2x8x8xf32>
    %13 = vector.extract_strided_slice %10 {offsets = [0, 32], sizes = [16, 8], strides = [1, 1]} : vector<16x96xf32> to vector<16x8xf32>
    %14 = vector.shape_cast %13 : vector<16x8xf32> to vector<2x8x8xf32>
    %15 = vector.extract_strided_slice %10 {offsets = [0, 64], sizes = [16, 8], strides = [1, 1]} : vector<16x96xf32> to vector<16x8xf32>
    %16 = vector.shape_cast %15 : vector<16x8xf32> to vector<2x8x8xf32>
    %17 = arith.truncf %12 : vector<2x8x8xf32> to vector<2x8x8xbf16>
    %18 = arith.truncf %14 : vector<2x8x8xf32> to vector<2x8x8xbf16>
    "tpu.trace_start"() <{level = 10 : i32, message = "bqd,bkd->bqk"}> : () -> ()
    %cst_9 = arith.constant dense<0.000000e+00> : vector<2x8x8xf32>
    %19 = tpu.matmul %17, %18, %cst_9 {dimension_numbers = #tpu.dot_dimension_numbers<[2], [2], [1], [1], [0, 0, 0, 1, 1, 1], [0], [0]>} : vector<2x8x8xbf16>, vector<2x8x8xbf16>, vector<2x8x8xf32> -> vector<2x8x8xf32>
    "tpu.trace_stop"() : () -> ()
    %cst_10 = arith.constant 0.353553385 : f32
    %20 = vector.broadcast %cst_10 : f32 to vector<2x8x8xf32>
    %21 = arith.mulf %19, %20 : vector<2x8x8xf32>
    %cst_11 = arith.constant dense<0xFF800000> : vector<2x8xf32>
    %22 = vector.multi_reduction <maximumf>, %21, %cst_11 [2] : vector<2x8x8xf32> to vector<2x8xf32>
    %23 = vector.shape_cast %22 : vector<2x8xf32> to vector<2x8x1xf32>
    %24 = vector.broadcast %23 : vector<2x8x1xf32> to vector<2x8x8xf32>
    %25 = arith.subf %21, %24 : vector<2x8x8xf32>
    %26 = math.exp %25 : vector<2x8x8xf32>
    %cst_12 = arith.constant dense<0.000000e+00> : vector<2x8xf32>
    %27 = vector.multi_reduction <add>, %26, %cst_12 [2] : vector<2x8x8xf32> to vector<2x8xf32>
    %28 = vector.shape_cast %27 : vector<2x8xf32> to vector<2x8x1xf32>
    %29 = tpu.reciprocal %28 {approx = true} : vector<2x8x1xf32> -> vector<2x8x1xf32>
    %30 = vector.broadcast %29 : vector<2x8x1xf32> to vector<2x8x8xf32>
    %31 = arith.mulf %26, %30 : vector<2x8x8xf32>
    %32 = arith.truncf %31 : vector<2x8x8xf32> to vector<2x8x8xbf16>
    %33 = arith.truncf %16 : vector<2x8x8xf32> to vector<2x8x8xbf16>
    "tpu.trace_start"() <{level = 10 : i32, message = "bqk,bkd->bqd"}> : () -> ()
    %cst_13 = arith.constant dense<0.000000e+00> : vector<2x8x8xf32>
    %34 = tpu.matmul %32, %33, %cst_13 {dimension_numbers = #tpu.dot_dimension_numbers<[2], [1], [1], [2], [0, 0, 0, 1, 1, 2], [0], [0]>} : vector<2x8x8xbf16>, vector<2x8x8xbf16>, vector<2x8x8xf32> -> vector<2x8x8xf32>
    "tpu.trace_stop"() : () -> ()
    %35 = vector.extract_strided_slice %10 {offsets = [0, 8], sizes = [16, 8], strides = [1, 1]} : vector<16x96xf32> to vector<16x8xf32>
    %36 = vector.shape_cast %35 : vector<16x8xf32> to vector<2x8x8xf32>
    %37 = vector.extract_strided_slice %10 {offsets = [0, 40], sizes = [16, 8], strides = [1, 1]} : vector<16x96xf32> to vector<16x8xf32>
    %38 = vector.shape_cast %37 : vector<16x8xf32> to vector<2x8x8xf32>
    %39 = vector.extract_strided_slice %10 {offsets = [0, 72], sizes = [16, 8], strides = [1, 1]} : vector<16x96xf32> to vector<16x8xf32>
    %40 = vector.shape_cast %39 : vector<16x8xf32> to vector<2x8x8xf32>
    %41 = arith.truncf %36 : vector<2x8x8xf32> to vector<2x8x8xbf16>
    %42 = arith.truncf %38 : vector<2x8x8xf32> to vector<2x8x8xbf16>
    "tpu.trace_start"() <{level = 10 : i32, message = "bqd,bkd->bqk"}> : () -> ()
    %cst_14 = arith.constant dense<0.000000e+00> : vector<2x8x8xf32>
    %43 = tpu.matmul %41, %42, %cst_14 {dimension_numbers = #tpu.dot_dimension_numbers<[2], [2], [1], [1], [0, 0, 0, 1, 1, 1], [0], [0]>} : vector<2x8x8xbf16>, vector<2x8x8xbf16>, vector<2x8x8xf32> -> vector<2x8x8xf32>
    "tpu.trace_stop"() : () -> ()
    %cst_15 = arith.constant 0.353553385 : f32
    %44 = vector.broadcast %cst_15 : f32 to vector<2x8x8xf32>
    %45 = arith.mulf %43, %44 : vector<2x8x8xf32>
    %cst_16 = arith.constant dense<0xFF800000> : vector<2x8xf32>
    %46 = vector.multi_reduction <maximumf>, %45, %cst_16 [2] : vector<2x8x8xf32> to vector<2x8xf32>
    %47 = vector.shape_cast %46 : vector<2x8xf32> to vector<2x8x1xf32>
    %48 = vector.broadcast %47 : vector<2x8x1xf32> to vector<2x8x8xf32>
    %49 = arith.subf %45, %48 : vector<2x8x8xf32>
    %50 = math.exp %49 : vector<2x8x8xf32>
    %cst_17 = arith.constant dense<0.000000e+00> : vector<2x8xf32>
    %51 = vector.multi_reduction <add>, %50, %cst_17 [2] : vector<2x8x8xf32> to vector<2x8xf32>
    %52 = vector.shape_cast %51 : vector<2x8xf32> to vector<2x8x1xf32>
    %53 = tpu.reciprocal %52 {approx = true} : vector<2x8x1xf32> -> vector<2x8x1xf32>
    %54 = vector.broadcast %53 : vector<2x8x1xf32> to vector<2x8x8xf32>
    %55 = arith.mulf %50, %54 : vector<2x8x8xf32>
    %56 = arith.truncf %55 : vector<2x8x8xf32> to vector<2x8x8xbf16>
    %57 = arith.truncf %40 : vector<2x8x8xf32> to vector<2x8x8xbf16>
    "tpu.trace_start"() <{level = 10 : i32, message = "bqk,bkd->bqd"}> : () -> ()
    %cst_18 = arith.constant dense<0.000000e+00> : vector<2x8x8xf32>
    %58 = tpu.matmul %56, %57, %cst_18 {dimension_numbers = #tpu.dot_dimension_numbers<[2], [1], [1], [2], [0, 0, 0, 1, 1, 2], [0], [0]>} : vector<2x8x8xbf16>, vector<2x8x8xbf16>, vector<2x8x8xf32> -> vector<2x8x8xf32>
    "tpu.trace_stop"() : () -> ()
    %59 = vector.extract_strided_slice %10 {offsets = [0, 16], sizes = [16, 8], strides = [1, 1]} : vector<16x96xf32> to vector<16x8xf32>
    %60 = vector.shape_cast %59 : vector<16x8xf32> to vector<2x8x8xf32>
    %61 = vector.extract_strided_slice %10 {offsets = [0, 48], sizes = [16, 8], strides = [1, 1]} : vector<16x96xf32> to vector<16x8xf32>
    %62 = vector.shape_cast %61 : vector<16x8xf32> to vector<2x8x8xf32>
    %63 = vector.extract_strided_slice %10 {offsets = [0, 80], sizes = [16, 8], strides = [1, 1]} : vector<16x96xf32> to vector<16x8xf32>
    %64 = vector.shape_cast %63 : vector<16x8xf32> to vector<2x8x8xf32>
    %65 = arith.truncf %60 : vector<2x8x8xf32> to vector<2x8x8xbf16>
    %66 = arith.truncf %62 : vector<2x8x8xf32> to vector<2x8x8xbf16>
    "tpu.trace_start"() <{level = 10 : i32, message = "bqd,bkd->bqk"}> : () -> ()
    %cst_19 = arith.constant dense<0.000000e+00> : vector<2x8x8xf32>
    %67 = tpu.matmul %65, %66, %cst_19 {dimension_numbers = #tpu.dot_dimension_numbers<[2], [2], [1], [1], [0, 0, 0, 1, 1, 1], [0], [0]>} : vector<2x8x8xbf16>, vector<2x8x8xbf16>, vector<2x8x8xf32> -> vector<2x8x8xf32>
    "tpu.trace_stop"() : () -> ()
    %cst_20 = arith.constant 0.353553385 : f32
    %68 = vector.broadcast %cst_20 : f32 to vector<2x8x8xf32>
    %69 = arith.mulf %67, %68 : vector<2x8x8xf32>
    %cst_21 = arith.constant dense<0xFF800000> : vector<2x8xf32>
    %70 = vector.multi_reduction <maximumf>, %69, %cst_21 [2] : vector<2x8x8xf32> to vector<2x8xf32>
    %71 = vector.shape_cast %70 : vector<2x8xf32> to vector<2x8x1xf32>
    %72 = vector.broadcast %71 : vector<2x8x1xf32> to vector<2x8x8xf32>
    %73 = arith.subf %69, %72 : vector<2x8x8xf32>
    %74 = math.exp %73 : vector<2x8x8xf32>
    %cst_22 = arith.constant dense<0.000000e+00> : vector<2x8xf32>
    %75 = vector.multi_reduction <add>, %74, %cst_22 [2] : vector<2x8x8xf32> to vector<2x8xf32>
    %76 = vector.shape_cast %75 : vector<2x8xf32> to vector<2x8x1xf32>
    %77 = tpu.reciprocal %76 {approx = true} : vector<2x8x1xf32> -> vector<2x8x1xf32>
    %78 = vector.broadcast %77 : vector<2x8x1xf32> to vector<2x8x8xf32>
    %79 = arith.mulf %74, %78 : vector<2x8x8xf32>
    %80 = arith.truncf %79 : vector<2x8x8xf32> to vector<2x8x8xbf16>
    %81 = arith.truncf %64 : vector<2x8x8xf32> to vector<2x8x8xbf16>
    "tpu.trace_start"() <{level = 10 : i32, message = "bqk,bkd->bqd"}> : () -> ()
    %cst_23 = arith.constant dense<0.000000e+00> : vector<2x8x8xf32>
    %82 = tpu.matmul %80, %81, %cst_23 {dimension_numbers = #tpu.dot_dimension_numbers<[2], [1], [1], [2], [0, 0, 0, 1, 1, 2], [0], [0]>} : vector<2x8x8xbf16>, vector<2x8x8xbf16>, vector<2x8x8xf32> -> vector<2x8x8xf32>
    "tpu.trace_stop"() : () -> ()
    %83 = vector.extract_strided_slice %10 {offsets = [0, 24], sizes = [16, 8], strides = [1, 1]} : vector<16x96xf32> to vector<16x8xf32>
    %84 = vector.shape_cast %83 : vector<16x8xf32> to vector<2x8x8xf32>
    %85 = vector.extract_strided_slice %10 {offsets = [0, 56], sizes = [16, 8], strides = [1, 1]} : vector<16x96xf32> to vector<16x8xf32>
    %86 = vector.shape_cast %85 : vector<16x8xf32> to vector<2x8x8xf32>
    %87 = vector.extract_strided_slice %10 {offsets = [0, 88], sizes = [16, 8], strides = [1, 1]} : vector<16x96xf32> to vector<16x8xf32>
    %88 = vector.shape_cast %87 : vector<16x8xf32> to vector<2x8x8xf32>
    %89 = arith.truncf %84 : vector<2x8x8xf32> to vector<2x8x8xbf16>
    %90 = arith.truncf %86 : vector<2x8x8xf32> to vector<2x8x8xbf16>
    "tpu.trace_start"() <{level = 10 : i32, message = "bqd,bkd->bqk"}> : () -> ()
    %cst_24 = arith.constant dense<0.000000e+00> : vector<2x8x8xf32>
    %91 = tpu.matmul %89, %90, %cst_24 {dimension_numbers = #tpu.dot_dimension_numbers<[2], [2], [1], [1], [0, 0, 0, 1, 1, 1], [0], [0]>} : vector<2x8x8xbf16>, vector<2x8x8xbf16>, vector<2x8x8xf32> -> vector<2x8x8xf32>
    "tpu.trace_stop"() : () -> ()
    %cst_25 = arith.constant 0.353553385 : f32
    %92 = vector.broadcast %cst_25 : f32 to vector<2x8x8xf32>
    %93 = arith.mulf %91, %92 : vector<2x8x8xf32>
    %cst_26 = arith.constant dense<0xFF800000> : vector<2x8xf32>
    %94 = vector.multi_reduction <maximumf>, %93, %cst_26 [2] : vector<2x8x8xf32> to vector<2x8xf32>
    %95 = vector.shape_cast %94 : vector<2x8xf32> to vector<2x8x1xf32>
    %96 = vector.broadcast %95 : vector<2x8x1xf32> to vector<2x8x8xf32>
    %97 = arith.subf %93, %96 : vector<2x8x8xf32>
    %98 = math.exp %97 : vector<2x8x8xf32>
    %cst_27 = arith.constant dense<0.000000e+00> : vector<2x8xf32>
    %99 = vector.multi_reduction <add>, %98, %cst_27 [2] : vector<2x8x8xf32> to vector<2x8xf32>
    %100 = vector.shape_cast %99 : vector<2x8xf32> to vector<2x8x1xf32>
    %101 = tpu.reciprocal %100 {approx = true} : vector<2x8x1xf32> -> vector<2x8x1xf32>
    %102 = vector.broadcast %101 : vector<2x8x1xf32> to vector<2x8x8xf32>
    %103 = arith.mulf %98, %102 : vector<2x8x8xf32>
    %104 = arith.truncf %103 : vector<2x8x8xf32> to vector<2x8x8xbf16>
    %105 = arith.truncf %88 : vector<2x8x8xf32> to vector<2x8x8xbf16>
    "tpu.trace_start"() <{level = 10 : i32, message = "bqk,bkd->bqd"}> : () -> ()
    %cst_28 = arith.constant dense<0.000000e+00> : vector<2x8x8xf32>
    %106 = tpu.matmul %104, %105, %cst_28 {dimension_numbers = #tpu.dot_dimension_numbers<[2], [1], [1], [2], [0, 0, 0, 1, 1, 2], [0], [0]>} : vector<2x8x8xbf16>, vector<2x8x8xbf16>, vector<2x8x8xf32> -> vector<2x8x8xf32>
    "tpu.trace_stop"() : () -> ()
    %107 = tpu.concatenate %34, %58, %82, %106 in 2 : vector<2x8x8xf32>, vector<2x8x8xf32>, vector<2x8x8xf32>, vector<2x8x8xf32> -> vector<2x8x32xf32>
    %108 = vector.shape_cast %107 : vector<2x8x32xf32> to vector<16x32xf32>
    %109 = arith.truncf %108 : vector<16x32xf32> to vector<16x32xbf16>
    %c0_29 = arith.constant 0 : index
    %c0_30 = arith.constant 0 : index
    %c0_31 = arith.constant 0 : index
    %110 = vector.load %arg5[%c0_29, %c0_30, %c0_31] : memref<2x32x32xf32, #tpu.memory_space<vmem>>, vector<1x32x32xf32>
    %111 = vector.shape_cast %110 : vector<1x32x32xf32> to vector<32x32xf32>
    %112 = arith.truncf %111 : vector<32x32xf32> to vector<32x32xbf16>
    %cst_32 = arith.constant dense<0.000000e+00> : vector<16x32xf32>
    %113 = tpu.matmul %109, %112, %cst_32 {dimension_numbers = #tpu.dot_dimension_numbers<[1], [0], [0], [1], [0, 0, 1, 1], [], []>} : vector<16x32xbf16>, vector<32x32xbf16>, vector<16x32xf32> -> vector<16x32xf32>
    %114 = arith.addf %5, %113 : vector<16x32xf32>
    %cst_33 = arith.constant dense<0.000000e+00> : vector<32xf32>
    %115 = vector.multi_reduction <add>, %114, %cst_33 [0] : vector<16x32xf32> to vector<32xf32>
    %116 = vector.shape_cast %115 : vector<32xf32> to vector<1x32xf32>
    %cst_34 = arith.constant 1.600000e+01 : f32
    %117 = vector.broadcast %cst_34 : f32 to vector<1x32xf32>
    %118 = arith.divf %116, %117 : vector<1x32xf32>
    %119 = vector.broadcast %118 : vector<1x32xf32> to vector<16x32xf32>
    %120 = arith.subf %114, %119 : vector<16x32xf32>
    %121 = arith.mulf %120, %120 : vector<16x32xf32>
    %cst_35 = arith.constant dense<0.000000e+00> : vector<32xf32>
    %122 = vector.multi_reduction <add>, %121, %cst_35 [0] : vector<16x32xf32> to vector<32xf32>
    %123 = vector.shape_cast %122 : vector<32xf32> to vector<1x32xf32>
    %cst_36 = arith.constant 1.600000e+01 : f32
    %124 = vector.broadcast %cst_36 : f32 to vector<1x32xf32>
    %125 = arith.divf %123, %124 : vector<1x32xf32>
    %126 = vector.broadcast %118 : vector<1x32xf32> to vector<16x32xf32>
    %127 = arith.subf %114, %126 : vector<16x32xf32>
    %cst_37 = arith.constant 9.99999974E-6 : f32
    %128 = vector.broadcast %cst_37 : f32 to vector<1x32xf32>
    %129 = arith.addf %125, %128 : vector<1x32xf32>
    %130 = math.rsqrt %129 : vector<1x32xf32>
    %131 = vector.broadcast %130 : vector<1x32xf32> to vector<16x32xf32>
    %132 = arith.mulf %127, %131 : vector<16x32xf32>
    %c0_38 = arith.constant 0 : index
    %c0_39 = arith.constant 0 : index
    %133 = vector.load %arg6[%c0_38, %c0_39] : memref<2x32xf32, #tpu.memory_space<vmem>>, vector<1x32xf32>
    %134 = vector.broadcast %133 : vector<1x32xf32> to vector<16x32xf32>
    %135 = arith.mulf %132, %134 : vector<16x32xf32>
    %c0_40 = arith.constant 0 : index
    %c0_41 = arith.constant 0 : index
    %136 = vector.load %arg7[%c0_40, %c0_41] : memref<2x32xf32, #tpu.memory_space<vmem>>, vector<1x32xf32>
    %137 = vector.broadcast %136 : vector<1x32xf32> to vector<16x32xf32>
    %138 = arith.addf %135, %137 : vector<16x32xf32>
    %139 = arith.truncf %138 : vector<16x32xf32> to vector<16x32xbf16>
    %c0_42 = arith.constant 0 : index
    %c0_43 = arith.constant 0 : index
    %c0_44 = arith.constant 0 : index
    %140 = vector.load %arg8[%c0_42, %c0_43, %c0_44] : memref<2x32x64xf32, #tpu.memory_space<vmem>>, vector<1x32x64xf32>
    %141 = vector.shape_cast %140 : vector<1x32x64xf32> to vector<32x64xf32>
    %142 = arith.truncf %141 : vector<32x64xf32> to vector<32x64xbf16>
    %cst_45 = arith.constant dense<0.000000e+00> : vector<16x64xf32>
    %143 = tpu.matmul %139, %142, %cst_45 {dimension_numbers = #tpu.dot_dimension_numbers<[1], [0], [0], [1], [0, 0, 1, 1], [], []>} : vector<16x32xbf16>, vector<32x64xbf16>, vector<16x64xf32> -> vector<16x64xf32>
    %c0_46 = arith.constant 0 : index
    %c0_47 = arith.constant 0 : index
    %144 = vector.load %arg9[%c0_46, %c0_47] : memref<2x64xf32, #tpu.memory_space<vmem>>, vector<1x64xf32>
    %145 = vector.broadcast %144 : vector<1x64xf32> to vector<16x64xf32>
    %146 = arith.addf %143, %145 : vector<16x64xf32>
    %cst_48 = arith.constant 0.000000e+00 : f32
    %147 = vector.broadcast %cst_48 : f32 to vector<16x64xf32>
    %148 = arith.maximumf %146, %147 : vector<16x64xf32>
    %149 = arith.truncf %148 : vector<16x64xf32> to vector<16x64xbf16>
    %c0_49 = arith.constant 0 : index
    %c0_50 = arith.constant 0 : index
    %c0_51 = arith.constant 0 : index
    %150 = vector.load %arg10[%c0_49, %c0_50, %c0_51] : memref<2x64x32xf32, #tpu.memory_space<vmem>>, vector<1x64x32xf32>
    %151 = vector.shape_cast %150 : vector<1x64x32xf32> to vector<64x32xf32>
    %152 = arith.truncf %151 : vector<64x32xf32> to vector<64x32xbf16>
    %cst_52 = arith.constant dense<0.000000e+00> : vector<16x32xf32>
    %153 = tpu.matmul %149, %152, %cst_52 {dimension_numbers = #tpu.dot_dimension_numbers<[1], [0], [0], [1], [0, 0, 1, 1], [], []>} : vector<16x64xbf16>, vector<64x32xbf16>, vector<16x32xf32> -> vector<16x32xf32>
    %154 = arith.addf %138, %153 : vector<16x32xf32>
    %c0_53 = arith.constant 0 : index
    %c0_54 = arith.constant 0 : index
    %155 = vector.load %arg11[%c0_53, %c0_54] : memref<2x32xf32, #tpu.memory_space<vmem>>, vector<1x32xf32>
    %156 = vector.broadcast %155 : vector<1x32xf32> to vector<16x32xf32>
    %157 = arith.addf %154, %156 : vector<16x32xf32>
    %cst_55 = arith.constant dense<0.000000e+00> : vector<32xf32>
    %158 = vector.multi_reduction <add>, %157, %cst_55 [0] : vector<16x32xf32> to vector<32xf32>
    %159 = vector.shape_cast %158 : vector<32xf32> to vector<1x32xf32>
    %cst_56 = arith.constant 1.600000e+01 : f32
    %160 = vector.broadcast %cst_56 : f32 to vector<1x32xf32>
    %161 = arith.divf %159, %160 : vector<1x32xf32>
    %162 = vector.broadcast %161 : vector<1x32xf32> to vector<16x32xf32>
    %163 = arith.subf %157, %162 : vector<16x32xf32>
    %164 = arith.mulf %163, %163 : vector<16x32xf32>
    %cst_57 = arith.constant dense<0.000000e+00> : vector<32xf32>
    %165 = vector.multi_reduction <add>, %164, %cst_57 [0] : vector<16x32xf32> to vector<32xf32>
    %166 = vector.shape_cast %165 : vector<32xf32> to vector<1x32xf32>
    %cst_58 = arith.constant 1.600000e+01 : f32
    %167 = vector.broadcast %cst_58 : f32 to vector<1x32xf32>
    %168 = arith.divf %166, %167 : vector<1x32xf32>
    %169 = vector.broadcast %161 : vector<1x32xf32> to vector<16x32xf32>
    %170 = arith.subf %157, %169 : vector<16x32xf32>
    %cst_59 = arith.constant 9.99999974E-6 : f32
    %171 = vector.broadcast %cst_59 : f32 to vector<1x32xf32>
    %172 = arith.addf %168, %171 : vector<1x32xf32>
    %173 = math.rsqrt %172 : vector<1x32xf32>
    %174 = vector.broadcast %173 : vector<1x32xf32> to vector<16x32xf32>
    %175 = arith.mulf %170, %174 : vector<16x32xf32>
    %c0_60 = arith.constant 0 : index
    %c0_61 = arith.constant 0 : index
    %176 = vector.load %arg12[%c0_60, %c0_61] : memref<2x32xf32, #tpu.memory_space<vmem>>, vector<1x32xf32>
    %177 = vector.broadcast %176 : vector<1x32xf32> to vector<16x32xf32>
    %178 = arith.mulf %175, %177 : vector<16x32xf32>
    %c0_62 = arith.constant 0 : index
    %c0_63 = arith.constant 0 : index
    %179 = vector.load %arg13[%c0_62, %c0_63] : memref<2x32xf32, #tpu.memory_space<vmem>>, vector<1x32xf32>
    %180 = vector.broadcast %179 : vector<1x32xf32> to vector<16x32xf32>
    %181 = arith.addf %178, %180 : vector<16x32xf32>
    %182 = arith.truncf %181 : vector<16x32xf32> to vector<16x32xbf16>
    %c1 = arith.constant 1 : index
    %c0_64 = arith.constant 0 : index
    %c0_65 = arith.constant 0 : index
    %183 = vector.load %arg4[%c1, %c0_64, %c0_65] : memref<2x32x96xf32, #tpu.memory_space<vmem>>, vector<1x32x96xf32>
    %184 = vector.shape_cast %183 : vector<1x32x96xf32> to vector<32x96xf32>
    %185 = arith.truncf %184 : vector<32x96xf32> to vector<32x96xbf16>
    %cst_66 = arith.constant dense<0.000000e+00> : vector<16x96xf32>
    %186 = tpu.matmul %182, %185, %cst_66 {dimension_numbers = #tpu.dot_dimension_numbers<[1], [0], [0], [1], [0, 0, 1, 1], [], []>} : vector<16x32xbf16>, vector<32x96xbf16>, vector<16x96xf32> -> vector<16x96xf32>
    %187 = vector.extract_strided_slice %186 {offsets = [0, 0], sizes = [16, 8], strides = [1, 1]} : vector<16x96xf32> to vector<16x8xf32>
    %188 = vector.shape_cast %187 : vector<16x8xf32> to vector<2x8x8xf32>
    %189 = vector.extract_strided_slice %186 {offsets = [0, 32], sizes = [16, 8], strides = [1, 1]} : vector<16x96xf32> to vector<16x8xf32>
    %190 = vector.shape_cast %189 : vector<16x8xf32> to vector<2x8x8xf32>
    %191 = vector.extract_strided_slice %186 {offsets = [0, 64], sizes = [16, 8], strides = [1, 1]} : vector<16x96xf32> to vector<16x8xf32>
    %192 = vector.shape_cast %191 : vector<16x8xf32> to vector<2x8x8xf32>
    %193 = arith.truncf %188 : vector<2x8x8xf32> to vector<2x8x8xbf16>
    %194 = arith.truncf %190 : vector<2x8x8xf32> to vector<2x8x8xbf16>
    "tpu.trace_start"() <{level = 10 : i32, message = "bqd,bkd->bqk"}> : () -> ()
    %cst_67 = arith.constant dense<0.000000e+00> : vector<2x8x8xf32>
    %195 = tpu.matmul %193, %194, %cst_67 {dimension_numbers = #tpu.dot_dimension_numbers<[2], [2], [1], [1], [0, 0, 0, 1, 1, 1], [0], [0]>} : vector<2x8x8xbf16>, vector<2x8x8xbf16>, vector<2x8x8xf32> -> vector<2x8x8xf32>
    "tpu.trace_stop"() : () -> ()
    %cst_68 = arith.constant 0.353553385 : f32
    %196 = vector.broadcast %cst_68 : f32 to vector<2x8x8xf32>
    %197 = arith.mulf %195, %196 : vector<2x8x8xf32>
    %cst_69 = arith.constant dense<0xFF800000> : vector<2x8xf32>
    %198 = vector.multi_reduction <maximumf>, %197, %cst_69 [2] : vector<2x8x8xf32> to vector<2x8xf32>
    %199 = vector.shape_cast %198 : vector<2x8xf32> to vector<2x8x1xf32>
    %200 = vector.broadcast %199 : vector<2x8x1xf32> to vector<2x8x8xf32>
    %201 = arith.subf %197, %200 : vector<2x8x8xf32>
    %202 = math.exp %201 : vector<2x8x8xf32>
    %cst_70 = arith.constant dense<0.000000e+00> : vector<2x8xf32>
    %203 = vector.multi_reduction <add>, %202, %cst_70 [2] : vector<2x8x8xf32> to vector<2x8xf32>
    %204 = vector.shape_cast %203 : vector<2x8xf32> to vector<2x8x1xf32>
    %205 = tpu.reciprocal %204 {approx = true} : vector<2x8x1xf32> -> vector<2x8x1xf32>
    %206 = vector.broadcast %205 : vector<2x8x1xf32> to vector<2x8x8xf32>
    %207 = arith.mulf %202, %206 : vector<2x8x8xf32>
    %208 = arith.truncf %207 : vector<2x8x8xf32> to vector<2x8x8xbf16>
    %209 = arith.truncf %192 : vector<2x8x8xf32> to vector<2x8x8xbf16>
    "tpu.trace_start"() <{level = 10 : i32, message = "bqk,bkd->bqd"}> : () -> ()
    %cst_71 = arith.constant dense<0.000000e+00> : vector<2x8x8xf32>
    %210 = tpu.matmul %208, %209, %cst_71 {dimension_numbers = #tpu.dot_dimension_numbers<[2], [1], [1], [2], [0, 0, 0, 1, 1, 2], [0], [0]>} : vector<2x8x8xbf16>, vector<2x8x8xbf16>, vector<2x8x8xf32> -> vector<2x8x8xf32>
    "tpu.trace_stop"() : () -> ()
    %211 = vector.extract_strided_slice %186 {offsets = [0, 8], sizes = [16, 8], strides = [1, 1]} : vector<16x96xf32> to vector<16x8xf32>
    %212 = vector.shape_cast %211 : vector<16x8xf32> to vector<2x8x8xf32>
    %213 = vector.extract_strided_slice %186 {offsets = [0, 40], sizes = [16, 8], strides = [1, 1]} : vector<16x96xf32> to vector<16x8xf32>
    %214 = vector.shape_cast %213 : vector<16x8xf32> to vector<2x8x8xf32>
    %215 = vector.extract_strided_slice %186 {offsets = [0, 72], sizes = [16, 8], strides = [1, 1]} : vector<16x96xf32> to vector<16x8xf32>
    %216 = vector.shape_cast %215 : vector<16x8xf32> to vector<2x8x8xf32>
    %217 = arith.truncf %212 : vector<2x8x8xf32> to vector<2x8x8xbf16>
    %218 = arith.truncf %214 : vector<2x8x8xf32> to vector<2x8x8xbf16>
    "tpu.trace_start"() <{level = 10 : i32, message = "bqd,bkd->bqk"}> : () -> ()
    %cst_72 = arith.constant dense<0.000000e+00> : vector<2x8x8xf32>
    %219 = tpu.matmul %217, %218, %cst_72 {dimension_numbers = #tpu.dot_dimension_numbers<[2], [2], [1], [1], [0, 0, 0, 1, 1, 1], [0], [0]>} : vector<2x8x8xbf16>, vector<2x8x8xbf16>, vector<2x8x8xf32> -> vector<2x8x8xf32>
    "tpu.trace_stop"() : () -> ()
    %cst_73 = arith.constant 0.353553385 : f32
    %220 = vector.broadcast %cst_73 : f32 to vector<2x8x8xf32>
    %221 = arith.mulf %219, %220 : vector<2x8x8xf32>
    %cst_74 = arith.constant dense<0xFF800000> : vector<2x8xf32>
    %222 = vector.multi_reduction <maximumf>, %221, %cst_74 [2] : vector<2x8x8xf32> to vector<2x8xf32>
    %223 = vector.shape_cast %222 : vector<2x8xf32> to vector<2x8x1xf32>
    %224 = vector.broadcast %223 : vector<2x8x1xf32> to vector<2x8x8xf32>
    %225 = arith.subf %221, %224 : vector<2x8x8xf32>
    %226 = math.exp %225 : vector<2x8x8xf32>
    %cst_75 = arith.constant dense<0.000000e+00> : vector<2x8xf32>
    %227 = vector.multi_reduction <add>, %226, %cst_75 [2] : vector<2x8x8xf32> to vector<2x8xf32>
    %228 = vector.shape_cast %227 : vector<2x8xf32> to vector<2x8x1xf32>
    %229 = tpu.reciprocal %228 {approx = true} : vector<2x8x1xf32> -> vector<2x8x1xf32>
    %230 = vector.broadcast %229 : vector<2x8x1xf32> to vector<2x8x8xf32>
    %231 = arith.mulf %226, %230 : vector<2x8x8xf32>
    %232 = arith.truncf %231 : vector<2x8x8xf32> to vector<2x8x8xbf16>
    %233 = arith.truncf %216 : vector<2x8x8xf32> to vector<2x8x8xbf16>
    "tpu.trace_start"() <{level = 10 : i32, message = "bqk,bkd->bqd"}> : () -> ()
    %cst_76 = arith.constant dense<0.000000e+00> : vector<2x8x8xf32>
    %234 = tpu.matmul %232, %233, %cst_76 {dimension_numbers = #tpu.dot_dimension_numbers<[2], [1], [1], [2], [0, 0, 0, 1, 1, 2], [0], [0]>} : vector<2x8x8xbf16>, vector<2x8x8xbf16>, vector<2x8x8xf32> -> vector<2x8x8xf32>
    "tpu.trace_stop"() : () -> ()
    %235 = vector.extract_strided_slice %186 {offsets = [0, 16], sizes = [16, 8], strides = [1, 1]} : vector<16x96xf32> to vector<16x8xf32>
    %236 = vector.shape_cast %235 : vector<16x8xf32> to vector<2x8x8xf32>
    %237 = vector.extract_strided_slice %186 {offsets = [0, 48], sizes = [16, 8], strides = [1, 1]} : vector<16x96xf32> to vector<16x8xf32>
    %238 = vector.shape_cast %237 : vector<16x8xf32> to vector<2x8x8xf32>
    %239 = vector.extract_strided_slice %186 {offsets = [0, 80], sizes = [16, 8], strides = [1, 1]} : vector<16x96xf32> to vector<16x8xf32>
    %240 = vector.shape_cast %239 : vector<16x8xf32> to vector<2x8x8xf32>
    %241 = arith.truncf %236 : vector<2x8x8xf32> to vector<2x8x8xbf16>
    %242 = arith.truncf %238 : vector<2x8x8xf32> to vector<2x8x8xbf16>
    "tpu.trace_start"() <{level = 10 : i32, message = "bqd,bkd->bqk"}> : () -> ()
    %cst_77 = arith.constant dense<0.000000e+00> : vector<2x8x8xf32>
    %243 = tpu.matmul %241, %242, %cst_77 {dimension_numbers = #tpu.dot_dimension_numbers<[2], [2], [1], [1], [0, 0, 0, 1, 1, 1], [0], [0]>} : vector<2x8x8xbf16>, vector<2x8x8xbf16>, vector<2x8x8xf32> -> vector<2x8x8xf32>
    "tpu.trace_stop"() : () -> ()
    %cst_78 = arith.constant 0.353553385 : f32
    %244 = vector.broadcast %cst_78 : f32 to vector<2x8x8xf32>
    %245 = arith.mulf %243, %244 : vector<2x8x8xf32>
    %cst_79 = arith.constant dense<0xFF800000> : vector<2x8xf32>
    %246 = vector.multi_reduction <maximumf>, %245, %cst_79 [2] : vector<2x8x8xf32> to vector<2x8xf32>
    %247 = vector.shape_cast %246 : vector<2x8xf32> to vector<2x8x1xf32>
    %248 = vector.broadcast %247 : vector<2x8x1xf32> to vector<2x8x8xf32>
    %249 = arith.subf %245, %248 : vector<2x8x8xf32>
    %250 = math.exp %249 : vector<2x8x8xf32>
    %cst_80 = arith.constant dense<0.000000e+00> : vector<2x8xf32>
    %251 = vector.multi_reduction <add>, %250, %cst_80 [2] : vector<2x8x8xf32> to vector<2x8xf32>
    %252 = vector.shape_cast %251 : vector<2x8xf32> to vector<2x8x1xf32>
    %253 = tpu.reciprocal %252 {approx = true} : vector<2x8x1xf32> -> vector<2x8x1xf32>
    %254 = vector.broadcast %253 : vector<2x8x1xf32> to vector<2x8x8xf32>
    %255 = arith.mulf %250, %254 : vector<2x8x8xf32>
    %256 = arith.truncf %255 : vector<2x8x8xf32> to vector<2x8x8xbf16>
    %257 = arith.truncf %240 : vector<2x8x8xf32> to vector<2x8x8xbf16>
    "tpu.trace_start"() <{level = 10 : i32, message = "bqk,bkd->bqd"}> : () -> ()
    %cst_81 = arith.constant dense<0.000000e+00> : vector<2x8x8xf32>
    %258 = tpu.matmul %256, %257, %cst_81 {dimension_numbers = #tpu.dot_dimension_numbers<[2], [1], [1], [2], [0, 0, 0, 1, 1, 2], [0], [0]>} : vector<2x8x8xbf16>, vector<2x8x8xbf16>, vector<2x8x8xf32> -> vector<2x8x8xf32>
    "tpu.trace_stop"() : () -> ()
    %259 = vector.extract_strided_slice %186 {offsets = [0, 24], sizes = [16, 8], strides = [1, 1]} : vector<16x96xf32> to vector<16x8xf32>
    %260 = vector.shape_cast %259 : vector<16x8xf32> to vector<2x8x8xf32>
    %261 = vector.extract_strided_slice %186 {offsets = [0, 56], sizes = [16, 8], strides = [1, 1]} : vector<16x96xf32> to vector<16x8xf32>
    %262 = vector.shape_cast %261 : vector<16x8xf32> to vector<2x8x8xf32>
    %263 = vector.extract_strided_slice %186 {offsets = [0, 88], sizes = [16, 8], strides = [1, 1]} : vector<16x96xf32> to vector<16x8xf32>
    %264 = vector.shape_cast %263 : vector<16x8xf32> to vector<2x8x8xf32>
    %265 = arith.truncf %260 : vector<2x8x8xf32> to vector<2x8x8xbf16>
    %266 = arith.truncf %262 : vector<2x8x8xf32> to vector<2x8x8xbf16>
    "tpu.trace_start"() <{level = 10 : i32, message = "bqd,bkd->bqk"}> : () -> ()
    %cst_82 = arith.constant dense<0.000000e+00> : vector<2x8x8xf32>
    %267 = tpu.matmul %265, %266, %cst_82 {dimension_numbers = #tpu.dot_dimension_numbers<[2], [2], [1], [1], [0, 0, 0, 1, 1, 1], [0], [0]>} : vector<2x8x8xbf16>, vector<2x8x8xbf16>, vector<2x8x8xf32> -> vector<2x8x8xf32>
    "tpu.trace_stop"() : () -> ()
    %cst_83 = arith.constant 0.353553385 : f32
    %268 = vector.broadcast %cst_83 : f32 to vector<2x8x8xf32>
    %269 = arith.mulf %267, %268 : vector<2x8x8xf32>
    %cst_84 = arith.constant dense<0xFF800000> : vector<2x8xf32>
    %270 = vector.multi_reduction <maximumf>, %269, %cst_84 [2] : vector<2x8x8xf32> to vector<2x8xf32>
    %271 = vector.shape_cast %270 : vector<2x8xf32> to vector<2x8x1xf32>
    %272 = vector.broadcast %271 : vector<2x8x1xf32> to vector<2x8x8xf32>
    %273 = arith.subf %269, %272 : vector<2x8x8xf32>
    %274 = math.exp %273 : vector<2x8x8xf32>
    %cst_85 = arith.constant dense<0.000000e+00> : vector<2x8xf32>
    %275 = vector.multi_reduction <add>, %274, %cst_85 [2] : vector<2x8x8xf32> to vector<2x8xf32>
    %276 = vector.shape_cast %275 : vector<2x8xf32> to vector<2x8x1xf32>
    %277 = tpu.reciprocal %276 {approx = true} : vector<2x8x1xf32> -> vector<2x8x1xf32>
    %278 = vector.broadcast %277 : vector<2x8x1xf32> to vector<2x8x8xf32>
    %279 = arith.mulf %274, %278 : vector<2x8x8xf32>
    %280 = arith.truncf %279 : vector<2x8x8xf32> to vector<2x8x8xbf16>
    %281 = arith.truncf %264 : vector<2x8x8xf32> to vector<2x8x8xbf16>
    "tpu.trace_start"() <{level = 10 : i32, message = "bqk,bkd->bqd"}> : () -> ()
    %cst_86 = arith.constant dense<0.000000e+00> : vector<2x8x8xf32>
    %282 = tpu.matmul %280, %281, %cst_86 {dimension_numbers = #tpu.dot_dimension_numbers<[2], [1], [1], [2], [0, 0, 0, 1, 1, 2], [0], [0]>} : vector<2x8x8xbf16>, vector<2x8x8xbf16>, vector<2x8x8xf32> -> vector<2x8x8xf32>
    "tpu.trace_stop"() : () -> ()
    %283 = tpu.concatenate %210, %234, %258, %282 in 2 : vector<2x8x8xf32>, vector<2x8x8xf32>, vector<2x8x8xf32>, vector<2x8x8xf32> -> vector<2x8x32xf32>
    %284 = vector.shape_cast %283 : vector<2x8x32xf32> to vector<16x32xf32>
    %285 = arith.truncf %284 : vector<16x32xf32> to vector<16x32xbf16>
    %c1_87 = arith.constant 1 : index
    %c0_88 = arith.constant 0 : index
    %c0_89 = arith.constant 0 : index
    %286 = vector.load %arg5[%c1_87, %c0_88, %c0_89] : memref<2x32x32xf32, #tpu.memory_space<vmem>>, vector<1x32x32xf32>
    %287 = vector.shape_cast %286 : vector<1x32x32xf32> to vector<32x32xf32>
    %288 = arith.truncf %287 : vector<32x32xf32> to vector<32x32xbf16>
    %cst_90 = arith.constant dense<0.000000e+00> : vector<16x32xf32>
    %289 = tpu.matmul %285, %288, %cst_90 {dimension_numbers = #tpu.dot_dimension_numbers<[1], [0], [0], [1], [0, 0, 1, 1], [], []>} : vector<16x32xbf16>, vector<32x32xbf16>, vector<16x32xf32> -> vector<16x32xf32>
    %290 = arith.addf %181, %289 : vector<16x32xf32>
    %cst_91 = arith.constant dense<0.000000e+00> : vector<32xf32>
    %291 = vector.multi_reduction <add>, %290, %cst_91 [0] : vector<16x32xf32> to vector<32xf32>
    %292 = vector.shape_cast %291 : vector<32xf32> to vector<1x32xf32>
    %cst_92 = arith.constant 1.600000e+01 : f32
    %293 = vector.broadcast %cst_92 : f32 to vector<1x32xf32>
    %294 = arith.divf %292, %293 : vector<1x32xf32>
    %295 = vector.broadcast %294 : vector<1x32xf32> to vector<16x32xf32>
    %296 = arith.subf %290, %295 : vector<16x32xf32>
    %297 = arith.mulf %296, %296 : vector<16x32xf32>
    %cst_93 = arith.constant dense<0.000000e+00> : vector<32xf32>
    %298 = vector.multi_reduction <add>, %297, %cst_93 [0] : vector<16x32xf32> to vector<32xf32>
    %299 = vector.shape_cast %298 : vector<32xf32> to vector<1x32xf32>
    %cst_94 = arith.constant 1.600000e+01 : f32
    %300 = vector.broadcast %cst_94 : f32 to vector<1x32xf32>
    %301 = arith.divf %299, %300 : vector<1x32xf32>
    %302 = vector.broadcast %294 : vector<1x32xf32> to vector<16x32xf32>
    %303 = arith.subf %290, %302 : vector<16x32xf32>
    %cst_95 = arith.constant 9.99999974E-6 : f32
    %304 = vector.broadcast %cst_95 : f32 to vector<1x32xf32>
    %305 = arith.addf %301, %304 : vector<1x32xf32>
    %306 = math.rsqrt %305 : vector<1x32xf32>
    %307 = vector.broadcast %306 : vector<1x32xf32> to vector<16x32xf32>
    %308 = arith.mulf %303, %307 : vector<16x32xf32>
    %c1_96 = arith.constant 1 : index
    %c0_97 = arith.constant 0 : index
    %309 = vector.load %arg6[%c1_96, %c0_97] : memref<2x32xf32, #tpu.memory_space<vmem>>, vector<1x32xf32>
    %310 = vector.broadcast %309 : vector<1x32xf32> to vector<16x32xf32>
    %311 = arith.mulf %308, %310 : vector<16x32xf32>
    %c1_98 = arith.constant 1 : index
    %c0_99 = arith.constant 0 : index
    %312 = vector.load %arg7[%c1_98, %c0_99] : memref<2x32xf32, #tpu.memory_space<vmem>>, vector<1x32xf32>
    %313 = vector.broadcast %312 : vector<1x32xf32> to vector<16x32xf32>
    %314 = arith.addf %311, %313 : vector<16x32xf32>
    %315 = arith.truncf %314 : vector<16x32xf32> to vector<16x32xbf16>
    %c1_100 = arith.constant 1 : index
    %c0_101 = arith.constant 0 : index
    %c0_102 = arith.constant 0 : index
    %316 = vector.load %arg8[%c1_100, %c0_101, %c0_102] : memref<2x32x64xf32, #tpu.memory_space<vmem>>, vector<1x32x64xf32>
    %317 = vector.shape_cast %316 : vector<1x32x64xf32> to vector<32x64xf32>
    %318 = arith.truncf %317 : vector<32x64xf32> to vector<32x64xbf16>
    %cst_103 = arith.constant dense<0.000000e+00> : vector<16x64xf32>
    %319 = tpu.matmul %315, %318, %cst_103 {dimension_numbers = #tpu.dot_dimension_numbers<[1], [0], [0], [1], [0, 0, 1, 1], [], []>} : vector<16x32xbf16>, vector<32x64xbf16>, vector<16x64xf32> -> vector<16x64xf32>
    %c1_104 = arith.constant 1 : index
    %c0_105 = arith.constant 0 : index
    %320 = vector.load %arg9[%c1_104, %c0_105] : memref<2x64xf32, #tpu.memory_space<vmem>>, vector<1x64xf32>
    %321 = vector.broadcast %320 : vector<1x64xf32> to vector<16x64xf32>
    %322 = arith.addf %319, %321 : vector<16x64xf32>
    %cst_106 = arith.constant 0.000000e+00 : f32
    %323 = vector.broadcast %cst_106 : f32 to vector<16x64xf32>
    %324 = arith.maximumf %322, %323 : vector<16x64xf32>
    %325 = arith.truncf %324 : vector<16x64xf32> to vector<16x64xbf16>
    %c1_107 = arith.constant 1 : index
    %c0_108 = arith.constant 0 : index
    %c0_109 = arith.constant 0 : index
    %326 = vector.load %arg10[%c1_107, %c0_108, %c0_109] : memref<2x64x32xf32, #tpu.memory_space<vmem>>, vector<1x64x32xf32>
    %327 = vector.shape_cast %326 : vector<1x64x32xf32> to vector<64x32xf32>
    %328 = arith.truncf %327 : vector<64x32xf32> to vector<64x32xbf16>
    %cst_110 = arith.constant dense<0.000000e+00> : vector<16x32xf32>
    %329 = tpu.matmul %325, %328, %cst_110 {dimension_numbers = #tpu.dot_dimension_numbers<[1], [0], [0], [1], [0, 0, 1, 1], [], []>} : vector<16x64xbf16>, vector<64x32xbf16>, vector<16x32xf32> -> vector<16x32xf32>
    %330 = arith.addf %314, %329 : vector<16x32xf32>
    %c1_111 = arith.constant 1 : index
    %c0_112 = arith.constant 0 : index
    %331 = vector.load %arg11[%c1_111, %c0_112] : memref<2x32xf32, #tpu.memory_space<vmem>>, vector<1x32xf32>
    %332 = vector.broadcast %331 : vector<1x32xf32> to vector<16x32xf32>
    %333 = arith.addf %330, %332 : vector<16x32xf32>
    %cst_113 = arith.constant dense<0.000000e+00> : vector<32xf32>
    %334 = vector.multi_reduction <add>, %333, %cst_113 [0] : vector<16x32xf32> to vector<32xf32>
    %335 = vector.shape_cast %334 : vector<32xf32> to vector<1x32xf32>
    %cst_114 = arith.constant 1.600000e+01 : f32
    %336 = vector.broadcast %cst_114 : f32 to vector<1x32xf32>
    %337 = arith.divf %335, %336 : vector<1x32xf32>
    %338 = vector.broadcast %337 : vector<1x32xf32> to vector<16x32xf32>
    %339 = arith.subf %333, %338 : vector<16x32xf32>
    %340 = arith.mulf %339, %339 : vector<16x32xf32>
    %cst_115 = arith.constant dense<0.000000e+00> : vector<32xf32>
    %341 = vector.multi_reduction <add>, %340, %cst_115 [0] : vector<16x32xf32> to vector<32xf32>
    %342 = vector.shape_cast %341 : vector<32xf32> to vector<1x32xf32>
    %cst_116 = arith.constant 1.600000e+01 : f32
    %343 = vector.broadcast %cst_116 : f32 to vector<1x32xf32>
    %344 = arith.divf %342, %343 : vector<1x32xf32>
    %345 = vector.broadcast %337 : vector<1x32xf32> to vector<16x32xf32>
    %346 = arith.subf %333, %345 : vector<16x32xf32>
    %cst_117 = arith.constant 9.99999974E-6 : f32
    %347 = vector.broadcast %cst_117 : f32 to vector<1x32xf32>
    %348 = arith.addf %344, %347 : vector<1x32xf32>
    %349 = math.rsqrt %348 : vector<1x32xf32>
    %350 = vector.broadcast %349 : vector<1x32xf32> to vector<16x32xf32>
    %351 = arith.mulf %346, %350 : vector<16x32xf32>
    %c1_118 = arith.constant 1 : index
    %c0_119 = arith.constant 0 : index
    %352 = vector.load %arg12[%c1_118, %c0_119] : memref<2x32xf32, #tpu.memory_space<vmem>>, vector<1x32xf32>
    %353 = vector.broadcast %352 : vector<1x32xf32> to vector<16x32xf32>
    %354 = arith.mulf %351, %353 : vector<16x32xf32>
    %c1_120 = arith.constant 1 : index
    %c0_121 = arith.constant 0 : index
    %355 = vector.load %arg13[%c1_120, %c0_121] : memref<2x32xf32, #tpu.memory_space<vmem>>, vector<1x32xf32>
    %356 = vector.broadcast %355 : vector<1x32xf32> to vector<16x32xf32>
    %357 = arith.addf %354, %356 : vector<16x32xf32>
    %c0_122 = arith.constant 0 : index
    %c0_123 = arith.constant 0 : index
    %358 = vector.load %arg14[%c0_122, %c0_123] : memref<16x32xf32, #tpu.memory_space<vmem>>, vector<16x32xf32>
    tpu.vector_store %arg14[%c0_122, %c0_123], %357 {strides = array<i32>} : memref<16x32xf32, #tpu.memory_space<vmem>>, vector<16x32xf32>,
    return
  }
  func.func @transform_0(%arg0: i32) -> (i32, i32) {
    %c0_i32 = arith.constant 0 : i32
    %c0_i32_0 = arith.constant 0 : i32
    %c0_i32_1 = arith.constant 0 : i32
    return %c0_i32, %c0_i32_0 : i32, i32
  }
  func.func @transform_1(%arg0: i32) -> (i32, i32) {
    %c0_i32 = arith.constant 0 : i32
    %c0_i32_0 = arith.constant 0 : i32
    %c0_i32_1 = arith.constant 0 : i32
    return %c0_i32, %c0_i32_0 : i32, i32
  }
  func.func @transform_2(%arg0: i32) -> (i32, i32) {
    %c0_i32 = arith.constant 0 : i32
    %c0_i32_0 = arith.constant 0 : i32
    %c0_i32_1 = arith.constant 0 : i32
    return %c0_i32, %c0_i32_0 : i32, i32
  }
  func.func @transform_3(%arg0: i32) -> (i32, i32, i32) {
    %c0_i32 = arith.constant 0 : i32
    %c0_i32_0 = arith.constant 0 : i32
    %c0_i32_1 = arith.constant 0 : i32
    %c0_i32_2 = arith.constant 0 : i32
    return %c0_i32, %c0_i32_0, %c0_i32_1 : i32, i32, i32
  }
  func.func @transform_4(%arg0: i32) -> (i32, i32, i32) {
    %c0_i32 = arith.constant 0 : i32
    %c0_i32_0 = arith.constant 0 : i32
    %c0_i32_1 = arith.constant 0 : i32
    %c0_i32_2 = arith.constant 0 : i32
    return %c0_i32, %c0_i32_0, %c0_i32_1 : i32, i32, i32
  }
  func.func @transform_5(%arg0: i32) -> (i32, i32) {
    %c0_i32 = arith.constant 0 : i32
    %c0_i32_0 = arith.constant 0 : i32
    %c0_i32_1 = arith.constant 0 : i32
    return %c0_i32, %c0_i32_0 : i32, i32
  }
  func.func @transform_6(%arg0: i32) -> (i32, i32) {
    %c0_i32 = arith.constant 0 : i32
    %c0_i32_0 = arith.constant 0 : i32
    %c0_i32_1 = arith.constant 0 : i32
    return %c0_i32, %c0_i32_0 : i32, i32
  }
  func.func @transform_7(%arg0: i32) -> (i32, i32, i32) {
    %c0_i32 = arith.constant 0 : i32
    %c0_i32_0 = arith.constant 0 : i32
    %c0_i32_1 = arith.constant 0 : i32
    %c0_i32_2 = arith.constant 0 : i32
    return %c0_i32, %c0_i32_0, %c0_i32_1 : i32, i32, i32
  }
  func.func @transform_8(%arg0: i32) -> (i32, i32) {
    %c0_i32 = arith.constant 0 : i32
    %c0_i32_0 = arith.constant 0 : i32
    %c0_i32_1 = arith.constant 0 : i32
    return %c0_i32, %c0_i32_0 : i32, i32
  }
  func.func @transform_9(%arg0: i32) -> (i32, i32, i32) {
    %c0_i32 = arith.constant 0 : i32
    %c0_i32_0 = arith.constant 0 : i32
    %c0_i32_1 = arith.constant 0 : i32
    %c0_i32_2 = arith.constant 0 : i32
    return %c0_i32, %c0_i32_0, %c0_i32_1 : i32, i32, i32
  }
  func.func @transform_10(%arg0: i32) -> (i32, i32) {
    %c0_i32 = arith.constant 0 : i32
    %c0_i32_0 = arith.constant 0 : i32
    %c0_i32_1 = arith.constant 0 : i32
    return %c0_i32, %c0_i32_0 : i32, i32
  }
  func.func @transform_11(%arg0: i32) -> (i32, i32) {
    %c0_i32 = arith.constant 0 : i32
    %c0_i32_0 = arith.constant 0 : i32
    %c0_i32_1 = arith.constant 0 : i32
    return %c0_i32, %c0_i32_0 : i32, i32
  }
  func.func @transform_12(%arg0: i32) -> (i32, i32) {
    %c0_i32 = arith.constant 0 : i32
    %c0_i32_0 = arith.constant 0 : i32
    %c0_i32_1 = arith.constant 0 : i32
    return %c0_i32, %c0_i32_0 : i32, i32
  }
  func.func @transform_13(%arg0: i32) -> (i32, i32) {
    %c0_i32 = arith.constant 0 : i32
    %c0_i32_0 = arith.constant 0 : i32
    %c0_i32_1 = arith.constant 0 : i32
    return %c0_i32, %c0_i32_0 : i32, i32
  }
}

</mosaic_0001>

<llo_original>
// kernel: tpu_custom_call.1
$region0: #{tpu_custom_call.1}
  #allocation0 [shape = 'u32[]', space=smem, size = 0x4, offset = 0x4, fixed_abs, tag = 'smem constant byte address 0x4 - core index']
  #allocation1 [shape = 'u32[144,128]{1,0:T(1,128)}', space=vmem, size = 0x12000, scoped, tag = 'internal scratch']
  %s0 = inlined_call_operand.vmem [shape: f32[16,2], index: 0, kind: input, shape index: {}]
  %s1 = inlined_call_operand.vmem [shape: f32[2,32], index: 1, kind: input, shape index: {}]
  %s2 = inlined_call_operand.vmem [shape: f32[1,32], index: 2, kind: input, shape index: {}]
  %s3 = inlined_call_operand.vmem [shape: f32[2,32,96], index: 3, kind: input, shape index: {}]
  %s4 = inlined_call_operand.vmem [shape: f32[2,32,32], index: 4, kind: input, shape index: {}]
  %s5 = inlined_call_operand.vmem [shape: f32[2,32], index: 5, kind: input, shape index: {}]
  %s6 = inlined_call_operand.vmem [shape: f32[2,32], index: 6, kind: input, shape index: {}]
  %s7 = inlined_call_operand.vmem [shape: f32[2,32,64], index: 7, kind: input, shape index: {}]
  %s8 = inlined_call_operand.vmem [shape: f32[2,64], index: 8, kind: input, shape index: {}]
  %s9 = inlined_call_operand.vmem [shape: f32[2,64,32], index: 9, kind: input, shape index: {}]
  %s10 = inlined_call_operand.vmem [shape: f32[2,32], index: 10, kind: input, shape index: {}]
  %s11 = inlined_call_operand.vmem [shape: f32[2,32], index: 11, kind: input, shape index: {}]
  %s12 = inlined_call_operand.vmem [shape: f32[2,32], index: 12, kind: input, shape index: {}]
  %s13 = inlined_call_operand.hbm [shape: f32[16,32], index: 13, kind: output, shape index: {}]
  %s14 = sld [smem:[#allocation0]]
  $region62: #{tpu_custom_call.1} parent=0
    _
  %s16 = ssub.s32 1, %s14
  %s17 = scalar_select 0, %s16, %s14
  $region1: #{tpu_custom_call.1} parent=0
    #allocation2 [shape = 'u8[8192]{0}', space=vmem, size = 0x2000, scoped, tag = 'output window, operand 0, single buffered']
    #allocation3 [shape = 's32[1]{0}', space=sflag, size = 0x4, scoped, tag = 'scoped memory for tpu_custom_call.1']
    %18 = vsyncpa [#allocation3], 0
    // Predicated region
    $region2: #{tpu_custom_call.1} parent=1 // pred_check
      _
    $region3: #{tpu_custom_call.1} parent=1 // pred_check_branch
      %20 = sbr.rel (0) target = $region5
    $region4: #{tpu_custom_call.1} parent=1 // pred_region
      _
    $region5: #{tpu_custom_call.1} parent=1 // pred_fallthru
      _
    // Predicated region
    $region6: #{tpu_custom_call.1} parent=1 // pred_check
      _
    $region7: #{tpu_custom_call.1} parent=1 // pred_check_branch
      %22 = sbr.rel (0) target = $region9
    $region8: #{tpu_custom_call.1} parent=1 // pred_region
      _
    $region9: #{tpu_custom_call.1} parent=1 // pred_fallthru
      _
    // Predicated region
    $region10: #{tpu_custom_call.1} parent=1 // pred_check
      _
    $region11: #{tpu_custom_call.1} parent=1 // pred_check_branch
      %24 = sbr.rel (0) target = $region13
    $region12: #{tpu_custom_call.1} parent=1 // pred_region
      _
    $region13: #{tpu_custom_call.1} parent=1 // pred_fallthru
      _
    // Predicated region
    $region14: #{tpu_custom_call.1} parent=1 // pred_check
      _
    $region15: #{tpu_custom_call.1} parent=1 // pred_check_branch
      %26 = sbr.rel (0) target = $region17
    $region16: #{tpu_custom_call.1} parent=1 // pred_region
      _
    $region17: #{tpu_custom_call.1} parent=1 // pred_fallthru
      _
    // Predicated region
    $region18: #{tpu_custom_call.1} parent=1 // pred_check
      _
    $region19: #{tpu_custom_call.1} parent=1 // pred_check_branch
      %28 = sbr.rel (0) target = $region21
    $region20: #{tpu_custom_call.1} parent=1 // pred_region
      _
    $region21: #{tpu_custom_call.1} parent=1 // pred_fallthru
      _
    // Predicated region
    $region22: #{tpu_custom_call.1} parent=1 // pred_check
      _
    $region23: #{tpu_custom_call.1} parent=1 // pred_check_branch
      %30 = sbr.rel (0) target = $region25
    $region24: #{tpu_custom_call.1} parent=1 // pred_region
      _
    $region25: #{tpu_custom_call.1} parent=1 // pred_fallthru
      _
    // Predicated region
    $region26: #{tpu_custom_call.1} parent=1 // pred_check
      _
    $region27: #{tpu_custom_call.1} parent=1 // pred_check_branch
      %32 = sbr.rel (0) target = $region29
    $region28: #{tpu_custom_call.1} parent=1 // pred_region
      _
    $region29: #{tpu_custom_call.1} parent=1 // pred_fallthru
      _
    // Predicated region
    $region30: #{tpu_custom_call.1} parent=1 // pred_check
      _
    $region31: #{tpu_custom_call.1} parent=1 // pred_check_branch
      %34 = sbr.rel (0) target = $region33
    $region32: #{tpu_custom_call.1} parent=1 // pred_region
      _
    $region33: #{tpu_custom_call.1} parent=1 // pred_fallthru
      _
    // Predicated region
    $region34: #{tpu_custom_call.1} parent=1 // pred_check
      _
    $region35: #{tpu_custom_call.1} parent=1 // pred_check_branch
      %36 = sbr.rel (0) target = $region37
    $region36: #{tpu_custom_call.1} parent=1 // pred_region
      _
    $region37: #{tpu_custom_call.1} parent=1 // pred_fallthru
      _
    // Predicated region
    $region38: #{tpu_custom_call.1} parent=1 // pred_check
      _
    $region39: #{tpu_custom_call.1} parent=1 // pred_check_branch
      %38 = sbr.rel (0) target = $region41
    $region40: #{tpu_custom_call.1} parent=1 // pred_region
      _
    $region41: #{tpu_custom_call.1} parent=1 // pred_fallthru
      _
    // Predicated region
    $region42: #{tpu_custom_call.1} parent=1 // pred_check
      _
    $region43: #{tpu_custom_call.1} parent=1 // pred_check_branch
      %40 = sbr.rel (0) target = $region45
    $region44: #{tpu_custom_call.1} parent=1 // pred_region
      _
    $region45: #{tpu_custom_call.1} parent=1 // pred_fallthru
      _
    // Predicated region
    $region46: #{tpu_custom_call.1} parent=1 // pred_check
      _
    $region47: #{tpu_custom_call.1} parent=1 // pred_check_branch
      %42 = sbr.rel (0) target = $region49
    $region48: #{tpu_custom_call.1} parent=1 // pred_region
      _
    $region49: #{tpu_custom_call.1} parent=1 // pred_fallthru
      _
    // Predicated region
    $region50: #{tpu_custom_call.1} parent=1 // pred_check
      _
    $region51: #{tpu_custom_call.1} parent=1 // pred_check_branch
      %44 = sbr.rel (0) target = $region53
    $region52: #{tpu_custom_call.1} parent=1 // pred_region
      _
    $region53: #{tpu_custom_call.1} parent=1 // pred_fallthru
      _
    %v46 = vld [vmem:[%s0] sm:$0xff]
    %v47 = vld [vmem:[%s0 + $0x8] sm:$0xff]
    %v48 = vld [vmem:[%s1] sm:$0x3]
    %v49 = vld [vmem:[%s2] sm:$0x1]
    %v51 = vlaneseq
    %v52 = vshrl.u32 %v51, 7
    %v53 = vsub.s32 0, %v52
    %v54 = vrot.slane %v49, %v53
    %vm56 = vcmask 15360
    %v58 = vsel %vm56, %v46, 0
    %v61 = vsel %vm56, %v47, 0
    %vm63 = vcmask 1041408
    %v65 = vsel %vm63, %v48, 0
    %67 = vmatprep.subr.mxu0 0.0
    %68 = vmatpush1.msra.mxu0 %v65
    %69 = vmatprep.subr.mxu0 0.0
    %70 = vmatpush1.msra.mxu0 0.0
    %71 = vmatprep.subr.mxu0 0.0
    %72 = vmatpush1.msra.mxu0 0.0
    %73 = vmatprep.subr.mxu0 0.0
    %74 = vmatpush1.msra.mxu0 0.0
    %75 = vmatprep.subr.mxu0 0.0
    %76 = vmatpush1.msra.mxu0 0.0
    %77 = vmatprep.subr.mxu0 0.0
    %78 = vmatpush1.msra.mxu0 0.0
    %79 = vmatprep.subr.mxu0 0.0
    %80 = vmatpush1.msra.mxu0 0.0
    %81 = vmatprep.subr.mxu0 0.0
    %82 = vmatpush1.msra.mxu0 0.0
    %83 = vmatprep.subr.mxu0 0.0
    %84 = vmatpush1.msra.mxu0 0.0
    %85 = vmatprep.subr.mxu0 0.0
    %86 = vmatpush1.msra.mxu0 0.0
    %87 = vmatprep.subr.mxu0 0.0
    %88 = vmatpush1.msra.mxu0 0.0
    %89 = vmatprep.subr.mxu0 0.0
    %90 = vmatpush1.msra.mxu0 0.0
    %91 = vmatprep.subr.mxu0 0.0
    %92 = vmatpush1.msra.mxu0 0.0
    %93 = vmatprep.subr.mxu0 0.0
    %94 = vmatpush1.msra.mxu0 0.0
    %95 = vmatprep.subr.mxu0 0.0
    %96 = vmatpush1.msra.mxu0 0.0
    %97 = vmatprep.subr.mxu0 0.0
    %98 = vmatpush1.msra.mxu0 0.0
    %99 = vmatprep.subr.mxu0 0.0
    %100 = vmatpush1.msra.mxu0 0.0
    %101 = vmatprep.subr.mxu0 0.0
    %102 = vmatpush1.msra.mxu0 0.0
    %103 = vmatprep.subr.mxu0 0.0
    %104 = vmatpush1.msra.mxu0 0.0
    %105 = vmatprep.subr.mxu0 0.0
    %106 = vmatpush1.msra.mxu0 0.0
    %107 = vmatprep.subr.mxu0 0.0
    %108 = vmatpush1.msra.mxu0 0.0
    %109 = vmatprep.subr.mxu0 0.0
    %110 = vmatpush1.msra.mxu0 0.0
    %111 = vmatprep.subr.mxu0 0.0
    %112 = vmatpush1.msra.mxu0 0.0
    %113 = vmatprep.subr.mxu0 0.0
    %114 = vmatpush1.msra.mxu0 0.0
    %115 = vmatprep.subr.mxu0 0.0
    %116 = vmatpush1.msra.mxu0 0.0
    %117 = vmatprep.subr.mxu0 0.0
    %118 = vmatpush1.msra.mxu0 0.0
    %119 = vmatprep.subr.mxu0 0.0
    %120 = vmatpush1.msra.mxu0 0.0
    %121 = vmatprep.subr.mxu0 0.0
    %122 = vmatpush1.msra.mxu0 0.0
    %123 = vmatprep.subr.mxu0 0.0
    %124 = vmatpush1.msra.mxu0 0.0
    %125 = vmatprep.subr.mxu0 0.0
    %126 = vmatpush1.msra.mxu0 0.0
    %127 = vmatprep.subr.mxu0 0.0
    %128 = vmatpush1.msra.mxu0 0.0
    %129 = vmatprep.subr.mxu0 0.0
    %130 = vmatpush1.msra.mxu0 0.0
    %131 = vmatprep.mubr.f32.mxu0 0.0
    %132 = vmatmul.mubr.f32.gmra.mrb[0].mxu0 %v58
    %v133 = vpop.f32.mrb[0].mxu0
    %v134 = vadd.f32 %v54, %v133
    %v135 = vpop.f32.mrb[0].mxu0
    %136 = vmatprep.mubr.f32.mxu0 0.0
    %137 = vmatmul.mubr.f32.gmra.mrb[0].mxu0 %v61
    %v138 = vpop.f32.mrb[0].mxu0
    %v139 = vadd.f32 %v54, %v138
    %v140 = vpop.f32.mrb[0].mxu0
    %141 = vdwg.mxu0
    %v142 = vpack.c.bf16 %v139, %v134
    %v143 = vld [vmem:[%s3] sm:$0xff]
    %v144 = vld [vmem:[%s3 + $0x8] sm:$0xff]
    %v145 = vld [vmem:[%s3 + $0x10] sm:$0xff]
    %v146 = vld [vmem:[%s3 + $0x18] sm:$0xff]
    %v147 = vpack.c.bf16 %v144, %v143
    %v148 = vpack.c.bf16 %v146, %v145
    %vm149 = vcmask 261120
    %v151 = vsel %vm149, %v142, 0
    %153 = vmatprep.subr.bf16.mxu0 0
    %154 = vmatpush1.bf16.msra.mxu0 %v147
    %155 = vmatprep.subr.bf16.mxu0 0
    %156 = vmatpush1.bf16.msra.mxu0 %v148
    %157 = vmatprep.subr.bf16.mxu0 0
    %158 = vmatpush1.bf16.msra.mxu0 0
    %159 = vmatprep.subr.bf16.mxu0 0
    %160 = vmatpush1.bf16.msra.mxu0 0
    %161 = vmatprep.subr.bf16.mxu0 0
    %162 = vmatpush1.bf16.msra.mxu0 0
    %163 = vmatprep.subr.bf16.mxu0 0
    %164 = vmatpush1.bf16.msra.mxu0 0
    %165 = vmatprep.subr.bf16.mxu0 0
    %166 = vmatpush1.bf16.msra.mxu0 0
    %167 = vmatprep.subr.bf16.mxu0 0
    %168 = vmatpush1.bf16.msra.mxu0 0
    %169 = vmatprep.subr.bf16.mxu0 0
    %170 = vmatpush1.bf16.msra.mxu0 0
    %171 = vmatprep.subr.bf16.mxu0 0
    %172 = vmatpush1.bf16.msra.mxu0 0
    %173 = vmatprep.subr.bf16.mxu0 0
    %174 = vmatpush1.bf16.msra.mxu0 0
    %175 = vmatprep.subr.bf16.mxu0 0
    %176 = vmatpush1.bf16.msra.mxu0 0
    %177 = vmatprep.subr.bf16.mxu0 0
    %178 = vmatpush1.bf16.msra.mxu0 0
    %179 = vmatprep.subr.bf16.mxu0 0
    %180 = vmatpush1.bf16.msra.mxu0 0
    %181 = vmatprep.subr.bf16.mxu0 0
    %182 = vmatpush1.bf16.msra.mxu0 0
    %183 = vmatprep.subr.bf16.mxu0 0
    %184 = vmatpush1.bf16.msra.mxu0 0
    %185 = vmatprep.mubr.bf16.mxu0 0
    %186 = vmatmul.mubr.bf16.gmra.mrb[0].mxu0 %v151
    %v187 = vpop.f32.mrb[0].mxu0
    %v188 = vadd.f32 0.0, %v187
    %v189 = vpop.f32.mrb[0].mxu0
    %v190 = vpop.f32.mrb[0].mxu0
    %v191 = vadd.f32 0.0, %v190
    %v192 = vpop.f32.mrb[0].mxu0
    %193 = vdwg.mxu0
    %v194 = vpack.c.bf16 %v188, %v188
    %v195 = vpack.c.bf16 %v191, %v191
    %197 = vrot.lane.b32.xlu0 %v194, 96
    %v198 = vpop.permute.xlu0 %197
    %vm199 = vcmask 64512
    %v201 = vsel %vm199, %v194, 0
    %v204 = vsel %vm199, %v198, 0
    %206 = vmatprep.subr.bf16.mxu0 0
    %207 = vmatpush1.bf16.xpose.msra.mxu0 %v204
    %208 = vmatprep.subr.bf16.mxu0 0
    %209 = vmatpush1.bf16.xpose.msra.mxu0 0
    %210 = vmatprep.subr.bf16.mxu0 0
    %211 = vmatpush1.bf16.xpose.msra.mxu0 0
    %212 = vmatprep.subr.bf16.mxu0 0
    %213 = vmatpush1.bf16.xpose.msra.mxu0 0
    %214 = vmatprep.subr.bf16.mxu0 0
    %215 = vmatpush1.bf16.xpose.msra.mxu0 0
    %216 = vmatprep.subr.bf16.mxu0 0
    %217 = vmatpush1.bf16.xpose.msra.mxu0 0
    %218 = vmatprep.subr.bf16.mxu0 0
    %219 = vmatpush1.bf16.xpose.msra.mxu0 0
    %220 = vmatprep.subr.bf16.mxu0 0
    %221 = vmatpush1.bf16.xpose.msra.mxu0 0
    %222 = vmatprep.subr.bf16.mxu0 0
    %223 = vmatpush1.bf16.xpose.msra.mxu0 0
    %224 = vmatprep.subr.bf16.mxu0 0
    %225 = vmatpush1.bf16.xpose.msra.mxu0 0
    %226 = vmatprep.subr.bf16.mxu0 0
    %227 = vmatpush1.bf16.xpose.msra.mxu0 0
    %228 = vmatprep.subr.bf16.mxu0 0
    %229 = vmatpush1.bf16.xpose.msra.mxu0 0
    %230 = vmatprep.subr.bf16.mxu0 0
    %231 = vmatpush1.bf16.xpose.msra.mxu0 0
    %232 = vmatprep.subr.bf16.mxu0 0
    %233 = vmatpush1.bf16.xpose.msra.mxu0 0
    %234 = vmatprep.subr.bf16.mxu0 0
    %235 = vmatpush1.bf16.xpose.msra.mxu0 0
    %236 = vmatprep.subr.bf16.mxu0 0
    %237 = vmatpush1.bf16.xpose.msra.mxu0 0
    %238 = vmatprep.mubr.bf16.mxu0 0
    %239 = vmatmul.mubr.bf16.gmra.mrb[0].mxu0 %v201
    %v240 = vpop.f32.mrb[0].mxu0
    %v241 = vadd.f32 0.0, %v240
    %v242 = vpop.f32.mrb[0].mxu0
    %v243 = vpop.f32.mrb[0].mxu0
    %v244 = vpop.f32.mrb[0].mxu0
    %245 = vdwg.mxu0
    %247 = vrot.lane.b32.xlu0 %v195, 96
    %v248 = vpop.permute.xlu0 %247
    %v250 = vsel %vm199, %v195, 0
    %v253 = vsel %vm199, %v248, 0
    %255 = vmatprep.subr.bf16.mxu0 0
    %256 = vmatpush1.bf16.xpose.msra.mxu0 %v253
    %257 = vmatprep.subr.bf16.mxu0 0
    %258 = vmatpush1.bf16.xpose.msra.mxu0 0
    %259 = vmatprep.subr.bf16.mxu0 0
    %260 = vmatpush1.bf16.xpose.msra.mxu0 0
    %261 = vmatprep.subr.bf16.mxu0 0
    %262 = vmatpush1.bf16.xpose.msra.mxu0 0
    %263 = vmatprep.subr.bf16.mxu0 0
    %264 = vmatpush1.bf16.xpose.msra.mxu0 0
    %265 = vmatprep.subr.bf16.mxu0 0
    %266 = vmatpush1.bf16.xpose.msra.mxu0 0
    %267 = vmatprep.subr.bf16.mxu0 0
    %268 = vmatpush1.bf16.xpose.msra.mxu0 0
    %269 = vmatprep.subr.bf16.mxu0 0
    %270 = vmatpush1.bf16.xpose.msra.mxu0 0
    %271 = vmatprep.subr.bf16.mxu0 0
    %272 = vmatpush1.bf16.xpose.msra.mxu0 0
    %273 = vmatprep.subr.bf16.mxu0 0
    %274 = vmatpush1.bf16.xpose.msra.mxu0 0
    %275 = vmatprep.subr.bf16.mxu0 0
    %276 = vmatpush1.bf16.xpose.msra.mxu0 0
    %277 = vmatprep.subr.bf16.mxu0 0
    %278 = vmatpush1.bf16.xpose.msra.mxu0 0
    %279 = vmatprep.subr.bf16.mxu0 0
    %280 = vmatpush1.bf16.xpose.msra.mxu0 0
    %281 = vmatprep.subr.bf16.mxu0 0
    %282 = vmatpush1.bf16.xpose.msra.mxu0 0
    %283 = vmatprep.subr.bf16.mxu0 0
    %284 = vmatpush1.bf16.xpose.msra.mxu0 0
    %285 = vmatprep.subr.bf16.mxu0 0
    %286 = vmatpush1.bf16.xpose.msra.mxu0 0
    %287 = vmatprep.mubr.bf16.mxu0 0
    %288 = vmatmul.mubr.bf16.gmra.mrb[0].mxu0 %v250
    %v289 = vpop.f32.mrb[0].mxu0
    %v290 = vadd.f32 0.0, %v289
    %v291 = vpop.f32.mrb[0].mxu0
    %v292 = vpop.f32.mrb[0].mxu0
    %v293 = vpop.f32.mrb[0].mxu0
    %294 = vdwg.mxu0
    %v295 = vmul.f32 %v241, 0.35355338
    %v296 = vmul.f32 %v290, 0.35355338
    %v297 = vsel %vm199, %v295, -inf
    %298 = vmax.xlane.f32.xlu0 %v297
    %v299 = vpop.xlane.xlu0 %298
    %v300 = vsel %vm199, %v296, -inf
    %301 = vmax.xlane.f32.xlu0 %v300
    %v302 = vpop.xlane.xlu0 %301
    %v303 = vsub.f32 %v295, %v299
    %v304 = vsub.f32 %v296, %v302
    %v305 = vmul.f32 %v303, 1.442695
    %v306 = vpow.pop %v305
    %v307 = vmul.f32 %v304, 1.442695
    %v308 = vpow.pop %v307
    %v309 = vsel %vm199, %v306, 0.0
    %310 = vadd.xlane.f32.xlu0 %v309
    %v311 = vpop.xlane.xlu0 %310
    %v312 = vsel %vm199, %v308, 0.0
    %313 = vadd.xlane.f32.xlu0 %v312
    %v314 = vpop.xlane.xlu0 %313
    %v315 = vrcp.pop %v311
    %v316 = vrcp.pop %v314
    %v317 = vmul.f32 %v306, %v315
    %v318 = vmul.f32 %v308, %v316
    %v319 = vpack.c.bf16 %v317, %v317
    %v320 = vpack.c.bf16 %v318, %v318
    %321 = vrot.lane.b32.xlu0 %v194, 64
    %v322 = vpop.permute.xlu0 %321
    %v324 = vsel %vm199, %v319, 0
    %vm326 = vcmask 1043456
    %v328 = vsel %vm326, %v322, 0
    %330 = vmatprep.subr.bf16.mxu0 0
    %331 = vmatpush1.bf16.msra.mxu0 %v328
    %332 = vmatprep.subr.bf16.mxu0 0
    %333 = vmatpush1.bf16.msra.mxu0 0
    %334 = vmatprep.subr.bf16.mxu0 0
    %335 = vmatpush1.bf16.msra.mxu0 0
    %336 = vmatprep.subr.bf16.mxu0 0
    %337 = vmatpush1.bf16.msra.mxu0 0
    %338 = vmatprep.subr.bf16.mxu0 0
    %339 = vmatpush1.bf16.msra.mxu0 0
    %340 = vmatprep.subr.bf16.mxu0 0
    %341 = vmatpush1.bf16.msra.mxu0 0
    %342 = vmatprep.subr.bf16.mxu0 0
    %343 = vmatpush1.bf16.msra.mxu0 0
    %344 = vmatprep.subr.bf16.mxu0 0
    %345 = vmatpush1.bf16.msra.mxu0 0
    %346 = vmatprep.subr.bf16.mxu0 0
    %347 = vmatpush1.bf16.msra.mxu0 0
    %348 = vmatprep.subr.bf16.mxu0 0
    %349 = vmatpush1.bf16.msra.mxu0 0
    %350 = vmatprep.subr.bf16.mxu0 0
    %351 = vmatpush1.bf16.msra.mxu0 0
    %352 = vmatprep.subr.bf16.mxu0 0
    %353 = vmatpush1.bf16.msra.mxu0 0
    %354 = vmatprep.subr.bf16.mxu0 0
    %355 = vmatpush1.bf16.msra.mxu0 0
    %356 = vmatprep.subr.bf16.mxu0 0
    %357 = vmatpush1.bf16.msra.mxu0 0
    %358 = vmatprep.subr.bf16.mxu0 0
    %359 = vmatpush1.bf16.msra.mxu0 0
    %360 = vmatprep.subr.bf16.mxu0 0
    %361 = vmatpush1.bf16.msra.mxu0 0
    %362 = vmatprep.mubr.bf16.mxu0 0
    %363 = vmatmul.mubr.bf16.gmra.mrb[0].mxu0 %v324
    %v364 = vpop.f32.mrb[0].mxu0
    %v365 = vadd.f32 0.0, %v364
    %v366 = vpop.f32.mrb[0].mxu0
    %v367 = vpop.f32.mrb[0].mxu0
    %v368 = vpop.f32.mrb[0].mxu0
    %369 = vdwg.mxu0
    %370 = vrot.lane.b32.xlu0 %v195, 64
    %v371 = vpop.permute.xlu0 %370
    %v373 = vsel %vm199, %v320, 0
    %v376 = vsel %vm326, %v371, 0
    %378 = vmatprep.subr.bf16.mxu0 0
    %379 = vmatpush1.bf16.msra.mxu0 %v376
    %380 = vmatprep.subr.bf16.mxu0 0
    %381 = vmatpush1.bf16.msra.mxu0 0
    %382 = vmatprep.subr.bf16.mxu0 0
    %383 = vmatpush1.bf16.msra.mxu0 0
    %384 = vmatprep.subr.bf16.mxu0 0
    %385 = vmatpush1.bf16.msra.mxu0 0
    %386 = vmatprep.subr.bf16.mxu0 0
    %387 = vmatpush1.bf16.msra.mxu0 0
    %388 = vmatprep.subr.bf16.mxu0 0
    %389 = vmatpush1.bf16.msra.mxu0 0
    %390 = vmatprep.subr.bf16.mxu0 0
    %391 = vmatpush1.bf16.msra.mxu0 0
    %392 = vmatprep.subr.bf16.mxu0 0
    %393 = vmatpush1.bf16.msra.mxu0 0
    %394 = vmatprep.subr.bf16.mxu0 0
    %395 = vmatpush1.bf16.msra.mxu0 0
    %396 = vmatprep.subr.bf16.mxu0 0
    %397 = vmatpush1.bf16.msra.mxu0 0
    %398 = vmatprep.subr.bf16.mxu0 0
    %399 = vmatpush1.bf16.msra.mxu0 0
    %400 = vmatprep.subr.bf16.mxu0 0
    %401 = vmatpush1.bf16.msra.mxu0 0
    %402 = vmatprep.subr.bf16.mxu0 0
    %403 = vmatpush1.bf16.msra.mxu0 0
    %404 = vmatprep.subr.bf16.mxu0 0
    %405 = vmatpush1.bf16.msra.mxu0 0
    %406 = vmatprep.subr.bf16.mxu0 0
    %407 = vmatpush1.bf16.msra.mxu0 0
    %408 = vmatprep.subr.bf16.mxu0 0
    %409 = vmatpush1.bf16.msra.mxu0 0
    %410 = vmatprep.mubr.bf16.mxu0 0
    %411 = vmatmul.mubr.bf16.gmra.mrb[0].mxu0 %v373
    %v412 = vpop.f32.mrb[0].mxu0
    %v413 = vadd.f32 0.0, %v412
    %v414 = vpop.f32.mrb[0].mxu0
    %v415 = vpop.f32.mrb[0].mxu0
    %v416 = vpop.f32.mrb[0].mxu0
    %417 = vdwg.mxu0
    %418 = vrot.lane.b32.xlu0 %v194, 120
    %v419 = vpop.permute.xlu0 %418
    %420 = vrot.lane.b32.xlu0 %v194, 88
    %v421 = vpop.permute.xlu0 %420
    %v423 = vsel %vm199, %v419, 0
    %v426 = vsel %vm199, %v421, 0
    %428 = vmatprep.subr.bf16.mxu0 0
    %429 = vmatpush1.bf16.xpose.msra.mxu0 %v426
    %430 = vmatprep.subr.bf16.mxu0 0
    %431 = vmatpush1.bf16.xpose.msra.mxu0 0
    %432 = vmatprep.subr.bf16.mxu0 0
    %433 = vmatpush1.bf16.xpose.msra.mxu0 0
    %434 = vmatprep.subr.bf16.mxu0 0
    %435 = vmatpush1.bf16.xpose.msra.mxu0 0
    %436 = vmatprep.subr.bf16.mxu0 0
    %437 = vmatpush1.bf16.xpose.msra.mxu0 0
    %438 = vmatprep.subr.bf16.mxu0 0
    %439 = vmatpush1.bf16.xpose.msra.mxu0 0
    %440 = vmatprep.subr.bf16.mxu0 0
    %441 = vmatpush1.bf16.xpose.msra.mxu0 0
    %442 = vmatprep.subr.bf16.mxu0 0
    %443 = vmatpush1.bf16.xpose.msra.mxu0 0
    %444 = vmatprep.subr.bf16.mxu0 0
    %445 = vmatpush1.bf16.xpose.msra.mxu0 0
    %446 = vmatprep.subr.bf16.mxu0 0
    %447 = vmatpush1.bf16.xpose.msra.mxu0 0
    %448 = vmatprep.subr.bf16.mxu0 0
    %449 = vmatpush1.bf16.xpose.msra.mxu0 0
    %450 = vmatprep.subr.bf16.mxu0 0
    %451 = vmatpush1.bf16.xpose.msra.mxu0 0
    %452 = vmatprep.subr.bf16.mxu0 0
    %453 = vmatpush1.bf16.xpose.msra.mxu0 0
    %454 = vmatprep.subr.bf16.mxu0 0
    %455 = vmatpush1.bf16.xpose.msra.mxu0 0
    %456 = vmatprep.subr.bf16.mxu0 0
    %457 = vmatpush1.bf16.xpose.msra.mxu0 0
    %458 = vmatprep.subr.bf16.mxu0 0
    %459 = vmatpush1.bf16.xpose.msra.mxu0 0
    %460 = vmatprep.mubr.bf16.mxu0 0
    %461 = vmatmul.mubr.bf16.gmra.mrb[0].mxu0 %v423
    %v462 = vpop.f32.mrb[0].mxu0
    %v463 = vadd.f32 0.0, %v462
    %v464 = vpop.f32.mrb[0].mxu0
    %v465 = vpop.f32.mrb[0].mxu0
    %v466 = vpop.f32.mrb[0].mxu0
    %467 = vdwg.mxu0
    %468 = vrot.lane.b32.xlu0 %v195, 120
    %v469 = vpop.permute.xlu0 %468
    %470 = vrot.lane.b32.xlu0 %v195, 88
    %v471 = vpop.permute.xlu0 %470
    %v473 = vsel %vm199, %v469, 0
    %v476 = vsel %vm199, %v471, 0
    %478 = vmatprep.subr.bf16.mxu0 0
    %479 = vmatpush1.bf16.xpose.msra.mxu0 %v476
    %480 = vmatprep.subr.bf16.mxu0 0
    %481 = vmatpush1.bf16.xpose.msra.mxu0 0
    %482 = vmatprep.subr.bf16.mxu0 0
    %483 = vmatpush1.bf16.xpose.msra.mxu0 0
    %484 = vmatprep.subr.bf16.mxu0 0
    %485 = vmatpush1.bf16.xpose.msra.mxu0 0
    %486 = vmatprep.subr.bf16.mxu0 0
    %487 = vmatpush1.bf16.xpose.msra.mxu0 0
    %488 = vmatprep.subr.bf16.mxu0 0
    %489 = vmatpush1.bf16.xpose.msra.mxu0 0
    %490 = vmatprep.subr.bf16.mxu0 0
    %491 = vmatpush1.bf16.xpose.msra.mxu0 0
    %492 = vmatprep.subr.bf16.mxu0 0
    %493 = vmatpush1.bf16.xpose.msra.mxu0 0
    %494 = vmatprep.subr.bf16.mxu0 0
    %495 = vmatpush1.bf16.xpose.msra.mxu0 0
    %496 = vmatprep.subr.bf16.mxu0 0
    %497 = vmatpush1.bf16.xpose.msra.mxu0 0
    %498 = vmatprep.subr.bf16.mxu0 0
    %499 = vmatpush1.bf16.xpose.msra.mxu0 0
    %500 = vmatprep.subr.bf16.mxu0 0
    %501 = vmatpush1.bf16.xpose.msra.mxu0 0
    %502 = vmatprep.subr.bf16.mxu0 0
    %503 = vmatpush1.bf16.xpose.msra.mxu0 0
    %504 = vmatprep.subr.bf16.mxu0 0
    %505 = vmatpush1.bf16.xpose.msra.mxu0 0
    %506 = vmatprep.subr.bf16.mxu0 0
    %507 = vmatpush1.bf16.xpose.msra.mxu0 0
    %508 = vmatprep.subr.bf16.mxu0 0
    %509 = vmatpush1.bf16.xpose.msra.mxu0 0
    %510 = vmatprep.mubr.bf16.mxu0 0
    %511 = vmatmul.mubr.bf16.gmra.mrb[0].mxu0 %v473
    %v512 = vpop.f32.mrb[0].mxu0
    %v513 = vadd.f32 0.0, %v512
    %v514 = vpop.f32.mrb[0].mxu0
    %v515 = vpop.f32.mrb[0].mxu0
    %v516 = vpop.f32.mrb[0].mxu0
    %517 = vdwg.mxu0
    %v518 = vmul.f32 %v463, 0.35355338
    %v519 = vmul.f32 %v513, 0.35355338
    %v520 = vsel %vm199, %v518, -inf
    %521 = vmax.xlane.f32.xlu0 %v520
    %v522 = vpop.xlane.xlu0 %521
    %v523 = vsel %vm199, %v519, -inf
    %524 = vmax.xlane.f32.xlu0 %v523
    %v525 = vpop.xlane.xlu0 %524
    %v526 = vsub.f32 %v518, %v522
    %v527 = vsub.f32 %v519, %v525
    %v528 = vmul.f32 %v526, 1.442695
    %v529 = vpow.pop %v528
    %v530 = vmul.f32 %v527, 1.442695
    %v531 = vpow.pop %v530
    %v532 = vsel %vm199, %v529, 0.0
    %533 = vadd.xlane.f32.xlu0 %v532
    %v534 = vpop.xlane.xlu0 %533
    %v535 = vsel %vm199, %v531, 0.0
    %536 = vadd.xlane.f32.xlu0 %v535
    %v537 = vpop.xlane.xlu0 %536
    %v538 = vrcp.pop %v534
    %v539 = vrcp.pop %v537
    %v540 = vmul.f32 %v529, %v538
    %v541 = vmul.f32 %v531, %v539
    %v542 = vpack.c.bf16 %v540, %v540
    %v543 = vpack.c.bf16 %v541, %v541
    %544 = vrot.lane.b32.xlu0 %v194, 56
    %v545 = vpop.permute.xlu0 %544
    %v547 = vsel %vm199, %v542, 0
    %v550 = vsel %vm326, %v545, 0
    %552 = vmatprep.subr.bf16.mxu0 0
    %553 = vmatpush1.bf16.msra.mxu0 %v550
    %554 = vmatprep.subr.bf16.mxu0 0
    %555 = vmatpush1.bf16.msra.mxu0 0
    %556 = vmatprep.subr.bf16.mxu0 0
    %557 = vmatpush1.bf16.msra.mxu0 0
    %558 = vmatprep.subr.bf16.mxu0 0
    %559 = vmatpush1.bf16.msra.mxu0 0
    %560 = vmatprep.subr.bf16.mxu0 0
    %561 = vmatpush1.bf16.msra.mxu0 0
    %562 = vmatprep.subr.bf16.mxu0 0
    %563 = vmatpush1.bf16.msra.mxu0 0
    %564 = vmatprep.subr.bf16.mxu0 0
    %565 = vmatpush1.bf16.msra.mxu0 0
    %566 = vmatprep.subr.bf16.mxu0 0
    %567 = vmatpush1.bf16.msra.mxu0 0
    %568 = vmatprep.subr.bf16.mxu0 0
    %569 = vmatpush1.bf16.msra.mxu0 0
    %570 = vmatprep.subr.bf16.mxu0 0
    %571 = vmatpush1.bf16.msra.mxu0 0
    %572 = vmatprep.subr.bf16.mxu0 0
    %573 = vmatpush1.bf16.msra.mxu0 0
    %574 = vmatprep.subr.bf16.mxu0 0
    %575 = vmatpush1.bf16.msra.mxu0 0
    %576 = vmatprep.subr.bf16.mxu0 0
    %577 = vmatpush1.bf16.msra.mxu0 0
    %578 = vmatprep.subr.bf16.mxu0 0
    %579 = vmatpush1.bf16.msra.mxu0 0
    %580 = vmatprep.subr.bf16.mxu0 0
    %581 = vmatpush1.bf16.msra.mxu0 0
    %582 = vmatprep.subr.bf16.mxu0 0
    %583 = vmatpush1.bf16.msra.mxu0 0
    %584 = vmatprep.mubr.bf16.mxu0 0
    %585 = vmatmul.mubr.bf16.gmra.mrb[0].mxu0 %v547
    %v586 = vpop.f32.mrb[0].mxu0
    %v587 = vadd.f32 0.0, %v586
    %v588 = vpop.f32.mrb[0].mxu0
    %v589 = vpop.f32.mrb[0].mxu0
    %v590 = vpop.f32.mrb[0].mxu0
    %591 = vdwg.mxu0
    %592 = vrot.lane.b32.xlu0 %v195, 56
    %v593 = vpop.permute.xlu0 %592
    %v595 = vsel %vm199, %v543, 0
    %v598 = vsel %vm326, %v593, 0
    %600 = vmatprep.subr.bf16.mxu0 0
    %601 = vmatpush1.bf16.msra.mxu0 %v598
    %602 = vmatprep.subr.bf16.mxu0 0
    %603 = vmatpush1.bf16.msra.mxu0 0
    %604 = vmatprep.subr.bf16.mxu0 0
    %605 = vmatpush1.bf16.msra.mxu0 0
    %606 = vmatprep.subr.bf16.mxu0 0
    %607 = vmatpush1.bf16.msra.mxu0 0
    %608 = vmatprep.subr.bf16.mxu0 0
    %609 = vmatpush1.bf16.msra.mxu0 0
    %610 = vmatprep.subr.bf16.mxu0 0
    %611 = vmatpush1.bf16.msra.mxu0 0
    %612 = vmatprep.subr.bf16.mxu0 0
    %613 = vmatpush1.bf16.msra.mxu0 0
    %614 = vmatprep.subr.bf16.mxu0 0
    %615 = vmatpush1.bf16.msra.mxu0 0
    %616 = vmatprep.subr.bf16.mxu0 0
    %617 = vmatpush1.bf16.msra.mxu0 0
    %618 = vmatprep.subr.bf16.mxu0 0
    %619 = vmatpush1.bf16.msra.mxu0 0
    %620 = vmatprep.subr.bf16.mxu0 0
    %621 = vmatpush1.bf16.msra.mxu0 0
    %622 = vmatprep.subr.bf16.mxu0 0
    %623 = vmatpush1.bf16.msra.mxu0 0
    %624 = vmatprep.subr.bf16.mxu0 0
    %625 = vmatpush1.bf16.msra.mxu0 0
    %626 = vmatprep.subr.bf16.mxu0 0
    %627 = vmatpush1.bf16.msra.mxu0 0
    %628 = vmatprep.subr.bf16.mxu0 0
    %629 = vmatpush1.bf16.msra.mxu0 0
    %630 = vmatprep.subr.bf16.mxu0 0
    %631 = vmatpush1.bf16.msra.mxu0 0
    %632 = vmatprep.mubr.bf16.mxu0 0
    %633 = vmatmul.mubr.bf16.gmra.mrb[0].mxu0 %v595
    %v634 = vpop.f32.mrb[0].mxu0
    %v635 = vadd.f32 0.0, %v634
    %v636 = vpop.f32.mrb[0].mxu0
    %v637 = vpop.f32.mrb[0].mxu0
    %v638 = vpop.f32.mrb[0].mxu0
    %639 = vdwg.mxu0
    %640 = vrot.lane.b32.xlu0 %v194, 112
    %v641 = vpop.permute.xlu0 %640
    %642 = vrot.lane.b32.xlu0 %v194, 80
    %v643 = vpop.permute.xlu0 %642
    %v645 = vsel %vm199, %v641, 0
    %v648 = vsel %vm199, %v643, 0
    %650 = vmatprep.subr.bf16.mxu0 0
    %651 = vmatpush1.bf16.xpose.msra.mxu0 %v648
    %652 = vmatprep.subr.bf16.mxu0 0
    %653 = vmatpush1.bf16.xpose.msra.mxu0 0
    %654 = vmatprep.subr.bf16.mxu0 0
    %655 = vmatpush1.bf16.xpose.msra.mxu0 0
    %656 = vmatprep.subr.bf16.mxu0 0
    %657 = vmatpush1.bf16.xpose.msra.mxu0 0
    %658 = vmatprep.subr.bf16.mxu0 0
    %659 = vmatpush1.bf16.xpose.msra.mxu0 0
    %660 = vmatprep.subr.bf16.mxu0 0
    %661 = vmatpush1.bf16.xpose.msra.mxu0 0
    %662 = vmatprep.subr.bf16.mxu0 0
    %663 = vmatpush1.bf16.xpose.msra.mxu0 0
    %664 = vmatprep.subr.bf16.mxu0 0
    %665 = vmatpush1.bf16.xpose.msra.mxu0 0
    %666 = vmatprep.subr.bf16.mxu0 0
    %667 = vmatpush1.bf16.xpose.msra.mxu0 0
    %668 = vmatprep.subr.bf16.mxu0 0
    %669 = vmatpush1.bf16.xpose.msra.mxu0 0
    %670 = vmatprep.subr.bf16.mxu0 0
    %671 = vmatpush1.bf16.xpose.msra.mxu0 0
    %672 = vmatprep.subr.bf16.mxu0 0
    %673 = vmatpush1.bf16.xpose.msra.mxu0 0
    %674 = vmatprep.subr.bf16.mxu0 0
    %675 = vmatpush1.bf16.xpose.msra.mxu0 0
    %676 = vmatprep.subr.bf16.mxu0 0
    %677 = vmatpush1.bf16.xpose.msra.mxu0 0
    %678 = vmatprep.subr.bf16.mxu0 0
    %679 = vmatpush1.bf16.xpose.msra.mxu0 0
    %680 = vmatprep.subr.bf16.mxu0 0
    %681 = vmatpush1.bf16.xpose.msra.mxu0 0
    %682 = vmatprep.mubr.bf16.mxu0 0
    %683 = vmatmul.mubr.bf16.gmra.mrb[0].mxu0 %v645
    %v684 = vpop.f32.mrb[0].mxu0
    %v685 = vadd.f32 0.0, %v684
    %v686 = vpop.f32.mrb[0].mxu0
    %v687 = vpop.f32.mrb[0].mxu0
    %v688 = vpop.f32.mrb[0].mxu0
    %689 = vdwg.mxu0
    %690 = vrot.lane.b32.xlu0 %v195, 112
    %v691 = vpop.permute.xlu0 %690
    %692 = vrot.lane.b32.xlu0 %v195, 80
    %v693 = vpop.permute.xlu0 %692
    %v695 = vsel %vm199, %v691, 0
    %v698 = vsel %vm199, %v693, 0
    %700 = vmatprep.subr.bf16.mxu0 0
    %701 = vmatpush1.bf16.xpose.msra.mxu0 %v698
    %702 = vmatprep.subr.bf16.mxu0 0
    %703 = vmatpush1.bf16.xpose.msra.mxu0 0
    %704 = vmatprep.subr.bf16.mxu0 0
    %705 = vmatpush1.bf16.xpose.msra.mxu0 0
    %706 = vmatprep.subr.bf16.mxu0 0
    %707 = vmatpush1.bf16.xpose.msra.mxu0 0
    %708 = vmatprep.subr.bf16.mxu0 0
    %709 = vmatpush1.bf16.xpose.msra.mxu0 0
    %710 = vmatprep.subr.bf16.mxu0 0
    %711 = vmatpush1.bf16.xpose.msra.mxu0 0
    %712 = vmatprep.subr.bf16.mxu0 0
    %713 = vmatpush1.bf16.xpose.msra.mxu0 0
    %714 = vmatprep.subr.bf16.mxu0 0
    %715 = vmatpush1.bf16.xpose.msra.mxu0 0
    %716 = vmatprep.subr.bf16.mxu0 0
    %717 = vmatpush1.bf16.xpose.msra.mxu0 0
    %718 = vmatprep.subr.bf16.mxu0 0
    %719 = vmatpush1.bf16.xpose.msra.mxu0 0
    %720 = vmatprep.subr.bf16.mxu0 0
    %721 = vmatpush1.bf16.xpose.msra.mxu0 0
    %722 = vmatprep.subr.bf16.mxu0 0
    %723 = vmatpush1.bf16.xpose.msra.mxu0 0
    %724 = vmatprep.subr.bf16.mxu0 0
    %725 = vmatpush1.bf16.xpose.msra.mxu0 0
    %726 = vmatprep.subr.bf16.mxu0 0
    %727 = vmatpush1.bf16.xpose.msra.mxu0 0
    %728 = vmatprep.subr.bf16.mxu0 0
    %729 = vmatpush1.bf16.xpose.msra.mxu0 0
    %730 = vmatprep.subr.bf16.mxu0 0
    %731 = vmatpush1.bf16.xpose.msra.mxu0 0
    %732 = vmatprep.mubr.bf16.mxu0 0
    %733 = vmatmul.mubr.bf16.gmra.mrb[0].mxu0 %v695
    %v734 = vpop.f32.mrb[0].mxu0
    %v735 = vadd.f32 0.0, %v734
    %v736 = vpop.f32.mrb[0].mxu0
    %v737 = vpop.f32.mrb[0].mxu0
    %v738 = vpop.f32.mrb[0].mxu0
    %739 = vdwg.mxu0
    %v740 = vmul.f32 %v685, 0.35355338
    %v741 = vmul.f32 %v735, 0.35355338
    %v742 = vsel %vm199, %v740, -inf
    %743 = vmax.xlane.f32.xlu0 %v742
    %v744 = vpop.xlane.xlu0 %743
    %v745 = vsel %vm199, %v741, -inf
    %746 = vmax.xlane.f32.xlu0 %v745
    %v747 = vpop.xlane.xlu0 %746
    %v748 = vsub.f32 %v740, %v744
    %v749 = vsub.f32 %v741, %v747
    %v750 = vmul.f32 %v748, 1.442695
    %v751 = vpow.pop %v750
    %v752 = vmul.f32 %v749, 1.442695
    %v753 = vpow.pop %v752
    %v754 = vsel %vm199, %v751, 0.0
    %755 = vadd.xlane.f32.xlu0 %v754
    %v756 = vpop.xlane.xlu0 %755
    %v757 = vsel %vm199, %v753, 0.0
    %758 = vadd.xlane.f32.xlu0 %v757
    %v759 = vpop.xlane.xlu0 %758
    %v760 = vrcp.pop %v756
    %v761 = vrcp.pop %v759
    %v762 = vmul.f32 %v751, %v760
    %v763 = vmul.f32 %v753, %v761
    %v764 = vpack.c.bf16 %v762, %v762
    %v765 = vpack.c.bf16 %v763, %v763
    %766 = vrot.lane.b32.xlu0 %v194, 48
    %v767 = vpop.permute.xlu0 %766
    %v769 = vsel %vm199, %v764, 0
    %v772 = vsel %vm326, %v767, 0
    %774 = vmatprep.subr.bf16.mxu0 0
    %775 = vmatpush1.bf16.msra.mxu0 %v772
    %776 = vmatprep.subr.bf16.mxu0 0
    %777 = vmatpush1.bf16.msra.mxu0 0
    %778 = vmatprep.subr.bf16.mxu0 0
    %779 = vmatpush1.bf16.msra.mxu0 0
    %780 = vmatprep.subr.bf16.mxu0 0
    %781 = vmatpush1.bf16.msra.mxu0 0
    %782 = vmatprep.subr.bf16.mxu0 0
    %783 = vmatpush1.bf16.msra.mxu0 0
    %784 = vmatprep.subr.bf16.mxu0 0
    %785 = vmatpush1.bf16.msra.mxu0 0
    %786 = vmatprep.subr.bf16.mxu0 0
    %787 = vmatpush1.bf16.msra.mxu0 0
    %788 = vmatprep.subr.bf16.mxu0 0
    %789 = vmatpush1.bf16.msra.mxu0 0
    %790 = vmatprep.subr.bf16.mxu0 0
    %791 = vmatpush1.bf16.msra.mxu0 0
    %792 = vmatprep.subr.bf16.mxu0 0
    %793 = vmatpush1.bf16.msra.mxu0 0
    %794 = vmatprep.subr.bf16.mxu0 0
    %795 = vmatpush1.bf16.msra.mxu0 0
    %796 = vmatprep.subr.bf16.mxu0 0
    %797 = vmatpush1.bf16.msra.mxu0 0
    %798 = vmatprep.subr.bf16.mxu0 0
    %799 = vmatpush1.bf16.msra.mxu0 0
    %800 = vmatprep.subr.bf16.mxu0 0
    %801 = vmatpush1.bf16.msra.mxu0 0
    %802 = vmatprep.subr.bf16.mxu0 0
    %803 = vmatpush1.bf16.msra.mxu0 0
    %804 = vmatprep.subr.bf16.mxu0 0
    %805 = vmatpush1.bf16.msra.mxu0 0
    %806 = vmatprep.mubr.bf16.mxu0 0
    %807 = vmatmul.mubr.bf16.gmra.mrb[0].mxu0 %v769
    %v808 = vpop.f32.mrb[0].mxu0
    %v809 = vadd.f32 0.0, %v808
    %v810 = vpop.f32.mrb[0].mxu0
    %v811 = vpop.f32.mrb[0].mxu0
    %v812 = vpop.f32.mrb[0].mxu0
    %813 = vdwg.mxu0
    %814 = vrot.lane.b32.xlu0 %v195, 48
    %v815 = vpop.permute.xlu0 %814
    %v817 = vsel %vm199, %v765, 0
    %v820 = vsel %vm326, %v815, 0
    %822 = vmatprep.subr.bf16.mxu0 0
    %823 = vmatpush1.bf16.msra.mxu0 %v820
    %824 = vmatprep.subr.bf16.mxu0 0
    %825 = vmatpush1.bf16.msra.mxu0 0
    %826 = vmatprep.subr.bf16.mxu0 0
    %827 = vmatpush1.bf16.msra.mxu0 0
    %828 = vmatprep.subr.bf16.mxu0 0
    %829 = vmatpush1.bf16.msra.mxu0 0
    %830 = vmatprep.subr.bf16.mxu0 0
    %831 = vmatpush1.bf16.msra.mxu0 0
    %832 = vmatprep.subr.bf16.mxu0 0
    %833 = vmatpush1.bf16.msra.mxu0 0
    %834 = vmatprep.subr.bf16.mxu0 0
    %835 = vmatpush1.bf16.msra.mxu0 0
    %836 = vmatprep.subr.bf16.mxu0 0
    %837 = vmatpush1.bf16.msra.mxu0 0
    %838 = vmatprep.subr.bf16.mxu0 0
    %839 = vmatpush1.bf16.msra.mxu0 0
    %840 = vmatprep.subr.bf16.mxu0 0
    %841 = vmatpush1.bf16.msra.mxu0 0
    %842 = vmatprep.subr.bf16.mxu0 0
    %843 = vmatpush1.bf16.msra.mxu0 0
    %844 = vmatprep.subr.bf16.mxu0 0
    %845 = vmatpush1.bf16.msra.mxu0 0
    %846 = vmatprep.subr.bf16.mxu0 0
    %847 = vmatpush1.bf16.msra.mxu0 0
    %848 = vmatprep.subr.bf16.mxu0 0
    %849 = vmatpush1.bf16.msra.mxu0 0
    %850 = vmatprep.subr.bf16.mxu0 0
    %851 = vmatpush1.bf16.msra.mxu0 0
    %852 = vmatprep.subr.bf16.mxu0 0
    %853 = vmatpush1.bf16.msra.mxu0 0
    %854 = vmatprep.mubr.bf16.mxu0 0
    %855 = vmatmul.mubr.bf16.gmra.mrb[0].mxu0 %v817
    %v856 = vpop.f32.mrb[0].mxu0
    %v857 = vadd.f32 0.0, %v856
    %v858 = vpop.f32.mrb[0].mxu0
    %v859 = vpop.f32.mrb[0].mxu0
    %v860 = vpop.f32.mrb[0].mxu0
    %861 = vdwg.mxu0
    %862 = vrot.lane.b32.xlu0 %v194, 104
    %v863 = vpop.permute.xlu0 %862
    %864 = vrot.lane.b32.xlu0 %v194, 72
    %v865 = vpop.permute.xlu0 %864
    %v867 = vsel %vm199, %v863, 0
    %v870 = vsel %vm199, %v865, 0
    %872 = vmatprep.subr.bf16.mxu0 0
    %873 = vmatpush1.bf16.xpose.msra.mxu0 %v870
    %874 = vmatprep.subr.bf16.mxu0 0
    %875 = vmatpush1.bf16.xpose.msra.mxu0 0
    %876 = vmatprep.subr.bf16.mxu0 0
    %877 = vmatpush1.bf16.xpose.msra.mxu0 0
    %878 = vmatprep.subr.bf16.mxu0 0
    %879 = vmatpush1.bf16.xpose.msra.mxu0 0
    %880 = vmatprep.subr.bf16.mxu0 0
    %881 = vmatpush1.bf16.xpose.msra.mxu0 0
    %882 = vmatprep.subr.bf16.mxu0 0
    %883 = vmatpush1.bf16.xpose.msra.mxu0 0
    %884 = vmatprep.subr.bf16.mxu0 0
    %885 = vmatpush1.bf16.xpose.msra.mxu0 0
    %886 = vmatprep.subr.bf16.mxu0 0
    %887 = vmatpush1.bf16.xpose.msra.mxu0 0
    %888 = vmatprep.subr.bf16.mxu0 0
    %889 = vmatpush1.bf16.xpose.msra.mxu0 0
    %890 = vmatprep.subr.bf16.mxu0 0
    %891 = vmatpush1.bf16.xpose.msra.mxu0 0
    %892 = vmatprep.subr.bf16.mxu0 0
    %893 = vmatpush1.bf16.xpose.msra.mxu0 0
    %894 = vmatprep.subr.bf16.mxu0 0
    %895 = vmatpush1.bf16.xpose.msra.mxu0 0
    %896 = vmatprep.subr.bf16.mxu0 0
    %897 = vmatpush1.bf16.xpose.msra.mxu0 0
    %898 = vmatprep.subr.bf16.mxu0 0
    %899 = vmatpush1.bf16.xpose.msra.mxu0 0
    %900 = vmatprep.subr.bf16.mxu0 0
    %901 = vmatpush1.bf16.xpose.msra.mxu0 0
    %902 = vmatprep.subr.bf16.mxu0 0
    %903 = vmatpush1.bf16.xpose.msra.mxu0 0
    %904 = vmatprep.mubr.bf16.mxu0 0
    %905 = vmatmul.mubr.bf16.gmra.mrb[0].mxu0 %v867
    %v906 = vpop.f32.mrb[0].mxu0
    %v907 = vadd.f32 0.0, %v906
    %v908 = vpop.f32.mrb[0].mxu0
    %v909 = vpop.f32.mrb[0].mxu0
    %v910 = vpop.f32.mrb[0].mxu0
    %911 = vdwg.mxu0
    %912 = vrot.lane.b32.xlu0 %v195, 104
    %v913 = vpop.permute.xlu0 %912
    %914 = vrot.lane.b32.xlu0 %v195, 72
    %v915 = vpop.permute.xlu0 %914
    %v917 = vsel %vm199, %v913, 0
    %v920 = vsel %vm199, %v915, 0
    %922 = vmatprep.subr.bf16.mxu0 0
    %923 = vmatpush1.bf16.xpose.msra.mxu0 %v920
    %924 = vmatprep.subr.bf16.mxu0 0
    %925 = vmatpush1.bf16.xpose.msra.mxu0 0
    %926 = vmatprep.subr.bf16.mxu0 0
    %927 = vmatpush1.bf16.xpose.msra.mxu0 0
    %928 = vmatprep.subr.bf16.mxu0 0
    %929 = vmatpush1.bf16.xpose.msra.mxu0 0
    %930 = vmatprep.subr.bf16.mxu0 0
    %931 = vmatpush1.bf16.xpose.msra.mxu0 0
    %932 = vmatprep.subr.bf16.mxu0 0
    %933 = vmatpush1.bf16.xpose.msra.mxu0 0
    %934 = vmatprep.subr.bf16.mxu0 0
    %935 = vmatpush1.bf16.xpose.msra.mxu0 0
    %936 = vmatprep.subr.bf16.mxu0 0
    %937 = vmatpush1.bf16.xpose.msra.mxu0 0
    %938 = vmatprep.subr.bf16.mxu0 0
    %939 = vmatpush1.bf16.xpose.msra.mxu0 0
    %940 = vmatprep.subr.bf16.mxu0 0
    %941 = vmatpush1.bf16.xpose.msra.mxu0 0
    %942 = vmatprep.subr.bf16.mxu0 0
    %943 = vmatpush1.bf16.xpose.msra.mxu0 0
    %944 = vmatprep.subr.bf16.mxu0 0
    %945 = vmatpush1.bf16.xpose.msra.mxu0 0
    %946 = vmatprep.subr.bf16.mxu0 0
    %947 = vmatpush1.bf16.xpose.msra.mxu0 0
    %948 = vmatprep.subr.bf16.mxu0 0
    %949 = vmatpush1.bf16.xpose.msra.mxu0 0
    %950 = vmatprep.subr.bf16.mxu0 0
    %951 = vmatpush1.bf16.xpose.msra.mxu0 0
    %952 = vmatprep.subr.bf16.mxu0 0
    %953 = vmatpush1.bf16.xpose.msra.mxu0 0
    %954 = vmatprep.mubr.bf16.mxu0 0
    %955 = vmatmul.mubr.bf16.gmra.mrb[0].mxu0 %v917
    %v956 = vpop.f32.mrb[0].mxu0
    %v957 = vadd.f32 0.0, %v956
    %v958 = vpop.f32.mrb[0].mxu0
    %v959 = vpop.f32.mrb[0].mxu0
    %v960 = vpop.f32.mrb[0].mxu0
    %961 = vdwg.mxu0
    %v962 = vmul.f32 %v907, 0.35355338
    %v963 = vmul.f32 %v957, 0.35355338
    %v964 = vsel %vm199, %v962, -inf
    %965 = vmax.xlane.f32.xlu0 %v964
    %v966 = vpop.xlane.xlu0 %965
    %v967 = vsel %vm199, %v963, -inf
    %968 = vmax.xlane.f32.xlu0 %v967
    %v969 = vpop.xlane.xlu0 %968
    %v970 = vsub.f32 %v962, %v966
    %v971 = vsub.f32 %v963, %v969
    %v972 = vmul.f32 %v970, 1.442695
    %v973 = vpow.pop %v972
    %v974 = vmul.f32 %v971, 1.442695
    %v975 = vpow.pop %v974
    %v976 = vsel %vm199, %v973, 0.0
    %977 = vadd.xlane.f32.xlu0 %v976
    %v978 = vpop.xlane.xlu0 %977
    %v979 = vsel %vm199, %v975, 0.0
    %980 = vadd.xlane.f32.xlu0 %v979
    %v981 = vpop.xlane.xlu0 %980
    %v982 = vrcp.pop %v978
    %v983 = vrcp.pop %v981
    %v984 = vmul.f32 %v973, %v982
    %v985 = vmul.f32 %v975, %v983
    %v986 = vpack.c.bf16 %v984, %v984
    %v987 = vpack.c.bf16 %v985, %v985
    %988 = vrot.lane.b32.xlu0 %v194, 40
    %v989 = vpop.permute.xlu0 %988
    %v991 = vsel %vm199, %v986, 0
    %v994 = vsel %vm326, %v989, 0
    %996 = vmatprep.subr.bf16.mxu0 0
    %997 = vmatpush1.bf16.msra.mxu0 %v994
    %998 = vmatprep.subr.bf16.mxu0 0
    %999 = vmatpush1.bf16.msra.mxu0 0
    %1000 = vmatprep.subr.bf16.mxu0 0
    %1001 = vmatpush1.bf16.msra.mxu0 0
    %1002 = vmatprep.subr.bf16.mxu0 0
    %1003 = vmatpush1.bf16.msra.mxu0 0
    %1004 = vmatprep.subr.bf16.mxu0 0
    %1005 = vmatpush1.bf16.msra.mxu0 0
    %1006 = vmatprep.subr.bf16.mxu0 0
    %1007 = vmatpush1.bf16.msra.mxu0 0
    %1008 = vmatprep.subr.bf16.mxu0 0
    %1009 = vmatpush1.bf16.msra.mxu0 0
    %1010 = vmatprep.subr.bf16.mxu0 0
    %1011 = vmatpush1.bf16.msra.mxu0 0
    %1012 = vmatprep.subr.bf16.mxu0 0
    %1013 = vmatpush1.bf16.msra.mxu0 0
    %1014 = vmatprep.subr.bf16.mxu0 0
    %1015 = vmatpush1.bf16.msra.mxu0 0
    %1016 = vmatprep.subr.bf16.mxu0 0
    %1017 = vmatpush1.bf16.msra.mxu0 0
    %1018 = vmatprep.subr.bf16.mxu0 0
    %1019 = vmatpush1.bf16.msra.mxu0 0
    %1020 = vmatprep.subr.bf16.mxu0 0
    %1021 = vmatpush1.bf16.msra.mxu0 0
    %1022 = vmatprep.subr.bf16.mxu0 0
    %1023 = vmatpush1.bf16.msra.mxu0 0
    %1024 = vmatprep.subr.bf16.mxu0 0
    %1025 = vmatpush1.bf16.msra.mxu0 0
    %1026 = vmatprep.subr.bf16.mxu0 0
    %1027 = vmatpush1.bf16.msra.mxu0 0
    %1028 = vmatprep.mubr.bf16.mxu0 0
    %1029 = vmatmul.mubr.bf16.gmra.mrb[0].mxu0 %v991
    %v1030 = vpop.f32.mrb[0].mxu0
    %v1031 = vadd.f32 0.0, %v1030
    %v1032 = vpop.f32.mrb[0].mxu0
    %v1033 = vpop.f32.mrb[0].mxu0
    %v1034 = vpop.f32.mrb[0].mxu0
    %1035 = vdwg.mxu0
    %1036 = vrot.lane.b32.xlu0 %v195, 40
    %v1037 = vpop.permute.xlu0 %1036
    %v1039 = vsel %vm199, %v987, 0
    %v1042 = vsel %vm326, %v1037, 0
    %1044 = vmatprep.subr.bf16.mxu0 0
    %1045 = vmatpush1.bf16.msra.mxu0 %v1042
    %1046 = vmatprep.subr.bf16.mxu0 0
    %1047 = vmatpush1.bf16.msra.mxu0 0
    %1048 = vmatprep.subr.bf16.mxu0 0
    %1049 = vmatpush1.bf16.msra.mxu0 0
    %1050 = vmatprep.subr.bf16.mxu0 0
    %1051 = vmatpush1.bf16.msra.mxu0 0
    %1052 = vmatprep.subr.bf16.mxu0 0
    %1053 = vmatpush1.bf16.msra.mxu0 0
    %1054 = vmatprep.subr.bf16.mxu0 0
    %1055 = vmatpush1.bf16.msra.mxu0 0
    %1056 = vmatprep.subr.bf16.mxu0 0
    %1057 = vmatpush1.bf16.msra.mxu0 0
    %1058 = vmatprep.subr.bf16.mxu0 0
    %1059 = vmatpush1.bf16.msra.mxu0 0
    %1060 = vmatprep.subr.bf16.mxu0 0
    %1061 = vmatpush1.bf16.msra.mxu0 0
    %1062 = vmatprep.subr.bf16.mxu0 0
    %1063 = vmatpush1.bf16.msra.mxu0 0
    %1064 = vmatprep.subr.bf16.mxu0 0
    %1065 = vmatpush1.bf16.msra.mxu0 0
    %1066 = vmatprep.subr.bf16.mxu0 0
    %1067 = vmatpush1.bf16.msra.mxu0 0
    %1068 = vmatprep.subr.bf16.mxu0 0
    %1069 = vmatpush1.bf16.msra.mxu0 0
    %1070 = vmatprep.subr.bf16.mxu0 0
    %1071 = vmatpush1.bf16.msra.mxu0 0
    %1072 = vmatprep.subr.bf16.mxu0 0
    %1073 = vmatpush1.bf16.msra.mxu0 0
    %1074 = vmatprep.subr.bf16.mxu0 0
    %1075 = vmatpush1.bf16.msra.mxu0 0
    %1076 = vmatprep.mubr.bf16.mxu0 0
    %1077 = vmatmul.mubr.bf16.gmra.mrb[0].mxu0 %v1039
    %v1078 = vpop.f32.mrb[0].mxu0
    %v1079 = vadd.f32 0.0, %v1078
    %v1080 = vpop.f32.mrb[0].mxu0
    %v1081 = vpop.f32.mrb[0].mxu0
    %v1082 = vpop.f32.mrb[0].mxu0
    %1083 = vdwg.mxu0
    %1086 = vrot.lane.b32.xlu0 %v587, 8
    %v1087 = vpop.permute.xlu0 %1086
    %1088 = vrot.lane.b32.xlu0 %v635, 8
    %v1089 = vpop.permute.xlu0 %1088
    %1094 = vrot.lane.b32.xlu0 %v809, 16
    %v1095 = vpop.permute.xlu0 %1094
    %1096 = vrot.lane.b32.xlu0 %v857, 16
    %v1097 = vpop.permute.xlu0 %1096
    %1102 = vrot.lane.b32.xlu0 %v1031, 24
    %v1103 = vpop.permute.xlu0 %1102
    %1104 = vrot.lane.b32.xlu0 %v1079, 24
    %v1105 = vpop.permute.xlu0 %1104
    %v1108 = vsel %vm199, %v365, %v1087
    %v1109 = vsel %vm199, %v413, %v1089
    %vm1110 = vcmask 130048
    %v1111 = vsel %vm1110, %v1108, %v1095
    %v1112 = vsel %vm1110, %v1109, %v1097
    %vm1113 = vcmask 195584
    %v1114 = vsel %vm1113, %v1111, %v1103
    %v1115 = vsel %vm1113, %v1112, %v1105
    %v1116 = vpack.c.bf16 %v1115, %v1114
    %v1117 = vld [vmem:[%s4] sm:$0xff]
    %v1118 = vld [vmem:[%s4 + $0x8] sm:$0xff]
    %v1119 = vld [vmem:[%s4 + $0x10] sm:$0xff]
    %v1120 = vld [vmem:[%s4 + $0x18] sm:$0xff]
    %v1121 = vpack.c.bf16 %v1118, %v1117
    %v1122 = vpack.c.bf16 %v1120, %v1119
    %v1124 = vsel %vm149, %v1116, 0
    %1126 = vmatprep.subr.bf16.mxu0 0
    %1127 = vmatpush1.bf16.msra.mxu0 %v1121
    %1128 = vmatprep.subr.bf16.mxu0 0
    %1129 = vmatpush1.bf16.msra.mxu0 %v1122
    %1130 = vmatprep.subr.bf16.mxu0 0
    %1131 = vmatpush1.bf16.msra.mxu0 0
    %1132 = vmatprep.subr.bf16.mxu0 0
    %1133 = vmatpush1.bf16.msra.mxu0 0
    %1134 = vmatprep.subr.bf16.mxu0 0
    %1135 = vmatpush1.bf16.msra.mxu0 0
    %1136 = vmatprep.subr.bf16.mxu0 0
    %1137 = vmatpush1.bf16.msra.mxu0 0
    %1138 = vmatprep.subr.bf16.mxu0 0
    %1139 = vmatpush1.bf16.msra.mxu0 0
    %1140 = vmatprep.subr.bf16.mxu0 0
    %1141 = vmatpush1.bf16.msra.mxu0 0
    %1142 = vmatprep.subr.bf16.mxu0 0
    %1143 = vmatpush1.bf16.msra.mxu0 0
    %1144 = vmatprep.subr.bf16.mxu0 0
    %1145 = vmatpush1.bf16.msra.mxu0 0
    %1146 = vmatprep.subr.bf16.mxu0 0
    %1147 = vmatpush1.bf16.msra.mxu0 0
    %1148 = vmatprep.subr.bf16.mxu0 0
    %1149 = vmatpush1.bf16.msra.mxu0 0
    %1150 = vmatprep.subr.bf16.mxu0 0
    %1151 = vmatpush1.bf16.msra.mxu0 0
    %1152 = vmatprep.subr.bf16.mxu0 0
    %1153 = vmatpush1.bf16.msra.mxu0 0
    %1154 = vmatprep.subr.bf16.mxu0 0
    %1155 = vmatpush1.bf16.msra.mxu0 0
    %1156 = vmatprep.subr.bf16.mxu0 0
    %1157 = vmatpush1.bf16.msra.mxu0 0
    %1158 = vmatprep.mubr.bf16.mxu0 0
    %1159 = vmatmul.mubr.bf16.gmra.mrb[0].mxu0 %v1124
    %v1160 = vpop.f32.mrb[0].mxu0
    %v1161 = vadd.f32 0.0, %v1160
    %v1162 = vpop.f32.mrb[0].mxu0
    %v1163 = vpop.f32.mrb[0].mxu0
    %v1164 = vadd.f32 0.0, %v1163
    %v1165 = vpop.f32.mrb[0].mxu0
    %1166 = vdwg.mxu0
    %v1167 = vadd.f32 %v134, %v1161
    %v1168 = vadd.f32 %v139, %v1164
    %v1169 = vsel %vm149, %v1167, 0.0
    %v1170 = vsel %vm149, %v1168, 0.0
    %v1171 = vadd.f32 %v1169, %v1170
    %v1172 = vrot.slane %v1171, 4
    %v1173 = vadd.f32 %v1171, %v1172
    %v1174 = vrot.slane %v1173, 2
    %v1175 = vadd.f32 %v1173, %v1174
    %v1176 = vrot.slane %v1175, 1
    %v1177 = vadd.f32 %v1175, %v1176
    %v1178 = vrcp.pop 16.0
    %v1179 = vmul.f32 %v1177, %v1178
    %v1180 = vsub.f32 %v1167, %v1179
    %v1181 = vsub.f32 %v1168, %v1179
    %v1182 = vmul.f32 %v1180, %v1180
    %v1183 = vmul.f32 %v1181, %v1181
    %v1184 = vsel %vm149, %v1182, 0.0
    %v1185 = vsel %vm149, %v1183, 0.0
    %v1186 = vadd.f32 %v1184, %v1185
    %v1187 = vrot.slane %v1186, 4
    %v1188 = vadd.f32 %v1186, %v1187
    %v1189 = vrot.slane %v1188, 2
    %v1190 = vadd.f32 %v1188, %v1189
    %v1191 = vrot.slane %v1190, 1
    %v1192 = vadd.f32 %v1190, %v1191
    %v1193 = vmul.f32 %v1192, %v1178
    %v1194 = vadd.f32 %v1193, 1e-05
    %v1195 = vrsqrt.pop %v1194
    %v1196 = vmul.f32 %v1180, %v1195
    %v1197 = vmul.f32 %v1181, %v1195
    %v1198 = vld [vmem:[%s5] sm:$0x1]
    %v1199 = vlaneseq
    %v1200 = vshrl.u32 %v1199, 7
    %v1201 = vsub.s32 0, %v1200
    %v1202 = vrot.slane %v1198, %v1201
    %v1203 = vmul.f32 %v1196, %v1202
    %v1204 = vmul.f32 %v1197, %v1202
    %v1205 = vld [vmem:[%s6] sm:$0x1]
    %v1206 = vlaneseq
    %v1207 = vshrl.u32 %v1206, 7
    %v1208 = vsub.s32 0, %v1207
    %v1209 = vrot.slane %v1205, %v1208
    %v1210 = vadd.f32 %v1203, %v1209
    %v1211 = vadd.f32 %v1204, %v1209
    %v1212 = vpack.c.bf16 %v1211, %v1210
    %v1213 = vld [vmem:[%s7] sm:$0xff]
    %v1214 = vld [vmem:[%s7 + $0x8] sm:$0xff]
    %v1215 = vld [vmem:[%s7 + $0x10] sm:$0xff]
    %v1216 = vld [vmem:[%s7 + $0x18] sm:$0xff]
    %v1217 = vpack.c.bf16 %v1214, %v1213
    %v1218 = vpack.c.bf16 %v1216, %v1215
    %v1219 = vld [vmem:[%s8] sm:$0x1]
    %v1220 = vlaneseq
    %v1221 = vshrl.u32 %v1220, 7
    %v1222 = vsub.s32 0, %v1221
    %v1223 = vrot.slane %v1219, %v1222
    %v1225 = vsel %vm149, %v1212, 0
    %1227 = vmatprep.subr.bf16.mxu0 0
    %1228 = vmatpush1.bf16.msra.mxu0 %v1217
    %1229 = vmatprep.subr.bf16.mxu0 0
    %1230 = vmatpush1.bf16.msra.mxu0 %v1218
    %1231 = vmatprep.subr.bf16.mxu0 0
    %1232 = vmatpush1.bf16.msra.mxu0 0
    %1233 = vmatprep.subr.bf16.mxu0 0
    %1234 = vmatpush1.bf16.msra.mxu0 0
    %1235 = vmatprep.subr.bf16.mxu0 0
    %1236 = vmatpush1.bf16.msra.mxu0 0
    %1237 = vmatprep.subr.bf16.mxu0 0
    %1238 = vmatpush1.bf16.msra.mxu0 0
    %1239 = vmatprep.subr.bf16.mxu0 0
    %1240 = vmatpush1.bf16.msra.mxu0 0
    %1241 = vmatprep.subr.bf16.mxu0 0
    %1242 = vmatpush1.bf16.msra.mxu0 0
    %1243 = vmatprep.subr.bf16.mxu0 0
    %1244 = vmatpush1.bf16.msra.mxu0 0
    %1245 = vmatprep.subr.bf16.mxu0 0
    %1246 = vmatpush1.bf16.msra.mxu0 0
    %1247 = vmatprep.subr.bf16.mxu0 0
    %1248 = vmatpush1.bf16.msra.mxu0 0
    %1249 = vmatprep.subr.bf16.mxu0 0
    %1250 = vmatpush1.bf16.msra.mxu0 0
    %1251 = vmatprep.subr.bf16.mxu0 0
    %1252 = vmatpush1.bf16.msra.mxu0 0
    %1253 = vmatprep.subr.bf16.mxu0 0
    %1254 = vmatpush1.bf16.msra.mxu0 0
    %1255 = vmatprep.subr.bf16.mxu0 0
    %1256 = vmatpush1.bf16.msra.mxu0 0
    %1257 = vmatprep.subr.bf16.mxu0 0
    %1258 = vmatpush1.bf16.msra.mxu0 0
    %1259 = vmatprep.mubr.bf16.mxu0 0
    %1260 = vmatmul.mubr.bf16.gmra.mrb[0].mxu0 %v1225
    %v1261 = vpop.f32.mrb[0].mxu0
    %v1262 = vadd.f32 %v1223, %v1261
    %v1263 = vpop.f32.mrb[0].mxu0
    %v1264 = vpop.f32.mrb[0].mxu0
    %v1265 = vadd.f32 %v1223, %v1264
    %v1266 = vpop.f32.mrb[0].mxu0
    %1267 = vdwg.mxu0
    %v1268 = vmax.f32 %v1262, 0.0
    %v1269 = vmax.f32 %v1265, 0.0
    %v1270 = vpack.c.bf16 %v1269, %v1268
    %v1271 = vld [vmem:[%s9] sm:$0xff]
    %v1272 = vld [vmem:[%s9 + $0x8] sm:$0xff]
    %v1273 = vld [vmem:[%s9 + $0x10] sm:$0xff]
    %v1274 = vld [vmem:[%s9 + $0x18] sm:$0xff]
    %v1275 = vld [vmem:[%s9 + $0x20] sm:$0xff]
    %v1276 = vld [vmem:[%s9 + $0x28] sm:$0xff]
    %v1277 = vld [vmem:[%s9 + $0x30] sm:$0xff]
    %v1278 = vld [vmem:[%s9 + $0x38] sm:$0xff]
    %v1279 = vpack.c.bf16 %v1272, %v1271
    %v1280 = vpack.c.bf16 %v1274, %v1273
    %v1281 = vpack.c.bf16 %v1276, %v1275
    %v1282 = vpack.c.bf16 %v1278, %v1277
    %vm1283 = vcmask 523264
    %v1285 = vsel %vm1283, %v1270, 0
    %1287 = vmatprep.subr.bf16.mxu0 0
    %1288 = vmatpush1.bf16.msra.mxu0 %v1279
    %1289 = vmatprep.subr.bf16.mxu0 0
    %1290 = vmatpush1.bf16.msra.mxu0 %v1280
    %1291 = vmatprep.subr.bf16.mxu0 0
    %1292 = vmatpush1.bf16.msra.mxu0 %v1281
    %1293 = vmatprep.subr.bf16.mxu0 0
    %1294 = vmatpush1.bf16.msra.mxu0 %v1282
    %1295 = vmatprep.subr.bf16.mxu0 0
    %1296 = vmatpush1.bf16.msra.mxu0 0
    %1297 = vmatprep.subr.bf16.mxu0 0
    %1298 = vmatpush1.bf16.msra.mxu0 0
    %1299 = vmatprep.subr.bf16.mxu0 0
    %1300 = vmatpush1.bf16.msra.mxu0 0
    %1301 = vmatprep.subr.bf16.mxu0 0
    %1302 = vmatpush1.bf16.msra.mxu0 0
    %1303 = vmatprep.subr.bf16.mxu0 0
    %1304 = vmatpush1.bf16.msra.mxu0 0
    %1305 = vmatprep.subr.bf16.mxu0 0
    %1306 = vmatpush1.bf16.msra.mxu0 0
    %1307 = vmatprep.subr.bf16.mxu0 0
    %1308 = vmatpush1.bf16.msra.mxu0 0
    %1309 = vmatprep.subr.bf16.mxu0 0
    %1310 = vmatpush1.bf16.msra.mxu0 0
    %1311 = vmatprep.subr.bf16.mxu0 0
    %1312 = vmatpush1.bf16.msra.mxu0 0
    %1313 = vmatprep.subr.bf16.mxu0 0
    %1314 = vmatpush1.bf16.msra.mxu0 0
    %1315 = vmatprep.subr.bf16.mxu0 0
    %1316 = vmatpush1.bf16.msra.mxu0 0
    %1317 = vmatprep.subr.bf16.mxu0 0
    %1318 = vmatpush1.bf16.msra.mxu0 0
    %1319 = vmatprep.mubr.bf16.mxu0 0
    %1320 = vmatmul.mubr.bf16.gmra.mrb[0].mxu0 %v1285
    %v1321 = vpop.f32.mrb[0].mxu0
    %v1322 = vadd.f32 0.0, %v1321
    %v1323 = vpop.f32.mrb[0].mxu0
    %v1324 = vpop.f32.mrb[0].mxu0
    %v1325 = vadd.f32 0.0, %v1324
    %v1326 = vpop.f32.mrb[0].mxu0
    %1327 = vdwg.mxu0
    %v1328 = vadd.f32 %v1210, %v1322
    %v1329 = vadd.f32 %v1211, %v1325
    %v1330 = vld [vmem:[%s10] sm:$0x1]
    %v1331 = vlaneseq
    %v1332 = vshrl.u32 %v1331, 7
    %v1333 = vsub.s32 0, %v1332
    %v1334 = vrot.slane %v1330, %v1333
    %v1335 = vadd.f32 %v1328, %v1334
    %v1336 = vadd.f32 %v1329, %v1334
    %v1337 = vsel %vm149, %v1335, 0.0
    %v1338 = vsel %vm149, %v1336, 0.0
    %v1339 = vadd.f32 %v1337, %v1338
    %v1340 = vrot.slane %v1339, 4
    %v1341 = vadd.f32 %v1339, %v1340
    %v1342 = vrot.slane %v1341, 2
    %v1343 = vadd.f32 %v1341, %v1342
    %v1344 = vrot.slane %v1343, 1
    %v1345 = vadd.f32 %v1343, %v1344
    %v1346 = vmul.f32 %v1345, %v1178
    %v1347 = vsub.f32 %v1335, %v1346
    %v1348 = vsub.f32 %v1336, %v1346
    %v1349 = vmul.f32 %v1347, %v1347
    %v1350 = vmul.f32 %v1348, %v1348
    %v1351 = vsel %vm149, %v1349, 0.0
    %v1352 = vsel %vm149, %v1350, 0.0
    %v1353 = vadd.f32 %v1351, %v1352
    %v1354 = vrot.slane %v1353, 4
    %v1355 = vadd.f32 %v1353, %v1354
    %v1356 = vrot.slane %v1355, 2
    %v1357 = vadd.f32 %v1355, %v1356
    %v1358 = vrot.slane %v1357, 1
    %v1359 = vadd.f32 %v1357, %v1358
    %v1360 = vmul.f32 %v1359, %v1178
    %v1361 = vadd.f32 %v1360, 1e-05
    %v1362 = vrsqrt.pop %v1361
    %v1363 = vmul.f32 %v1347, %v1362
    %v1364 = vmul.f32 %v1348, %v1362
    %v1365 = vld [vmem:[%s11] sm:$0x1]
    %v1366 = vlaneseq
    %v1367 = vshrl.u32 %v1366, 7
    %v1368 = vsub.s32 0, %v1367
    %v1369 = vrot.slane %v1365, %v1368
    %v1370 = vmul.f32 %v1363, %v1369
    %v1371 = vmul.f32 %v1364, %v1369
    %v1372 = vld [vmem:[%s12] sm:$0x1]
    %v1373 = vlaneseq
    %v1374 = vshrl.u32 %v1373, 7
    %v1375 = vsub.s32 0, %v1374
    %v1376 = vrot.slane %v1372, %v1375
    %v1377 = vadd.f32 %v1370, %v1376
    %v1378 = vadd.f32 %v1371, %v1376
    %v1379 = vpack.c.bf16 %v1378, %v1377
    %s1380 = scalar_lea.vmem %s3, 32
    %v1381 = vld [vmem:[%s1380] sm:$0xff]
    %v1382 = vld [vmem:[%s1380 + $0x8] sm:$0xff]
    %v1383 = vld [vmem:[%s1380 + $0x10] sm:$0xff]
    %v1384 = vld [vmem:[%s1380 + $0x18] sm:$0xff]
    %v1385 = vpack.c.bf16 %v1382, %v1381
    %v1386 = vpack.c.bf16 %v1384, %v1383
    %v1388 = vsel %vm149, %v1379, 0
    %1390 = vmatprep.subr.bf16.mxu0 0
    %1391 = vmatpush1.bf16.msra.mxu0 %v1385
    %1392 = vmatprep.subr.bf16.mxu0 0
    %1393 = vmatpush1.bf16.msra.mxu0 %v1386
    %1394 = vmatprep.subr.bf16.mxu0 0
    %1395 = vmatpush1.bf16.msra.mxu0 0
    %1396 = vmatprep.subr.bf16.mxu0 0
    %1397 = vmatpush1.bf16.msra.mxu0 0
    %1398 = vmatprep.subr.bf16.mxu0 0
    %1399 = vmatpush1.bf16.msra.mxu0 0
    %1400 = vmatprep.subr.bf16.mxu0 0
    %1401 = vmatpush1.bf16.msra.mxu0 0
    %1402 = vmatprep.subr.bf16.mxu0 0
    %1403 = vmatpush1.bf16.msra.mxu0 0
    %1404 = vmatprep.subr.bf16.mxu0 0
    %1405 = vmatpush1.bf16.msra.mxu0 0
    %1406 = vmatprep.subr.bf16.mxu0 0
    %1407 = vmatpush1.bf16.msra.mxu0 0
    %1408 = vmatprep.subr.bf16.mxu0 0
    %1409 = vmatpush1.bf16.msra.mxu0 0
    %1410 = vmatprep.subr.bf16.mxu0 0
    %1411 = vmatpush1.bf16.msra.mxu0 0
    %1412 = vmatprep.subr.bf16.mxu0 0
    %1413 = vmatpush1.bf16.msra.mxu0 0
    %1414 = vmatprep.subr.bf16.mxu0 0
    %1415 = vmatpush1.bf16.msra.mxu0 0
    %1416 = vmatprep.subr.bf16.mxu0 0
    %1417 = vmatpush1.bf16.msra.mxu0 0
    %1418 = vmatprep.subr.bf16.mxu0 0
    %1419 = vmatpush1.bf16.msra.mxu0 0
    %1420 = vmatprep.subr.bf16.mxu0 0
    %1421 = vmatpush1.bf16.msra.mxu0 0
    %1422 = vmatprep.mubr.bf16.mxu0 0
    %1423 = vmatmul.mubr.bf16.gmra.mrb[0].mxu0 %v1388
    %v1424 = vpop.f32.mrb[0].mxu0
    %v1425 = vadd.f32 0.0, %v1424
    %v1426 = vpop.f32.mrb[0].mxu0
    %v1427 = vpop.f32.mrb[0].mxu0
    %v1428 = vadd.f32 0.0, %v1427
    %v1429 = vpop.f32.mrb[0].mxu0
    %1430 = vdwg.mxu0
    %v1431 = vpack.c.bf16 %v1425, %v1425
    %v1432 = vpack.c.bf16 %v1428, %v1428
    %1434 = vrot.lane.b32.xlu0 %v1431, 96
    %v1435 = vpop.permute.xlu0 %1434
    %v1437 = vsel %vm199, %v1431, 0
    %v1440 = vsel %vm199, %v1435, 0
    %1442 = vmatprep.subr.bf16.mxu0 0
    %1443 = vmatpush1.bf16.xpose.msra.mxu0 %v1440
    %1444 = vmatprep.subr.bf16.mxu0 0
    %1445 = vmatpush1.bf16.xpose.msra.mxu0 0
    %1446 = vmatprep.subr.bf16.mxu0 0
    %1447 = vmatpush1.bf16.xpose.msra.mxu0 0
    %1448 = vmatprep.subr.bf16.mxu0 0
    %1449 = vmatpush1.bf16.xpose.msra.mxu0 0
    %1450 = vmatprep.subr.bf16.mxu0 0
    %1451 = vmatpush1.bf16.xpose.msra.mxu0 0
    %1452 = vmatprep.subr.bf16.mxu0 0
    %1453 = vmatpush1.bf16.xpose.msra.mxu0 0
    %1454 = vmatprep.subr.bf16.mxu0 0
    %1455 = vmatpush1.bf16.xpose.msra.mxu0 0
    %1456 = vmatprep.subr.bf16.mxu0 0
    %1457 = vmatpush1.bf16.xpose.msra.mxu0 0
    %1458 = vmatprep.subr.bf16.mxu0 0
    %1459 = vmatpush1.bf16.xpose.msra.mxu0 0
    %1460 = vmatprep.subr.bf16.mxu0 0
    %1461 = vmatpush1.bf16.xpose.msra.mxu0 0
    %1462 = vmatprep.subr.bf16.mxu0 0
    %1463 = vmatpush1.bf16.xpose.msra.mxu0 0
    %1464 = vmatprep.subr.bf16.mxu0 0
    %1465 = vmatpush1.bf16.xpose.msra.mxu0 0
    %1466 = vmatprep.subr.bf16.mxu0 0
    %1467 = vmatpush1.bf16.xpose.msra.mxu0 0
    %1468 = vmatprep.subr.bf16.mxu0 0
    %1469 = vmatpush1.bf16.xpose.msra.mxu0 0
    %1470 = vmatprep.subr.bf16.mxu0 0
    %1471 = vmatpush1.bf16.xpose.msra.mxu0 0
    %1472 = vmatprep.subr.bf16.mxu0 0
    %1473 = vmatpush1.bf16.xpose.msra.mxu0 0
    %1474 = vmatprep.mubr.bf16.mxu0 0
    %1475 = vmatmul.mubr.bf16.gmra.mrb[0].mxu0 %v1437
    %v1476 = vpop.f32.mrb[0].mxu0
    %v1477 = vadd.f32 0.0, %v1476
    %v1478 = vpop.f32.mrb[0].mxu0
    %v1479 = vpop.f32.mrb[0].mxu0
    %v1480 = vpop.f32.mrb[0].mxu0
    %1481 = vdwg.mxu0
    %1483 = vrot.lane.b32.xlu0 %v1432, 96
    %v1484 = vpop.permute.xlu0 %1483
    %v1486 = vsel %vm199, %v1432, 0
    %v1489 = vsel %vm199, %v1484, 0
    %1491 = vmatprep.subr.bf16.mxu0 0
    %1492 = vmatpush1.bf16.xpose.msra.mxu0 %v1489
    %1493 = vmatprep.subr.bf16.mxu0 0
    %1494 = vmatpush1.bf16.xpose.msra.mxu0 0
    %1495 = vmatprep.subr.bf16.mxu0 0
    %1496 = vmatpush1.bf16.xpose.msra.mxu0 0
    %1497 = vmatprep.subr.bf16.mxu0 0
    %1498 = vmatpush1.bf16.xpose.msra.mxu0 0
    %1499 = vmatprep.subr.bf16.mxu0 0
    %1500 = vmatpush1.bf16.xpose.msra.mxu0 0
    %1501 = vmatprep.subr.bf16.mxu0 0
    %1502 = vmatpush1.bf16.xpose.msra.mxu0 0
    %1503 = vmatprep.subr.bf16.mxu0 0
    %1504 = vmatpush1.bf16.xpose.msra.mxu0 0
    %1505 = vmatprep.subr.bf16.mxu0 0
    %1506 = vmatpush1.bf16.xpose.msra.mxu0 0
    %1507 = vmatprep.subr.bf16.mxu0 0
    %1508 = vmatpush1.bf16.xpose.msra.mxu0 0
    %1509 = vmatprep.subr.bf16.mxu0 0
    %1510 = vmatpush1.bf16.xpose.msra.mxu0 0
    %1511 = vmatprep.subr.bf16.mxu0 0
    %1512 = vmatpush1.bf16.xpose.msra.mxu0 0
    %1513 = vmatprep.subr.bf16.mxu0 0
    %1514 = vmatpush1.bf16.xpose.msra.mxu0 0
    %1515 = vmatprep.subr.bf16.mxu0 0
    %1516 = vmatpush1.bf16.xpose.msra.mxu0 0
    %1517 = vmatprep.subr.bf16.mxu0 0
    %1518 = vmatpush1.bf16.xpose.msra.mxu0 0
    %1519 = vmatprep.subr.bf16.mxu0 0
    %1520 = vmatpush1.bf16.xpose.msra.mxu0 0
    %1521 = vmatprep.subr.bf16.mxu0 0
    %1522 = vmatpush1.bf16.xpose.msra.mxu0 0
    %1523 = vmatprep.mubr.bf16.mxu0 0
    %1524 = vmatmul.mubr.bf16.gmra.mrb[0].mxu0 %v1486
    %v1525 = vpop.f32.mrb[0].mxu0
    %v1526 = vadd.f32 0.0, %v1525
    %v1527 = vpop.f32.mrb[0].mxu0
    %v1528 = vpop.f32.mrb[0].mxu0
    %v1529 = vpop.f32.mrb[0].mxu0
    %1530 = vdwg.mxu0
    %v1531 = vmul.f32 %v1477, 0.35355338
    %v1532 = vmul.f32 %v1526, 0.35355338
    %v1533 = vsel %vm199, %v1531, -inf
    %1534 = vmax.xlane.f32.xlu0 %v1533
    %v1535 = vpop.xlane.xlu0 %1534
    %v1536 = vsel %vm199, %v1532, -inf
    %1537 = vmax.xlane.f32.xlu0 %v1536
    %v1538 = vpop.xlane.xlu0 %1537
    %v1539 = vsub.f32 %v1531, %v1535
    %v1540 = vsub.f32 %v1532, %v1538
    %v1541 = vmul.f32 %v1539, 1.442695
    %v1542 = vpow.pop %v1541
    %v1543 = vmul.f32 %v1540, 1.442695
    %v1544 = vpow.pop %v1543
    %v1545 = vsel %vm199, %v1542, 0.0
    %1546 = vadd.xlane.f32.xlu0 %v1545
    %v1547 = vpop.xlane.xlu0 %1546
    %v1548 = vsel %vm199, %v1544, 0.0
    %1549 = vadd.xlane.f32.xlu0 %v1548
    %v1550 = vpop.xlane.xlu0 %1549
    %v1551 = vrcp.pop %v1547
    %v1552 = vrcp.pop %v1550
    %v1553 = vmul.f32 %v1542, %v1551
    %v1554 = vmul.f32 %v1544, %v1552
    %v1555 = vpack.c.bf16 %v1553, %v1553
    %v1556 = vpack.c.bf16 %v1554, %v1554
    %1557 = vrot.lane.b32.xlu0 %v1431, 64
    %v1558 = vpop.permute.xlu0 %1557
    %v1560 = vsel %vm199, %v1555, 0
    %v1563 = vsel %vm326, %v1558, 0
    %1565 = vmatprep.subr.bf16.mxu0 0
    %1566 = vmatpush1.bf16.msra.mxu0 %v1563
    %1567 = vmatprep.subr.bf16.mxu0 0
    %1568 = vmatpush1.bf16.msra.mxu0 0
    %1569 = vmatprep.subr.bf16.mxu0 0
    %1570 = vmatpush1.bf16.msra.mxu0 0
    %1571 = vmatprep.subr.bf16.mxu0 0
    %1572 = vmatpush1.bf16.msra.mxu0 0
    %1573 = vmatprep.subr.bf16.mxu0 0
    %1574 = vmatpush1.bf16.msra.mxu0 0
    %1575 = vmatprep.subr.bf16.mxu0 0
    %1576 = vmatpush1.bf16.msra.mxu0 0
    %1577 = vmatprep.subr.bf16.mxu0 0
    %1578 = vmatpush1.bf16.msra.mxu0 0
    %1579 = vmatprep.subr.bf16.mxu0 0
    %1580 = vmatpush1.bf16.msra.mxu0 0
    %1581 = vmatprep.subr.bf16.mxu0 0
    %1582 = vmatpush1.bf16.msra.mxu0 0
    %1583 = vmatprep.subr.bf16.mxu0 0
    %1584 = vmatpush1.bf16.msra.mxu0 0
    %1585 = vmatprep.subr.bf16.mxu0 0
    %1586 = vmatpush1.bf16.msra.mxu0 0
    %1587 = vmatprep.subr.bf16.mxu0 0
    %1588 = vmatpush1.bf16.msra.mxu0 0
    %1589 = vmatprep.subr.bf16.mxu0 0
    %1590 = vmatpush1.bf16.msra.mxu0 0
    %1591 = vmatprep.subr.bf16.mxu0 0
    %1592 = vmatpush1.bf16.msra.mxu0 0
    %1593 = vmatprep.subr.bf16.mxu0 0
    %1594 = vmatpush1.bf16.msra.mxu0 0
    %1595 = vmatprep.subr.bf16.mxu0 0
    %1596 = vmatpush1.bf16.msra.mxu0 0
    %1597 = vmatprep.mubr.bf16.mxu0 0
    %1598 = vmatmul.mubr.bf16.gmra.mrb[0].mxu0 %v1560
    %v1599 = vpop.f32.mrb[0].mxu0
    %v1600 = vadd.f32 0.0, %v1599
    %v1601 = vpop.f32.mrb[0].mxu0
    %v1602 = vpop.f32.mrb[0].mxu0
    %v1603 = vpop.f32.mrb[0].mxu0
    %1604 = vdwg.mxu0
    %1605 = vrot.lane.b32.xlu0 %v1432, 64
    %v1606 = vpop.permute.xlu0 %1605
    %v1608 = vsel %vm199, %v1556, 0
    %v1611 = vsel %vm326, %v1606, 0
    %1613 = vmatprep.subr.bf16.mxu0 0
    %1614 = vmatpush1.bf16.msra.mxu0 %v1611
    %1615 = vmatprep.subr.bf16.mxu0 0
    %1616 = vmatpush1.bf16.msra.mxu0 0
    %1617 = vmatprep.subr.bf16.mxu0 0
    %1618 = vmatpush1.bf16.msra.mxu0 0
    %1619 = vmatprep.subr.bf16.mxu0 0
    %1620 = vmatpush1.bf16.msra.mxu0 0
    %1621 = vmatprep.subr.bf16.mxu0 0
    %1622 = vmatpush1.bf16.msra.mxu0 0
    %1623 = vmatprep.subr.bf16.mxu0 0
    %1624 = vmatpush1.bf16.msra.mxu0 0
    %1625 = vmatprep.subr.bf16.mxu0 0
    %1626 = vmatpush1.bf16.msra.mxu0 0
    %1627 = vmatprep.subr.bf16.mxu0 0
    %1628 = vmatpush1.bf16.msra.mxu0 0
    %1629 = vmatprep.subr.bf16.mxu0 0
    %1630 = vmatpush1.bf16.msra.mxu0 0
    %1631 = vmatprep.subr.bf16.mxu0 0
    %1632 = vmatpush1.bf16.msra.mxu0 0
    %1633 = vmatprep.subr.bf16.mxu0 0
    %1634 = vmatpush1.bf16.msra.mxu0 0
    %1635 = vmatprep.subr.bf16.mxu0 0
    %1636 = vmatpush1.bf16.msra.mxu0 0
    %1637 = vmatprep.subr.bf16.mxu0 0
    %1638 = vmatpush1.bf16.msra.mxu0 0
    %1639 = vmatprep.subr.bf16.mxu0 0
    %1640 = vmatpush1.bf16.msra.mxu0 0
    %1641 = vmatprep.subr.bf16.mxu0 0
    %1642 = vmatpush1.bf16.msra.mxu0 0
    %1643 = vmatprep.subr.bf16.mxu0 0
    %1644 = vmatpush1.bf16.msra.mxu0 0
    %1645 = vmatprep.mubr.bf16.mxu0 0
    %1646 = vmatmul.mubr.bf16.gmra.mrb[0].mxu0 %v1608
    %v1647 = vpop.f32.mrb[0].mxu0
    %v1648 = vadd.f32 0.0, %v1647
    %v1649 = vpop.f32.mrb[0].mxu0
    %v1650 = vpop.f32.mrb[0].mxu0
    %v1651 = vpop.f32.mrb[0].mxu0
    %1652 = vdwg.mxu0
    %1653 = vrot.lane.b32.xlu0 %v1431, 120
    %v1654 = vpop.permute.xlu0 %1653
    %1655 = vrot.lane.b32.xlu0 %v1431, 88
    %v1656 = vpop.permute.xlu0 %1655
    %v1658 = vsel %vm199, %v1654, 0
    %v1661 = vsel %vm199, %v1656, 0
    %1663 = vmatprep.subr.bf16.mxu0 0
    %1664 = vmatpush1.bf16.xpose.msra.mxu0 %v1661
    %1665 = vmatprep.subr.bf16.mxu0 0
    %1666 = vmatpush1.bf16.xpose.msra.mxu0 0
    %1667 = vmatprep.subr.bf16.mxu0 0
    %1668 = vmatpush1.bf16.xpose.msra.mxu0 0
    %1669 = vmatprep.subr.bf16.mxu0 0
    %1670 = vmatpush1.bf16.xpose.msra.mxu0 0
    %1671 = vmatprep.subr.bf16.mxu0 0
    %1672 = vmatpush1.bf16.xpose.msra.mxu0 0
    %1673 = vmatprep.subr.bf16.mxu0 0
    %1674 = vmatpush1.bf16.xpose.msra.mxu0 0
    %1675 = vmatprep.subr.bf16.mxu0 0
    %1676 = vmatpush1.bf16.xpose.msra.mxu0 0
    %1677 = vmatprep.subr.bf16.mxu0 0
    %1678 = vmatpush1.bf16.xpose.msra.mxu0 0
    %1679 = vmatprep.subr.bf16.mxu0 0
    %1680 = vmatpush1.bf16.xpose.msra.mxu0 0
    %1681 = vmatprep.subr.bf16.mxu0 0
    %1682 = vmatpush1.bf16.xpose.msra.mxu0 0
    %1683 = vmatprep.subr.bf16.mxu0 0
    %1684 = vmatpush1.bf16.xpose.msra.mxu0 0
    %1685 = vmatprep.subr.bf16.mxu0 0
    %1686 = vmatpush1.bf16.xpose.msra.mxu0 0
    %1687 = vmatprep.subr.bf16.mxu0 0
    %1688 = vmatpush1.bf16.xpose.msra.mxu0 0
    %1689 = vmatprep.subr.bf16.mxu0 0
    %1690 = vmatpush1.bf16.xpose.msra.mxu0 0
    %1691 = vmatprep.subr.bf16.mxu0 0
    %1692 = vmatpush1.bf16.xpose.msra.mxu0 0
    %1693 = vmatprep.subr.bf16.mxu0 0
    %1694 = vmatpush1.bf16.xpose.msra.mxu0 0
    %1695 = vmatprep.mubr.bf16.mxu0 0
    %1696 = vmatmul.mubr.bf16.gmra.mrb[0].mxu0 %v1658
    %v1697 = vpop.f32.mrb[0].mxu0
    %v1698 = vadd.f32 0.0, %v1697
    %v1699 = vpop.f32.mrb[0].mxu0
    %v1700 = vpop.f32.mrb[0].mxu0
    %v1701 = vpop.f32.mrb[0].mxu0
    %1702 = vdwg.mxu0
    %1703 = vrot.lane.b32.xlu0 %v1432, 120
    %v1704 = vpop.permute.xlu0 %1703
    %1705 = vrot.lane.b32.xlu0 %v1432, 88
    %v1706 = vpop.permute.xlu0 %1705
    %v1708 = vsel %vm199, %v1704, 0
    %v1711 = vsel %vm199, %v1706, 0
    %1713 = vmatprep.subr.bf16.mxu0 0
    %1714 = vmatpush1.bf16.xpose.msra.mxu0 %v1711
    %1715 = vmatprep.subr.bf16.mxu0 0
    %1716 = vmatpush1.bf16.xpose.msra.mxu0 0
    %1717 = vmatprep.subr.bf16.mxu0 0
    %1718 = vmatpush1.bf16.xpose.msra.mxu0 0
    %1719 = vmatprep.subr.bf16.mxu0 0
    %1720 = vmatpush1.bf16.xpose.msra.mxu0 0
    %1721 = vmatprep.subr.bf16.mxu0 0
    %1722 = vmatpush1.bf16.xpose.msra.mxu0 0
    %1723 = vmatprep.subr.bf16.mxu0 0
    %1724 = vmatpush1.bf16.xpose.msra.mxu0 0
    %1725 = vmatprep.subr.bf16.mxu0 0
    %1726 = vmatpush1.bf16.xpose.msra.mxu0 0
    %1727 = vmatprep.subr.bf16.mxu0 0
    %1728 = vmatpush1.bf16.xpose.msra.mxu0 0
    %1729 = vmatprep.subr.bf16.mxu0 0
    %1730 = vmatpush1.bf16.xpose.msra.mxu0 0
    %1731 = vmatprep.subr.bf16.mxu0 0
    %1732 = vmatpush1.bf16.xpose.msra.mxu0 0
    %1733 = vmatprep.subr.bf16.mxu0 0
    %1734 = vmatpush1.bf16.xpose.msra.mxu0 0
    %1735 = vmatprep.subr.bf16.mxu0 0
    %1736 = vmatpush1.bf16.xpose.msra.mxu0 0
    %1737 = vmatprep.subr.bf16.mxu0 0
    %1738 = vmatpush1.bf16.xpose.msra.mxu0 0
    %1739 = vmatprep.subr.bf16.mxu0 0
    %1740 = vmatpush1.bf16.xpose.msra.mxu0 0
    %1741 = vmatprep.subr.bf16.mxu0 0
    %1742 = vmatpush1.bf16.xpose.msra.mxu0 0
    %1743 = vmatprep.subr.bf16.mxu0 0
    %1744 = vmatpush1.bf16.xpose.msra.mxu0 0
    %1745 = vmatprep.mubr.bf16.mxu0 0
    %1746 = vmatmul.mubr.bf16.gmra.mrb[0].mxu0 %v1708
    %v1747 = vpop.f32.mrb[0].mxu0
    %v1748 = vadd.f32 0.0, %v1747
    %v1749 = vpop.f32.mrb[0].mxu0
    %v1750 = vpop.f32.mrb[0].mxu0
    %v1751 = vpop.f32.mrb[0].mxu0
    %1752 = vdwg.mxu0
    %v1753 = vmul.f32 %v1698, 0.35355338
    %v1754 = vmul.f32 %v1748, 0.35355338
    %v1755 = vsel %vm199, %v1753, -inf
    %1756 = vmax.xlane.f32.xlu0 %v1755
    %v1757 = vpop.xlane.xlu0 %1756
    %v1758 = vsel %vm199, %v1754, -inf
    %1759 = vmax.xlane.f32.xlu0 %v1758
    %v1760 = vpop.xlane.xlu0 %1759
    %v1761 = vsub.f32 %v1753, %v1757
    %v1762 = vsub.f32 %v1754, %v1760
    %v1763 = vmul.f32 %v1761, 1.442695
    %v1764 = vpow.pop %v1763
    %v1765 = vmul.f32 %v1762, 1.442695
    %v1766 = vpow.pop %v1765
    %v1767 = vsel %vm199, %v1764, 0.0
    %1768 = vadd.xlane.f32.xlu0 %v1767
    %v1769 = vpop.xlane.xlu0 %1768
    %v1770 = vsel %vm199, %v1766, 0.0
    %1771 = vadd.xlane.f32.xlu0 %v1770
    %v1772 = vpop.xlane.xlu0 %1771
    %v1773 = vrcp.pop %v1769
    %v1774 = vrcp.pop %v1772
    %v1775 = vmul.f32 %v1764, %v1773
    %v1776 = vmul.f32 %v1766, %v1774
    %v1777 = vpack.c.bf16 %v1775, %v1775
    %v1778 = vpack.c.bf16 %v1776, %v1776
    %1779 = vrot.lane.b32.xlu0 %v1431, 56
    %v1780 = vpop.permute.xlu0 %1779
    %v1782 = vsel %vm199, %v1777, 0
    %v1785 = vsel %vm326, %v1780, 0
    %1787 = vmatprep.subr.bf16.mxu0 0
    %1788 = vmatpush1.bf16.msra.mxu0 %v1785
    %1789 = vmatprep.subr.bf16.mxu0 0
    %1790 = vmatpush1.bf16.msra.mxu0 0
    %1791 = vmatprep.subr.bf16.mxu0 0
    %1792 = vmatpush1.bf16.msra.mxu0 0
    %1793 = vmatprep.subr.bf16.mxu0 0
    %1794 = vmatpush1.bf16.msra.mxu0 0
    %1795 = vmatprep.subr.bf16.mxu0 0
    %1796 = vmatpush1.bf16.msra.mxu0 0
    %1797 = vmatprep.subr.bf16.mxu0 0
    %1798 = vmatpush1.bf16.msra.mxu0 0
    %1799 = vmatprep.subr.bf16.mxu0 0
    %1800 = vmatpush1.bf16.msra.mxu0 0
    %1801 = vmatprep.subr.bf16.mxu0 0
    %1802 = vmatpush1.bf16.msra.mxu0 0
    %1803 = vmatprep.subr.bf16.mxu0 0
    %1804 = vmatpush1.bf16.msra.mxu0 0
    %1805 = vmatprep.subr.bf16.mxu0 0
    %1806 = vmatpush1.bf16.msra.mxu0 0
    %1807 = vmatprep.subr.bf16.mxu0 0
    %1808 = vmatpush1.bf16.msra.mxu0 0
    %1809 = vmatprep.subr.bf16.mxu0 0
    %1810 = vmatpush1.bf16.msra.mxu0 0
    %1811 = vmatprep.subr.bf16.mxu0 0
    %1812 = vmatpush1.bf16.msra.mxu0 0
    %1813 = vmatprep.subr.bf16.mxu0 0
    %1814 = vmatpush1.bf16.msra.mxu0 0
    %1815 = vmatprep.subr.bf16.mxu0 0
    %1816 = vmatpush1.bf16.msra.mxu0 0
    %1817 = vmatprep.subr.bf16.mxu0 0
    %1818 = vmatpush1.bf16.msra.mxu0 0
    %1819 = vmatprep.mubr.bf16.mxu0 0
    %1820 = vmatmul.mubr.bf16.gmra.mrb[0].mxu0 %v1782
    %v1821 = vpop.f32.mrb[0].mxu0
    %v1822 = vadd.f32 0.0, %v1821
    %v1823 = vpop.f32.mrb[0].mxu0
    %v1824 = vpop.f32.mrb[0].mxu0
    %v1825 = vpop.f32.mrb[0].mxu0
    %1826 = vdwg.mxu0
    %1827 = vrot.lane.b32.xlu0 %v1432, 56
    %v1828 = vpop.permute.xlu0 %1827
    %v1830 = vsel %vm199, %v1778, 0
    %v1833 = vsel %vm326, %v1828, 0
    %1835 = vmatprep.subr.bf16.mxu0 0
    %1836 = vmatpush1.bf16.msra.mxu0 %v1833
    %1837 = vmatprep.subr.bf16.mxu0 0
    %1838 = vmatpush1.bf16.msra.mxu0 0
    %1839 = vmatprep.subr.bf16.mxu0 0
    %1840 = vmatpush1.bf16.msra.mxu0 0
    %1841 = vmatprep.subr.bf16.mxu0 0
    %1842 = vmatpush1.bf16.msra.mxu0 0
    %1843 = vmatprep.subr.bf16.mxu0 0
    %1844 = vmatpush1.bf16.msra.mxu0 0
    %1845 = vmatprep.subr.bf16.mxu0 0
    %1846 = vmatpush1.bf16.msra.mxu0 0
    %1847 = vmatprep.subr.bf16.mxu0 0
    %1848 = vmatpush1.bf16.msra.mxu0 0
    %1849 = vmatprep.subr.bf16.mxu0 0
    %1850 = vmatpush1.bf16.msra.mxu0 0
    %1851 = vmatprep.subr.bf16.mxu0 0
    %1852 = vmatpush1.bf16.msra.mxu0 0
    %1853 = vmatprep.subr.bf16.mxu0 0
    %1854 = vmatpush1.bf16.msra.mxu0 0
    %1855 = vmatprep.subr.bf16.mxu0 0
    %1856 = vmatpush1.bf16.msra.mxu0 0
    %1857 = vmatprep.subr.bf16.mxu0 0
    %1858 = vmatpush1.bf16.msra.mxu0 0
    %1859 = vmatprep.subr.bf16.mxu0 0
    %1860 = vmatpush1.bf16.msra.mxu0 0
    %1861 = vmatprep.subr.bf16.mxu0 0
    %1862 = vmatpush1.bf16.msra.mxu0 0
    %1863 = vmatprep.subr.bf16.mxu0 0
    %1864 = vmatpush1.bf16.msra.mxu0 0
    %1865 = vmatprep.subr.bf16.mxu0 0
    %1866 = vmatpush1.bf16.msra.mxu0 0
    %1867 = vmatprep.mubr.bf16.mxu0 0
    %1868 = vmatmul.mubr.bf16.gmra.mrb[0].mxu0 %v1830
    %v1869 = vpop.f32.mrb[0].mxu0
    %v1870 = vadd.f32 0.0, %v1869
    %v1871 = vpop.f32.mrb[0].mxu0
    %v1872 = vpop.f32.mrb[0].mxu0
    %v1873 = vpop.f32.mrb[0].mxu0
    %1874 = vdwg.mxu0
    %1875 = vrot.lane.b32.xlu0 %v1431, 112
    %v1876 = vpop.permute.xlu0 %1875
    %1877 = vrot.lane.b32.xlu0 %v1431, 80
    %v1878 = vpop.permute.xlu0 %1877
    %v1880 = vsel %vm199, %v1876, 0
    %v1883 = vsel %vm199, %v1878, 0
    %1885 = vmatprep.subr.bf16.mxu0 0
    %1886 = vmatpush1.bf16.xpose.msra.mxu0 %v1883
    %1887 = vmatprep.subr.bf16.mxu0 0
    %1888 = vmatpush1.bf16.xpose.msra.mxu0 0
    %1889 = vmatprep.subr.bf16.mxu0 0
    %1890 = vmatpush1.bf16.xpose.msra.mxu0 0
    %1891 = vmatprep.subr.bf16.mxu0 0
    %1892 = vmatpush1.bf16.xpose.msra.mxu0 0
    %1893 = vmatprep.subr.bf16.mxu0 0
    %1894 = vmatpush1.bf16.xpose.msra.mxu0 0
    %1895 = vmatprep.subr.bf16.mxu0 0
    %1896 = vmatpush1.bf16.xpose.msra.mxu0 0
    %1897 = vmatprep.subr.bf16.mxu0 0
    %1898 = vmatpush1.bf16.xpose.msra.mxu0 0
    %1899 = vmatprep.subr.bf16.mxu0 0
    %1900 = vmatpush1.bf16.xpose.msra.mxu0 0
    %1901 = vmatprep.subr.bf16.mxu0 0
    %1902 = vmatpush1.bf16.xpose.msra.mxu0 0
    %1903 = vmatprep.subr.bf16.mxu0 0
    %1904 = vmatpush1.bf16.xpose.msra.mxu0 0
    %1905 = vmatprep.subr.bf16.mxu0 0
    %1906 = vmatpush1.bf16.xpose.msra.mxu0 0
    %1907 = vmatprep.subr.bf16.mxu0 0
    %1908 = vmatpush1.bf16.xpose.msra.mxu0 0
    %1909 = vmatprep.subr.bf16.mxu0 0
    %1910 = vmatpush1.bf16.xpose.msra.mxu0 0
    %1911 = vmatprep.subr.bf16.mxu0 0
    %1912 = vmatpush1.bf16.xpose.msra.mxu0 0
    %1913 = vmatprep.subr.bf16.mxu0 0
    %1914 = vmatpush1.bf16.xpose.msra.mxu0 0
    %1915 = vmatprep.subr.bf16.mxu0 0
    %1916 = vmatpush1.bf16.xpose.msra.mxu0 0
    %1917 = vmatprep.mubr.bf16.mxu0 0
    %1918 = vmatmul.mubr.bf16.gmra.mrb[0].mxu0 %v1880
    %v1919 = vpop.f32.mrb[0].mxu0
    %v1920 = vadd.f32 0.0, %v1919
    %v1921 = vpop.f32.mrb[0].mxu0
    %v1922 = vpop.f32.mrb[0].mxu0
    %v1923 = vpop.f32.mrb[0].mxu0
    %1924 = vdwg.mxu0
    %1925 = vrot.lane.b32.xlu0 %v1432, 112
    %v1926 = vpop.permute.xlu0 %1925
    %1927 = vrot.lane.b32.xlu0 %v1432, 80
    %v1928 = vpop.permute.xlu0 %1927
    %v1930 = vsel %vm199, %v1926, 0
    %v1933 = vsel %vm199, %v1928, 0
    %1935 = vmatprep.subr.bf16.mxu0 0
    %1936 = vmatpush1.bf16.xpose.msra.mxu0 %v1933
    %1937 = vmatprep.subr.bf16.mxu0 0
    %1938 = vmatpush1.bf16.xpose.msra.mxu0 0
    %1939 = vmatprep.subr.bf16.mxu0 0
    %1940 = vmatpush1.bf16.xpose.msra.mxu0 0
    %1941 = vmatprep.subr.bf16.mxu0 0
    %1942 = vmatpush1.bf16.xpose.msra.mxu0 0
    %1943 = vmatprep.subr.bf16.mxu0 0
    %1944 = vmatpush1.bf16.xpose.msra.mxu0 0
    %1945 = vmatprep.subr.bf16.mxu0 0
    %1946 = vmatpush1.bf16.xpose.msra.mxu0 0
    %1947 = vmatprep.subr.bf16.mxu0 0
    %1948 = vmatpush1.bf16.xpose.msra.mxu0 0
    %1949 = vmatprep.subr.bf16.mxu0 0
    %1950 = vmatpush1.bf16.xpose.msra.mxu0 0
    %1951 = vmatprep.subr.bf16.mxu0 0
    %1952 = vmatpush1.bf16.xpose.msra.mxu0 0
    %1953 = vmatprep.subr.bf16.mxu0 0
    %1954 = vmatpush1.bf16.xpose.msra.mxu0 0
    %1955 = vmatprep.subr.bf16.mxu0 0
    %1956 = vmatpush1.bf16.xpose.msra.mxu0 0
    %1957 = vmatprep.subr.bf16.mxu0 0
    %1958 = vmatpush1.bf16.xpose.msra.mxu0 0
    %1959 = vmatprep.subr.bf16.mxu0 0
    %1960 = vmatpush1.bf16.xpose.msra.mxu0 0
    %1961 = vmatprep.subr.bf16.mxu0 0
    %1962 = vmatpush1.bf16.xpose.msra.mxu0 0
    %1963 = vmatprep.subr.bf16.mxu0 0
    %1964 = vmatpush1.bf16.xpose.msra.mxu0 0
    %1965 = vmatprep.subr.bf16.mxu0 0
    %1966 = vmatpush1.bf16.xpose.msra.mxu0 0
    %1967 = vmatprep.mubr.bf16.mxu0 0
    %1968 = vmatmul.mubr.bf16.gmra.mrb[0].mxu0 %v1930
    %v1969 = vpop.f32.mrb[0].mxu0
    %v1970 = vadd.f32 0.0, %v1969
    %v1971 = vpop.f32.mrb[0].mxu0
    %v1972 = vpop.f32.mrb[0].mxu0
    %v1973 = vpop.f32.mrb[0].mxu0
    %1974 = vdwg.mxu0
    %v1975 = vmul.f32 %v1920, 0.35355338
    %v1976 = vmul.f32 %v1970, 0.35355338
    %v1977 = vsel %vm199, %v1975, -inf
    %1978 = vmax.xlane.f32.xlu0 %v1977
    %v1979 = vpop.xlane.xlu0 %1978
    %v1980 = vsel %vm199, %v1976, -inf
    %1981 = vmax.xlane.f32.xlu0 %v1980
    %v1982 = vpop.xlane.xlu0 %1981
    %v1983 = vsub.f32 %v1975, %v1979
    %v1984 = vsub.f32 %v1976, %v1982
    %v1985 = vmul.f32 %v1983, 1.442695
    %v1986 = vpow.pop %v1985
    %v1987 = vmul.f32 %v1984, 1.442695
    %v1988 = vpow.pop %v1987
    %v1989 = vsel %vm199, %v1986, 0.0
    %1990 = vadd.xlane.f32.xlu0 %v1989
    %v1991 = vpop.xlane.xlu0 %1990
    %v1992 = vsel %vm199, %v1988, 0.0
    %1993 = vadd.xlane.f32.xlu0 %v1992
    %v1994 = vpop.xlane.xlu0 %1993
    %v1995 = vrcp.pop %v1991
    %v1996 = vrcp.pop %v1994
    %v1997 = vmul.f32 %v1986, %v1995
    %v1998 = vmul.f32 %v1988, %v1996
    %v1999 = vpack.c.bf16 %v1997, %v1997
    %v2000 = vpack.c.bf16 %v1998, %v1998
    %2001 = vrot.lane.b32.xlu0 %v1431, 48
    %v2002 = vpop.permute.xlu0 %2001
    %v2004 = vsel %vm199, %v1999, 0
    %v2007 = vsel %vm326, %v2002, 0
    %2009 = vmatprep.subr.bf16.mxu0 0
    %2010 = vmatpush1.bf16.msra.mxu0 %v2007
    %2011 = vmatprep.subr.bf16.mxu0 0
    %2012 = vmatpush1.bf16.msra.mxu0 0
    %2013 = vmatprep.subr.bf16.mxu0 0
    %2014 = vmatpush1.bf16.msra.mxu0 0
    %2015 = vmatprep.subr.bf16.mxu0 0
    %2016 = vmatpush1.bf16.msra.mxu0 0
    %2017 = vmatprep.subr.bf16.mxu0 0
    %2018 = vmatpush1.bf16.msra.mxu0 0
    %2019 = vmatprep.subr.bf16.mxu0 0
    %2020 = vmatpush1.bf16.msra.mxu0 0
    %2021 = vmatprep.subr.bf16.mxu0 0
    %2022 = vmatpush1.bf16.msra.mxu0 0
    %2023 = vmatprep.subr.bf16.mxu0 0
    %2024 = vmatpush1.bf16.msra.mxu0 0
    %2025 = vmatprep.subr.bf16.mxu0 0
    %2026 = vmatpush1.bf16.msra.mxu0 0
    %2027 = vmatprep.subr.bf16.mxu0 0
    %2028 = vmatpush1.bf16.msra.mxu0 0
    %2029 = vmatprep.subr.bf16.mxu0 0
    %2030 = vmatpush1.bf16.msra.mxu0 0
    %2031 = vmatprep.subr.bf16.mxu0 0
    %2032 = vmatpush1.bf16.msra.mxu0 0
    %2033 = vmatprep.subr.bf16.mxu0 0
    %2034 = vmatpush1.bf16.msra.mxu0 0
    %2035 = vmatprep.subr.bf16.mxu0 0
    %2036 = vmatpush1.bf16.msra.mxu0 0
    %2037 = vmatprep.subr.bf16.mxu0 0
    %2038 = vmatpush1.bf16.msra.mxu0 0
    %2039 = vmatprep.subr.bf16.mxu0 0
    %2040 = vmatpush1.bf16.msra.mxu0 0
    %2041 = vmatprep.mubr.bf16.mxu0 0
    %2042 = vmatmul.mubr.bf16.gmra.mrb[0].mxu0 %v2004
    %v2043 = vpop.f32.mrb[0].mxu0
    %v2044 = vadd.f32 0.0, %v2043
    %v2045 = vpop.f32.mrb[0].mxu0
    %v2046 = vpop.f32.mrb[0].mxu0
    %v2047 = vpop.f32.mrb[0].mxu0
    %2048 = vdwg.mxu0
    %2049 = vrot.lane.b32.xlu0 %v1432, 48
    %v2050 = vpop.permute.xlu0 %2049
    %v2052 = vsel %vm199, %v2000, 0
    %v2055 = vsel %vm326, %v2050, 0
    %2057 = vmatprep.subr.bf16.mxu0 0
    %2058 = vmatpush1.bf16.msra.mxu0 %v2055
    %2059 = vmatprep.subr.bf16.mxu0 0
    %2060 = vmatpush1.bf16.msra.mxu0 0
    %2061 = vmatprep.subr.bf16.mxu0 0
    %2062 = vmatpush1.bf16.msra.mxu0 0
    %2063 = vmatprep.subr.bf16.mxu0 0
    %2064 = vmatpush1.bf16.msra.mxu0 0
    %2065 = vmatprep.subr.bf16.mxu0 0
    %2066 = vmatpush1.bf16.msra.mxu0 0
    %2067 = vmatprep.subr.bf16.mxu0 0
    %2068 = vmatpush1.bf16.msra.mxu0 0
    %2069 = vmatprep.subr.bf16.mxu0 0
    %2070 = vmatpush1.bf16.msra.mxu0 0
    %2071 = vmatprep.subr.bf16.mxu0 0
    %2072 = vmatpush1.bf16.msra.mxu0 0
    %2073 = vmatprep.subr.bf16.mxu0 0
    %2074 = vmatpush1.bf16.msra.mxu0 0
    %2075 = vmatprep.subr.bf16.mxu0 0
    %2076 = vmatpush1.bf16.msra.mxu0 0
    %2077 = vmatprep.subr.bf16.mxu0 0
    %2078 = vmatpush1.bf16.msra.mxu0 0
    %2079 = vmatprep.subr.bf16.mxu0 0
    %2080 = vmatpush1.bf16.msra.mxu0 0
    %2081 = vmatprep.subr.bf16.mxu0 0
    %2082 = vmatpush1.bf16.msra.mxu0 0
    %2083 = vmatprep.subr.bf16.mxu0 0
    %2084 = vmatpush1.bf16.msra.mxu0 0
    %2085 = vmatprep.subr.bf16.mxu0 0
    %2086 = vmatpush1.bf16.msra.mxu0 0
    %2087 = vmatprep.subr.bf16.mxu0 0
    %2088 = vmatpush1.bf16.msra.mxu0 0
    %2089 = vmatprep.mubr.bf16.mxu0 0
    %2090 = vmatmul.mubr.bf16.gmra.mrb[0].mxu0 %v2052
    %v2091 = vpop.f32.mrb[0].mxu0
    %v2092 = vadd.f32 0.0, %v2091
    %v2093 = vpop.f32.mrb[0].mxu0
    %v2094 = vpop.f32.mrb[0].mxu0
    %v2095 = vpop.f32.mrb[0].mxu0
    %2096 = vdwg.mxu0
    %2097 = vrot.lane.b32.xlu0 %v1431, 104
    %v2098 = vpop.permute.xlu0 %2097
    %2099 = vrot.lane.b32.xlu0 %v1431, 72
    %v2100 = vpop.permute.xlu0 %2099
    %v2102 = vsel %vm199, %v2098, 0
    %v2105 = vsel %vm199, %v2100, 0
    %2107 = vmatprep.subr.bf16.mxu0 0
    %2108 = vmatpush1.bf16.xpose.msra.mxu0 %v2105
    %2109 = vmatprep.subr.bf16.mxu0 0
    %2110 = vmatpush1.bf16.xpose.msra.mxu0 0
    %2111 = vmatprep.subr.bf16.mxu0 0
    %2112 = vmatpush1.bf16.xpose.msra.mxu0 0
    %2113 = vmatprep.subr.bf16.mxu0 0
    %2114 = vmatpush1.bf16.xpose.msra.mxu0 0
    %2115 = vmatprep.subr.bf16.mxu0 0
    %2116 = vmatpush1.bf16.xpose.msra.mxu0 0
    %2117 = vmatprep.subr.bf16.mxu0 0
    %2118 = vmatpush1.bf16.xpose.msra.mxu0 0
    %2119 = vmatprep.subr.bf16.mxu0 0
    %2120 = vmatpush1.bf16.xpose.msra.mxu0 0
    %2121 = vmatprep.subr.bf16.mxu0 0
    %2122 = vmatpush1.bf16.xpose.msra.mxu0 0
    %2123 = vmatprep.subr.bf16.mxu0 0
    %2124 = vmatpush1.bf16.xpose.msra.mxu0 0
    %2125 = vmatprep.subr.bf16.mxu0 0
    %2126 = vmatpush1.bf16.xpose.msra.mxu0 0
    %2127 = vmatprep.subr.bf16.mxu0 0
    %2128 = vmatpush1.bf16.xpose.msra.mxu0 0
    %2129 = vmatprep.subr.bf16.mxu0 0
    %2130 = vmatpush1.bf16.xpose.msra.mxu0 0
    %2131 = vmatprep.subr.bf16.mxu0 0
    %2132 = vmatpush1.bf16.xpose.msra.mxu0 0
    %2133 = vmatprep.subr.bf16.mxu0 0
    %2134 = vmatpush1.bf16.xpose.msra.mxu0 0
    %2135 = vmatprep.subr.bf16.mxu0 0
    %2136 = vmatpush1.bf16.xpose.msra.mxu0 0
    %2137 = vmatprep.subr.bf16.mxu0 0
    %2138 = vmatpush1.bf16.xpose.msra.mxu0 0
    %2139 = vmatprep.mubr.bf16.mxu0 0
    %2140 = vmatmul.mubr.bf16.gmra.mrb[0].mxu0 %v2102
    %v2141 = vpop.f32.mrb[0].mxu0
    %v2142 = vadd.f32 0.0, %v2141
    %v2143 = vpop.f32.mrb[0].mxu0
    %v2144 = vpop.f32.mrb[0].mxu0
    %v2145 = vpop.f32.mrb[0].mxu0
    %2146 = vdwg.mxu0
    %2147 = vrot.lane.b32.xlu0 %v1432, 104
    %v2148 = vpop.permute.xlu0 %2147
    %2149 = vrot.lane.b32.xlu0 %v1432, 72
    %v2150 = vpop.permute.xlu0 %2149
    %v2152 = vsel %vm199, %v2148, 0
    %v2155 = vsel %vm199, %v2150, 0
    %2157 = vmatprep.subr.bf16.mxu0 0
    %2158 = vmatpush1.bf16.xpose.msra.mxu0 %v2155
    %2159 = vmatprep.subr.bf16.mxu0 0
    %2160 = vmatpush1.bf16.xpose.msra.mxu0 0
    %2161 = vmatprep.subr.bf16.mxu0 0
    %2162 = vmatpush1.bf16.xpose.msra.mxu0 0
    %2163 = vmatprep.subr.bf16.mxu0 0
    %2164 = vmatpush1.bf16.xpose.msra.mxu0 0
    %2165 = vmatprep.subr.bf16.mxu0 0
    %2166 = vmatpush1.bf16.xpose.msra.mxu0 0
    %2167 = vmatprep.subr.bf16.mxu0 0
    %2168 = vmatpush1.bf16.xpose.msra.mxu0 0
    %2169 = vmatprep.subr.bf16.mxu0 0
    %2170 = vmatpush1.bf16.xpose.msra.mxu0 0
    %2171 = vmatprep.subr.bf16.mxu0 0
    %2172 = vmatpush1.bf16.xpose.msra.mxu0 0
    %2173 = vmatprep.subr.bf16.mxu0 0
    %2174 = vmatpush1.bf16.xpose.msra.mxu0 0
    %2175 = vmatprep.subr.bf16.mxu0 0
    %2176 = vmatpush1.bf16.xpose.msra.mxu0 0
    %2177 = vmatprep.subr.bf16.mxu0 0
    %2178 = vmatpush1.bf16.xpose.msra.mxu0 0
    %2179 = vmatprep.subr.bf16.mxu0 0
    %2180 = vmatpush1.bf16.xpose.msra.mxu0 0
    %2181 = vmatprep.subr.bf16.mxu0 0
    %2182 = vmatpush1.bf16.xpose.msra.mxu0 0
    %2183 = vmatprep.subr.bf16.mxu0 0
    %2184 = vmatpush1.bf16.xpose.msra.mxu0 0
    %2185 = vmatprep.subr.bf16.mxu0 0
    %2186 = vmatpush1.bf16.xpose.msra.mxu0 0
    %2187 = vmatprep.subr.bf16.mxu0 0
    %2188 = vmatpush1.bf16.xpose.msra.mxu0 0
    %2189 = vmatprep.mubr.bf16.mxu0 0
    %2190 = vmatmul.mubr.bf16.gmra.mrb[0].mxu0 %v2152
    %v2191 = vpop.f32.mrb[0].mxu0
    %v2192 = vadd.f32 0.0, %v2191
    %v2193 = vpop.f32.mrb[0].mxu0
    %v2194 = vpop.f32.mrb[0].mxu0
    %v2195 = vpop.f32.mrb[0].mxu0
    %2196 = vdwg.mxu0
    %v2197 = vmul.f32 %v2142, 0.35355338
    %v2198 = vmul.f32 %v2192, 0.35355338
    %v2199 = vsel %vm199, %v2197, -inf
    %2200 = vmax.xlane.f32.xlu0 %v2199
    %v2201 = vpop.xlane.xlu0 %2200
    %v2202 = vsel %vm199, %v2198, -inf
    %2203 = vmax.xlane.f32.xlu0 %v2202
    %v2204 = vpop.xlane.xlu0 %2203
    %v2205 = vsub.f32 %v2197, %v2201
    %v2206 = vsub.f32 %v2198, %v2204
    %v2207 = vmul.f32 %v2205, 1.442695
    %v2208 = vpow.pop %v2207
    %v2209 = vmul.f32 %v2206, 1.442695
    %v2210 = vpow.pop %v2209
    %v2211 = vsel %vm199, %v2208, 0.0
    %2212 = vadd.xlane.f32.xlu0 %v2211
    %v2213 = vpop.xlane.xlu0 %2212
    %v2214 = vsel %vm199, %v2210, 0.0
    %2215 = vadd.xlane.f32.xlu0 %v2214
    %v2216 = vpop.xlane.xlu0 %2215
    %v2217 = vrcp.pop %v2213
    %v2218 = vrcp.pop %v2216
    %v2219 = vmul.f32 %v2208, %v2217
    %v2220 = vmul.f32 %v2210, %v2218
    %v2221 = vpack.c.bf16 %v2219, %v2219
    %v2222 = vpack.c.bf16 %v2220, %v2220
    %2223 = vrot.lane.b32.xlu0 %v1431, 40
    %v2224 = vpop.permute.xlu0 %2223
    %v2226 = vsel %vm199, %v2221, 0
    %v2229 = vsel %vm326, %v2224, 0
    %2231 = vmatprep.subr.bf16.mxu0 0
    %2232 = vmatpush1.bf16.msra.mxu0 %v2229
    %2233 = vmatprep.subr.bf16.mxu0 0
    %2234 = vmatpush1.bf16.msra.mxu0 0
    %2235 = vmatprep.subr.bf16.mxu0 0
    %2236 = vmatpush1.bf16.msra.mxu0 0
    %2237 = vmatprep.subr.bf16.mxu0 0
    %2238 = vmatpush1.bf16.msra.mxu0 0
    %2239 = vmatprep.subr.bf16.mxu0 0
    %2240 = vmatpush1.bf16.msra.mxu0 0
    %2241 = vmatprep.subr.bf16.mxu0 0
    %2242 = vmatpush1.bf16.msra.mxu0 0
    %2243 = vmatprep.subr.bf16.mxu0 0
    %2244 = vmatpush1.bf16.msra.mxu0 0
    %2245 = vmatprep.subr.bf16.mxu0 0
    %2246 = vmatpush1.bf16.msra.mxu0 0
    %2247 = vmatprep.subr.bf16.mxu0 0
    %2248 = vmatpush1.bf16.msra.mxu0 0
    %2249 = vmatprep.subr.bf16.mxu0 0
    %2250 = vmatpush1.bf16.msra.mxu0 0
    %2251 = vmatprep.subr.bf16.mxu0 0
    %2252 = vmatpush1.bf16.msra.mxu0 0
    %2253 = vmatprep.subr.bf16.mxu0 0
    %2254 = vmatpush1.bf16.msra.mxu0 0
    %2255 = vmatprep.subr.bf16.mxu0 0
    %2256 = vmatpush1.bf16.msra.mxu0 0
    %2257 = vmatprep.subr.bf16.mxu0 0
    %2258 = vmatpush1.bf16.msra.mxu0 0
    %2259 = vmatprep.subr.bf16.mxu0 0
    %2260 = vmatpush1.bf16.msra.mxu0 0
    %2261 = vmatprep.subr.bf16.mxu0 0
    %2262 = vmatpush1.bf16.msra.mxu0 0
    %2263 = vmatprep.mubr.bf16.mxu0 0
    %2264 = vmatmul.mubr.bf16.gmra.mrb[0].mxu0 %v2226
    %v2265 = vpop.f32.mrb[0].mxu0
    %v2266 = vadd.f32 0.0, %v2265
    %v2267 = vpop.f32.mrb[0].mxu0
    %v2268 = vpop.f32.mrb[0].mxu0
    %v2269 = vpop.f32.mrb[0].mxu0
    %2270 = vdwg.mxu0
    %2271 = vrot.lane.b32.xlu0 %v1432, 40
    %v2272 = vpop.permute.xlu0 %2271
    %v2274 = vsel %vm199, %v2222, 0
    %v2277 = vsel %vm326, %v2272, 0
    %2279 = vmatprep.subr.bf16.mxu0 0
    %2280 = vmatpush1.bf16.msra.mxu0 %v2277
    %2281 = vmatprep.subr.bf16.mxu0 0
    %2282 = vmatpush1.bf16.msra.mxu0 0
    %2283 = vmatprep.subr.bf16.mxu0 0
    %2284 = vmatpush1.bf16.msra.mxu0 0
    %2285 = vmatprep.subr.bf16.mxu0 0
    %2286 = vmatpush1.bf16.msra.mxu0 0
    %2287 = vmatprep.subr.bf16.mxu0 0
    %2288 = vmatpush1.bf16.msra.mxu0 0
    %2289 = vmatprep.subr.bf16.mxu0 0
    %2290 = vmatpush1.bf16.msra.mxu0 0
    %2291 = vmatprep.subr.bf16.mxu0 0
    %2292 = vmatpush1.bf16.msra.mxu0 0
    %2293 = vmatprep.subr.bf16.mxu0 0
    %2294 = vmatpush1.bf16.msra.mxu0 0
    %2295 = vmatprep.subr.bf16.mxu0 0
    %2296 = vmatpush1.bf16.msra.mxu0 0
    %2297 = vmatprep.subr.bf16.mxu0 0
    %2298 = vmatpush1.bf16.msra.mxu0 0
    %2299 = vmatprep.subr.bf16.mxu0 0
    %2300 = vmatpush1.bf16.msra.mxu0 0
    %2301 = vmatprep.subr.bf16.mxu0 0
    %2302 = vmatpush1.bf16.msra.mxu0 0
    %2303 = vmatprep.subr.bf16.mxu0 0
    %2304 = vmatpush1.bf16.msra.mxu0 0
    %2305 = vmatprep.subr.bf16.mxu0 0
    %2306 = vmatpush1.bf16.msra.mxu0 0
    %2307 = vmatprep.subr.bf16.mxu0 0
    %2308 = vmatpush1.bf16.msra.mxu0 0
    %2309 = vmatprep.subr.bf16.mxu0 0
    %2310 = vmatpush1.bf16.msra.mxu0 0
    %2311 = vmatprep.mubr.bf16.mxu0 0
    %2312 = vmatmul.mubr.bf16.gmra.mrb[0].mxu0 %v2274
    %v2313 = vpop.f32.mrb[0].mxu0
    %v2314 = vadd.f32 0.0, %v2313
    %v2315 = vpop.f32.mrb[0].mxu0
    %v2316 = vpop.f32.mrb[0].mxu0
    %v2317 = vpop.f32.mrb[0].mxu0
    %2318 = vdwg.mxu0
    %2321 = vrot.lane.b32.xlu0 %v1822, 8
    %v2322 = vpop.permute.xlu0 %2321
    %2323 = vrot.lane.b32.xlu0 %v1870, 8
    %v2324 = vpop.permute.xlu0 %2323
    %2329 = vrot.lane.b32.xlu0 %v2044, 16
    %v2330 = vpop.permute.xlu0 %2329
    %2331 = vrot.lane.b32.xlu0 %v2092, 16
    %v2332 = vpop.permute.xlu0 %2331
    %2337 = vrot.lane.b32.xlu0 %v2266, 24
    %v2338 = vpop.permute.xlu0 %2337
    %2339 = vrot.lane.b32.xlu0 %v2314, 24
    %v2340 = vpop.permute.xlu0 %2339
    %v2343 = vsel %vm199, %v1600, %v2322
    %v2344 = vsel %vm199, %v1648, %v2324
    %v2345 = vsel %vm1110, %v2343, %v2330
    %v2346 = vsel %vm1110, %v2344, %v2332
    %v2347 = vsel %vm1113, %v2345, %v2338
    %v2348 = vsel %vm1113, %v2346, %v2340
    %v2349 = vpack.c.bf16 %v2348, %v2347
    %s2350 = scalar_lea.vmem %s4, 32
    %v2351 = vld [vmem:[%s2350] sm:$0xff]
    %v2352 = vld [vmem:[%s2350 + $0x8] sm:$0xff]
    %v2353 = vld [vmem:[%s2350 + $0x10] sm:$0xff]
    %v2354 = vld [vmem:[%s2350 + $0x18] sm:$0xff]
    %v2355 = vpack.c.bf16 %v2352, %v2351
    %v2356 = vpack.c.bf16 %v2354, %v2353
    %v2358 = vsel %vm149, %v2349, 0
    %2360 = vmatprep.subr.bf16.mxu0 0
    %2361 = vmatpush1.bf16.msra.mxu0 %v2355
    %2362 = vmatprep.subr.bf16.mxu0 0
    %2363 = vmatpush1.bf16.msra.mxu0 %v2356
    %2364 = vmatprep.subr.bf16.mxu0 0
    %2365 = vmatpush1.bf16.msra.mxu0 0
    %2366 = vmatprep.subr.bf16.mxu0 0
    %2367 = vmatpush1.bf16.msra.mxu0 0
    %2368 = vmatprep.subr.bf16.mxu0 0
    %2369 = vmatpush1.bf16.msra.mxu0 0
    %2370 = vmatprep.subr.bf16.mxu0 0
    %2371 = vmatpush1.bf16.msra.mxu0 0
    %2372 = vmatprep.subr.bf16.mxu0 0
    %2373 = vmatpush1.bf16.msra.mxu0 0
    %2374 = vmatprep.subr.bf16.mxu0 0
    %2375 = vmatpush1.bf16.msra.mxu0 0
    %2376 = vmatprep.subr.bf16.mxu0 0
    %2377 = vmatpush1.bf16.msra.mxu0 0
    %2378 = vmatprep.subr.bf16.mxu0 0
    %2379 = vmatpush1.bf16.msra.mxu0 0
    %2380 = vmatprep.subr.bf16.mxu0 0
    %2381 = vmatpush1.bf16.msra.mxu0 0
    %2382 = vmatprep.subr.bf16.mxu0 0
    %2383 = vmatpush1.bf16.msra.mxu0 0
    %2384 = vmatprep.subr.bf16.mxu0 0
    %2385 = vmatpush1.bf16.msra.mxu0 0
    %2386 = vmatprep.subr.bf16.mxu0 0
    %2387 = vmatpush1.bf16.msra.mxu0 0
    %2388 = vmatprep.subr.bf16.mxu0 0
    %2389 = vmatpush1.bf16.msra.mxu0 0
    %2390 = vmatprep.subr.bf16.mxu0 0
    %2391 = vmatpush1.bf16.msra.mxu0 0
    %2392 = vmatprep.mubr.bf16.mxu0 0
    %2393 = vmatmul.mubr.bf16.gmra.mrb[0].mxu0 %v2358
    %v2394 = vpop.f32.mrb[0].mxu0
    %v2395 = vadd.f32 0.0, %v2394
    %v2396 = vpop.f32.mrb[0].mxu0
    %v2397 = vpop.f32.mrb[0].mxu0
    %v2398 = vadd.f32 0.0, %v2397
    %v2399 = vpop.f32.mrb[0].mxu0
    %2400 = vdwg.mxu0
    %v2401 = vadd.f32 %v1377, %v2395
    %v2402 = vadd.f32 %v1378, %v2398
    %v2403 = vsel %vm149, %v2401, 0.0
    %v2404 = vsel %vm149, %v2402, 0.0
    %v2405 = vadd.f32 %v2403, %v2404
    %v2406 = vrot.slane %v2405, 4
    %v2407 = vadd.f32 %v2405, %v2406
    %v2408 = vrot.slane %v2407, 2
    %v2409 = vadd.f32 %v2407, %v2408
    %v2410 = vrot.slane %v2409, 1
    %v2411 = vadd.f32 %v2409, %v2410
    %v2412 = vmul.f32 %v2411, %v1178
    %v2413 = vsub.f32 %v2401, %v2412
    %v2414 = vsub.f32 %v2402, %v2412
    %v2415 = vmul.f32 %v2413, %v2413
    %v2416 = vmul.f32 %v2414, %v2414
    %v2417 = vsel %vm149, %v2415, 0.0
    %v2418 = vsel %vm149, %v2416, 0.0
    %v2419 = vadd.f32 %v2417, %v2418
    %v2420 = vrot.slane %v2419, 4
    %v2421 = vadd.f32 %v2419, %v2420
    %v2422 = vrot.slane %v2421, 2
    %v2423 = vadd.f32 %v2421, %v2422
    %v2424 = vrot.slane %v2423, 1
    %v2425 = vadd.f32 %v2423, %v2424
    %v2426 = vmul.f32 %v2425, %v1178
    %v2427 = vadd.f32 %v2426, 1e-05
    %v2428 = vrsqrt.pop %v2427
    %v2429 = vmul.f32 %v2413, %v2428
    %v2430 = vmul.f32 %v2414, %v2428
    %v2431 = vld [vmem:[%s5 + $0x1] sm:$0x1]
    %v2432 = vlaneseq
    %v2433 = vshrl.u32 %v2432, 7
    %v2434 = vsub.s32 0, %v2433
    %v2435 = vrot.slane %v2431, %v2434
    %v2436 = vmul.f32 %v2429, %v2435
    %v2437 = vmul.f32 %v2430, %v2435
    %v2438 = vld [vmem:[%s6 + $0x1] sm:$0x1]
    %v2439 = vlaneseq
    %v2440 = vshrl.u32 %v2439, 7
    %v2441 = vsub.s32 0, %v2440
    %v2442 = vrot.slane %v2438, %v2441
    %v2443 = vadd.f32 %v2436, %v2442
    %v2444 = vadd.f32 %v2437, %v2442
    %v2445 = vpack.c.bf16 %v2444, %v2443
    %s2446 = scalar_lea.vmem %s7, 32
    %v2447 = vld [vmem:[%s2446] sm:$0xff]
    %v2448 = vld [vmem:[%s2446 + $0x8] sm:$0xff]
    %v2449 = vld [vmem:[%s2446 + $0x10] sm:$0xff]
    %v2450 = vld [vmem:[%s2446 + $0x18] sm:$0xff]
    %v2451 = vpack.c.bf16 %v2448, %v2447
    %v2452 = vpack.c.bf16 %v2450, %v2449
    %v2453 = vld [vmem:[%s8 + $0x1] sm:$0x1]
    %v2454 = vlaneseq
    %v2455 = vshrl.u32 %v2454, 7
    %v2456 = vsub.s32 0, %v2455
    %v2457 = vrot.slane %v2453, %v2456
    %v2459 = vsel %vm149, %v2445, 0
    %2461 = vmatprep.subr.bf16.mxu0 0
    %2462 = vmatpush1.bf16.msra.mxu0 %v2451
    %2463 = vmatprep.subr.bf16.mxu0 0
    %2464 = vmatpush1.bf16.msra.mxu0 %v2452
    %2465 = vmatprep.subr.bf16.mxu0 0
    %2466 = vmatpush1.bf16.msra.mxu0 0
    %2467 = vmatprep.subr.bf16.mxu0 0
    %2468 = vmatpush1.bf16.msra.mxu0 0
    %2469 = vmatprep.subr.bf16.mxu0 0
    %2470 = vmatpush1.bf16.msra.mxu0 0
    %2471 = vmatprep.subr.bf16.mxu0 0
    %2472 = vmatpush1.bf16.msra.mxu0 0
    %2473 = vmatprep.subr.bf16.mxu0 0
    %2474 = vmatpush1.bf16.msra.mxu0 0
    %2475 = vmatprep.subr.bf16.mxu0 0
    %2476 = vmatpush1.bf16.msra.mxu0 0
    %2477 = vmatprep.subr.bf16.mxu0 0
    %2478 = vmatpush1.bf16.msra.mxu0 0
    %2479 = vmatprep.subr.bf16.mxu0 0
    %2480 = vmatpush1.bf16.msra.mxu0 0
    %2481 = vmatprep.subr.bf16.mxu0 0
    %2482 = vmatpush1.bf16.msra.mxu0 0
    %2483 = vmatprep.subr.bf16.mxu0 0
    %2484 = vmatpush1.bf16.msra.mxu0 0
    %2485 = vmatprep.subr.bf16.mxu0 0
    %2486 = vmatpush1.bf16.msra.mxu0 0
    %2487 = vmatprep.subr.bf16.mxu0 0
    %2488 = vmatpush1.bf16.msra.mxu0 0
    %2489 = vmatprep.subr.bf16.mxu0 0
    %2490 = vmatpush1.bf16.msra.mxu0 0
    %2491 = vmatprep.subr.bf16.mxu0 0
    %2492 = vmatpush1.bf16.msra.mxu0 0
    %2493 = vmatprep.mubr.bf16.mxu0 0
    %2494 = vmatmul.mubr.bf16.gmra.mrb[0].mxu0 %v2459
    %v2495 = vpop.f32.mrb[0].mxu0
    %v2496 = vadd.f32 %v2457, %v2495
    %v2497 = vpop.f32.mrb[0].mxu0
    %v2498 = vpop.f32.mrb[0].mxu0
    %v2499 = vadd.f32 %v2457, %v2498
    %v2500 = vpop.f32.mrb[0].mxu0
    %2501 = vdwg.mxu0
    %v2502 = vmax.f32 %v2496, 0.0
    %v2503 = vmax.f32 %v2499, 0.0
    %v2504 = vpack.c.bf16 %v2503, %v2502
    %s2505 = scalar_lea.vmem %s9, 64
    %v2506 = vld [vmem:[%s2505] sm:$0xff]
    %v2507 = vld [vmem:[%s2505 + $0x8] sm:$0xff]
    %v2508 = vld [vmem:[%s2505 + $0x10] sm:$0xff]
    %v2509 = vld [vmem:[%s2505 + $0x18] sm:$0xff]
    %v2510 = vld [vmem:[%s2505 + $0x20] sm:$0xff]
    %v2511 = vld [vmem:[%s2505 + $0x28] sm:$0xff]
    %v2512 = vld [vmem:[%s2505 + $0x30] sm:$0xff]
    %v2513 = vld [vmem:[%s2505 + $0x38] sm:$0xff]
    %v2514 = vpack.c.bf16 %v2507, %v2506
    %v2515 = vpack.c.bf16 %v2509, %v2508
    %v2516 = vpack.c.bf16 %v2511, %v2510
    %v2517 = vpack.c.bf16 %v2513, %v2512
    %v2519 = vsel %vm1283, %v2504, 0
    %2521 = vmatprep.subr.bf16.mxu0 0
    %2522 = vmatpush1.bf16.msra.mxu0 %v2514
    %2523 = vmatprep.subr.bf16.mxu0 0
    %2524 = vmatpush1.bf16.msra.mxu0 %v2515
    %2525 = vmatprep.subr.bf16.mxu0 0
    %2526 = vmatpush1.bf16.msra.mxu0 %v2516
    %2527 = vmatprep.subr.bf16.mxu0 0
    %2528 = vmatpush1.bf16.msra.mxu0 %v2517
    %2529 = vmatprep.subr.bf16.mxu0 0
    %2530 = vmatpush1.bf16.msra.mxu0 0
    %2531 = vmatprep.subr.bf16.mxu0 0
    %2532 = vmatpush1.bf16.msra.mxu0 0
    %2533 = vmatprep.subr.bf16.mxu0 0
    %2534 = vmatpush1.bf16.msra.mxu0 0
    %2535 = vmatprep.subr.bf16.mxu0 0
    %2536 = vmatpush1.bf16.msra.mxu0 0
    %2537 = vmatprep.subr.bf16.mxu0 0
    %2538 = vmatpush1.bf16.msra.mxu0 0
    %2539 = vmatprep.subr.bf16.mxu0 0
    %2540 = vmatpush1.bf16.msra.mxu0 0
    %2541 = vmatprep.subr.bf16.mxu0 0
    %2542 = vmatpush1.bf16.msra.mxu0 0
    %2543 = vmatprep.subr.bf16.mxu0 0
    %2544 = vmatpush1.bf16.msra.mxu0 0
    %2545 = vmatprep.subr.bf16.mxu0 0
    %2546 = vmatpush1.bf16.msra.mxu0 0
    %2547 = vmatprep.subr.bf16.mxu0 0
    %2548 = vmatpush1.bf16.msra.mxu0 0
    %2549 = vmatprep.subr.bf16.mxu0 0
    %2550 = vmatpush1.bf16.msra.mxu0 0
    %2551 = vmatprep.subr.bf16.mxu0 0
    %2552 = vmatpush1.bf16.msra.mxu0 0
    %2553 = vmatprep.mubr.bf16.mxu0 0
    %2554 = vmatmul.mubr.bf16.gmra.mrb[0].mxu0 %v2519
    %v2555 = vpop.f32.mrb[0].mxu0
    %v2556 = vadd.f32 0.0, %v2555
    %v2557 = vpop.f32.mrb[0].mxu0
    %v2558 = vpop.f32.mrb[0].mxu0
    %v2559 = vadd.f32 0.0, %v2558
    %v2560 = vpop.f32.mrb[0].mxu0
    %2561 = vdwg.mxu0
    %v2562 = vadd.f32 %v2443, %v2556
    %v2563 = vadd.f32 %v2444, %v2559
    %v2564 = vld [vmem:[%s10 + $0x1] sm:$0x1]
    %v2565 = vlaneseq
    %v2566 = vshrl.u32 %v2565, 7
    %v2567 = vsub.s32 0, %v2566
    %v2568 = vrot.slane %v2564, %v2567
    %v2569 = vadd.f32 %v2562, %v2568
    %v2570 = vadd.f32 %v2563, %v2568
    %v2571 = vsel %vm149, %v2569, 0.0
    %v2572 = vsel %vm149, %v2570, 0.0
    %v2573 = vadd.f32 %v2571, %v2572
    %v2574 = vrot.slane %v2573, 4
    %v2575 = vadd.f32 %v2573, %v2574
    %v2576 = vrot.slane %v2575, 2
    %v2577 = vadd.f32 %v2575, %v2576
    %v2578 = vrot.slane %v2577, 1
    %v2579 = vadd.f32 %v2577, %v2578
    %v2580 = vmul.f32 %v2579, %v1178
    %v2581 = vsub.f32 %v2569, %v2580
    %v2582 = vsub.f32 %v2570, %v2580
    %v2583 = vmul.f32 %v2581, %v2581
    %v2584 = vmul.f32 %v2582, %v2582
    %v2585 = vsel %vm149, %v2583, 0.0
    %v2586 = vsel %vm149, %v2584, 0.0
    %v2587 = vadd.f32 %v2585, %v2586
    %v2588 = vrot.slane %v2587, 4
    %v2589 = vadd.f32 %v2587, %v2588
    %v2590 = vrot.slane %v2589, 2
    %v2591 = vadd.f32 %v2589, %v2590
    %v2592 = vrot.slane %v2591, 1
    %v2593 = vadd.f32 %v2591, %v2592
    %v2594 = vmul.f32 %v2593, %v1178
    %v2595 = vadd.f32 %v2594, 1e-05
    %v2596 = vrsqrt.pop %v2595
    %v2597 = vmul.f32 %v2581, %v2596
    %v2598 = vmul.f32 %v2582, %v2596
    %v2599 = vld [vmem:[%s11 + $0x1] sm:$0x1]
    %v2600 = vlaneseq
    %v2601 = vshrl.u32 %v2600, 7
    %v2602 = vsub.s32 0, %v2601
    %v2603 = vrot.slane %v2599, %v2602
    %v2604 = vmul.f32 %v2597, %v2603
    %v2605 = vmul.f32 %v2598, %v2603
    %v2606 = vld [vmem:[%s12 + $0x1] sm:$0x1]
    %v2607 = vlaneseq
    %v2608 = vshrl.u32 %v2607, 7
    %v2609 = vsub.s32 0, %v2608
    %v2610 = vrot.slane %v2606, %v2609
    %v2611 = vadd.f32 %v2604, %v2610
    %v2612 = vadd.f32 %v2605, %v2610
    %2613 = vst.msk [vmem:[#allocation2] sm:$0xff] %vm149, %v2611
    %2614 = vst.msk [vmem:[#allocation2 + $0x8] sm:$0xff] %vm149, %v2612
    // Predicated region
    $region54: #{tpu_custom_call.1} parent=1 // pred_check
      _
    $region55: #{tpu_custom_call.1} parent=1 // pred_check_branch
      %2616 = sbr.rel (0) target = $region57
    $region56: #{tpu_custom_call.1} parent=1 // pred_region
      %s2618 = ssub.s32 256, 256
      %2619 = vsyncadd [#allocation3], %s2618
      %s2620 = sshll.u32 [#allocation2], 4
      %s2621 = int_to_ptr.vmem [resolvable:$true] %s2620
      %2626 = dma.vmem_to_hbm [thread:$0]  %s2621, 256, %s13, [#allocation3], 128, 128, 8
    $region57: #{tpu_custom_call.1} parent=1 // pred_fallthru
      _
    // Predicated region
    $region58: #{tpu_custom_call.1} parent=1 // pred_check
      _
    $region59: #{tpu_custom_call.1} parent=1 // pred_check_branch
      %2628 = sbr.rel (0) target = $region61
    $region60: #{tpu_custom_call.1} parent=1 // pred_region
      %2629 = dma.done [#allocation3], 256
    $region61: #{tpu_custom_call.1} parent=1 // pred_fallthru
      _
    %2630 = vsyncpa [#allocation3], 1

</llo_original>
